<compile_context>
chip_gen: v7x
topology: tpu7x:2x2x1
jax: 0.10.0
libtpu: 0.0.40
codegen_flags: <defaults>
</compile_context>

<pallas_src>
import functools

import jax
import jax.numpy as jnp
from jax.experimental import pallas as pl
from jax.experimental.pallas import tpu as pltpu


# ----------------------------- Pallas kernel --------------------------------
def _fconv_fused_kernel(x_ref, mask_ref, w_ref, s_ref, o_ref,
                        buf_a, buf_b, col, *, dims, H, W, NB):
    """Fully fused conv stack, channel-major layout.

    x_ref   : (NB, C0, Mp)     bf16  padded images, lanes = flattened (H+2)*(W+2)
    mask_ref: (1, Mp)          f32   1.0 at interior positions, 0.0 at pad rows
    w_ref   : (L, CMAX, KMAX)  bf16  weights packed (cout, k*k*cin), bias/BN folded
    s_ref   : (L, CMAX, 1)     f32   folded bias + BN shift
    o_ref   : (NB, OUTC, Mp)   f32
    buf_a/b : (CMAX, NB*SEG)   bf16  ping-pong activations (per-image guard lanes)
    col     : (KMAX, NB*Mp)    bf16  in-VMEM im2col feeding one fused dot/layer
    """
    Wp = W + 2
    Mp = (H + 2) * Wp
    G = Wp + 1                       # guard lanes >= max |tap offset|
    SEG = Mp + 2 * G
    CMAX = buf_a.shape[0]
    C0 = dims[0][0]
    n_layers = len(dims)

    # Guard lanes are read by shifted taps and must be zero.  Interiors are
    # always fully overwritten, so only the guards are cleared each grid step.
    zg = jnp.zeros((CMAX, G), jnp.bfloat16)
    for buf in (buf_a, buf_b):
        for b in range(NB):
            buf[:, b * SEG: b * SEG + G] = zg
            buf[:, b * SEG + G + Mp: (b + 1) * SEG] = zg

    # Load the input images (already channel-major & spatially zero-padded).
    for b in range(NB):
        buf_a[0:C0, b * SEG + G: b * SEG + G + Mp] = x_ref[b]

    mask = mask_ref[...]                        # (1, Mp), hoisted once
    bufs = (buf_a, buf_b)
    for li, (cin, cout, ksize, relu) in enumerate(dims):
        src = bufs[li % 2]
        dst = bufs[(li + 1) % 2]
        taps = ([(dh, dw) for dh in (-1, 0, 1) for dw in (-1, 0, 1)]
                if ksize == 3 else [(0, 0)])
        K = len(taps) * cin

        # In-VMEM im2col: lane-shifted copies of the source activations.
        for t, (dh, dw) in enumerate(taps):
            off = dh * Wp + dw
            for b in range(NB):
                s0 = b * SEG + G + off
                col[t * cin:(t + 1) * cin, b * Mp:(b + 1) * Mp] = \
                    src[0:cin, s0:s0 + Mp]

        # One fused MXU dot per layer: (cout, K) @ (K, NB*Mp), f32 accumulate.
        w = w_ref[li, 0:cout, 0:K]
        out = jnp.dot(w, col[0:K, :], preferred_element_type=jnp.float32)
        out = out + s_ref[li, 0:cout, :]        # folded bias + BN shift
        if relu:
            out = jnp.maximum(out, 0.0)

        if li == n_layers - 1:
            for b in range(NB):
                o_ref[b] = out[:, b * Mp:(b + 1) * Mp].astype(o_ref.dtype)
        else:
            # Re-zero spatial-pad positions so the next layer sees SAME padding.
            for b in range(NB):
                seg = out[:, b * Mp:(b + 1) * Mp] * mask
                dst[0:cout, b * SEG + G: b * SEG + G + Mp] = \
                    seg.astype(jnp.bfloat16)


# --------------------------- weight pre-packing ------------------------------
def _pack_layers(layers):
    """Fold conv bias + BN into weights; pack everything into two arrays:
       w_all (L, CMAX, KMAX) bf16 with rows (cout) x cols (tap-major k*k*cin),
       s_all (L, CMAX, 1) f32 folded shifts."""
    dims = []
    for layer in layers:
        cout, cin = layer["w"].shape[0], layer["w"].shape[1]
        dims.append((cin, cout, layer["ksize"], bool(layer["relu"])))
    cmax = max(dims[0][0], max(cout for _, cout, _, _ in dims))
    kmax = max(k * k * cin for cin, _, k, _ in dims)
    L = len(layers)

    w_all = jnp.zeros((L, cmax, kmax), jnp.float32)
    s_all = jnp.zeros((L, cmax, 1), jnp.float32)
    for li, layer in enumerate(layers):
        w, b = layer["w"], layer["b"]
        scale, shift = layer["scale"], layer["shift"]
        k = layer["ksize"]
        cout, cin = w.shape[0], w.shape[1]
        w_f = w * scale[:, None, None, None]              # fold BN scale
        s_f = (b * scale + shift).reshape(cout, 1)        # folded shift
        # (Cout,Cin,kh,kw) -> (Cout,kh,kw,Cin) -> (Cout, k*k*Cin): tap-major cols.
        wmat = jnp.transpose(w_f, (0, 2, 3, 1)).reshape(cout, k * k * cin)
        w_all = w_all.at[li, :cout, :k * k * cin].set(wmat)
        s_all = s_all.at[li, :cout, :].set(s_f)
    return w_all.astype(jnp.bfloat16), s_all, tuple(dims), cmax, kmax


def _tensorcores_per_chip() -> int:
    """Best-effort TC-per-chip detection (perf-only switch; safe either way)."""
    try:
        kind = jax.devices()[0].device_kind.lower()
    except Exception:
        return 2
    if any(t in kind for t in ("v5 lite", "v5e", "v6 lite", "v6e")):
        return 1
    return 2        # v7x / megacore / unknown: keep the parallel batch grid


# ------------------------------- forward ------------------------------------
def fconv_forward(params, input1_nchw, input2_nchw):
    x = jnp.concatenate([input1_nchw, input2_nchw], axis=1)     # torch.cat(dim=1)
    N, C0, H, W = x.shape
    Hp, Wp = H + 2, W + 2
    Mp, G = Hp * Wp, Wp + 1
    SEG = Mp + 2 * G

    w_all, s_all, dims, cmax, kmax = _pack_layers(params["layers"])
    out_c = dims[-1][1]
    L = len(dims)

    # One-time glue: NCHW is already channel-major -> pad H/W, flatten, bf16.
    xp = jnp.pad(x, ((0, 0), (0, 0), (1, 1), (1, 1)))
    xp = xp.reshape(N, C0, Mp).astype(jnp.bfloat16)

    # Interior mask over flattened padded positions, shape (1, Mp).
    pos = jnp.arange(Mp, dtype=jnp.int32)
    hh, ww = pos // Wp, pos % Wp
    mask = (((hh >= 1) & (hh <= H) & (ww >= 1) & (ww <= W))
            .astype(jnp.float32).reshape(1, Mp))

    # Batch handling: fold the whole batch into one grid step on single-TC
    # chips (v5e/v6e); keep a parallel per-image grid on multi-TC chips (v7x).
    NB = N if _tensorcores_per_chip() == 1 else 1
    grid = (N // NB,)
    semantics = ("arbitrary",) if grid[0] == 1 else ("parallel",)

    kernel = functools.partial(_fconv_fused_kernel, dims=dims, H=H, W=W, NB=NB)

    out_p = pl.pallas_call(
        kernel,
        out_shape=jax.ShapeDtypeStruct((N, out_c, Mp), jnp.float32),
        grid=grid,
        in_specs=[
            pl.BlockSpec((NB, C0, Mp), lambda n: (n, 0, 0)),
            pl.BlockSpec((1, Mp), lambda n: (0, 0)),
            pl.BlockSpec((L, cmax, kmax), lambda n: (0, 0, 0)),
            pl.BlockSpec((L, cmax, 1), lambda n: (0, 0, 0)),
        ],
        out_specs=pl.BlockSpec((NB, out_c, Mp), lambda n: (n, 0, 0)),
        scratch_shapes=[
            pltpu.VMEM((cmax, NB * SEG), jnp.bfloat16),   # ping-pong A (bf16)
            pltpu.VMEM((cmax, NB * SEG), jnp.bfloat16),   # ping-pong B (bf16)
            pltpu.VMEM((kmax, NB * Mp), jnp.bfloat16),    # in-VMEM im2col
        ],
        compiler_params=pltpu.CompilerParams(dimension_semantics=semantics),
        # TODO(synk): for much larger images add a row-tiled grid axis with a
        # G-row halo and an explicit vmem_limit_bytes (scratch scales O(H*W)).
    )(xp, mask, w_all, s_all)

    out = out_p.reshape(N, out_c, Hp, Wp)[:, :, 1:H + 1, 1:W + 1]
    return out                                                   # NCHW


# ------------------------ deterministic parameter init ----------------------
def _init_conv(key, cout, cin, k):
    kw, kb = jax.random.split(key)
    bound = 1.0 / jnp.sqrt(jnp.float32(cin * k * k))
    w = jax.random.uniform(kw, (cout, cin, k, k), jnp.float32, -bound, bound)
    b = jax.random.uniform(kb, (cout,), jnp.float32, -bound, bound)
    return w, b


def _init_bn(key, c, eps=1e-5):
    k1, k2, k3, k4 = jax.random.split(key, 4)
    gamma = 1.0 + 0.1 * jax.random.normal(k1, (c,), jnp.float32)
    beta = 0.1 * jax.random.normal(k2, (c,), jnp.float32)
    mean = 0.1 * jax.random.normal(k3, (c,), jnp.float32)
    var = 1.0 + 0.1 * jax.random.uniform(k4, (c,), jnp.float32)
    scale = gamma * jax.lax.rsqrt(var + eps)     # eval-mode BN folded to affine
    shift = beta - mean * scale
    return scale, shift


def make_fconv_params(key, input_channel1, input_channel2, output_channel):
    filters = [32, 16, 8]
    keys = iter(jax.random.split(key, 12))
    layers = []

    def conv_bn_relu(cin, cout):
        w, b = _init_conv(next(keys), cout, cin, 3)
        s, t = _init_bn(next(keys), cout)
        layers.append(dict(w=w, b=b, scale=s, shift=t, ksize=3, relu=True))

    # self.conv1 = create_conv_2(C1 + C2, 32)
    conv_bn_relu(input_channel1 + input_channel2, filters[0])
    conv_bn_relu(filters[0], filters[0])
    # self.conv2 = create_conv_2(32, 16)
    conv_bn_relu(filters[0], filters[1])
    conv_bn_relu(filters[1], filters[1])
    # self.deconv1 = create_addon(16, 8, output_channel)
    w, b = _init_conv(next(keys), filters[2], filters[1], 3)
    layers.append(dict(w=w, b=b, scale=jnp.ones((filters[2],), jnp.float32),
                       shift=jnp.zeros((filters[2],), jnp.float32),
                       ksize=3, relu=True))
    w, b = _init_conv(next(keys), output_channel, filters[2], 1)
    layers.append(dict(w=w, b=b, scale=jnp.ones((output_channel,), jnp.float32),
                       shift=jnp.zeros((output_channel,), jnp.float32),
                       ksize=1, relu=False))
    return dict(layers=layers)


# ----------------------- pure-JAX reference (sanity) -------------------------
def _ref_layer(x_nhwc, layer):
    w = jnp.transpose(layer["w"], (2, 3, 1, 0))               # OIHW -> HWIO
    out = jax.lax.conv_general_dilated(
        x_nhwc, w, window_strides=(1, 1), padding="SAME",
        dimension_numbers=("NHWC", "HWIO", "NHWC"),
        precision=jax.lax.Precision.HIGHEST)
    out = out + layer["b"]
    out = out * layer["scale"] + layer["shift"]
    if layer["relu"]:
        out = jnp.maximum(out, 0.0)
    return out


def fconv_reference(params, input1_nchw, input2_nchw):
    x = jnp.concatenate([input1_nchw, input2_nchw], axis=1)
    x = jnp.transpose(x, (0, 2, 3, 1))
    for layer in params["layers"]:
        x = _ref_layer(x, layer)
    return jnp.transpose(x, (0, 3, 1, 2))


# --------------------------------- main --------------------------------------
if __name__ == "__main__":
    key = jax.random.PRNGKey(0)
    kx1, kx2, kp = jax.random.split(key, 3)

    N, C1, C2, H, W = 2, 4, 4, 16, 16
    OUT_C = 2

    x1 = jax.random.normal(kx1, (N, C1, H, W), jnp.float32)
    x2 = jax.random.normal(kx2, (N, C2, H, W), jnp.float32)
    params = make_fconv_params(kp, C1, C2, OUT_C)

    fwd = jax.jit(functools.partial(fconv_forward, params))
    out = jax.block_until_ready(fwd(x1, x2))

    assert out.shape == (N, OUT_C, H, W), out.shape
    ref = fconv_reference(params, x1, x2)
    max_err = float(jnp.max(jnp.abs(out - ref)))
    # bf16 matmul operands / bf16 inter-layer activations with f32 accumulation
    # and f32 epilogue -> relaxed tolerance vs the HIGHEST-precision reference.
    assert max_err < 5e-2, f"mismatch vs reference: {max_err}"

    print("KERNEL_OK")
</pallas_src>

<mosaic_0001>
module attributes {stable_mosaic.version = 11 : i64} {
  func.func @_fconv_fused_kernel(%arg0: i32, %arg1: memref<1x8x324xbf16, #tpu.memory_space<vmem>>, %arg2: memref<1x324xf32, #tpu.memory_space<vmem>>, %arg3: memref<6x32x288xbf16, #tpu.memory_space<vmem>>, %arg4: memref<6x32x1xf32, #tpu.memory_space<vmem>>, %arg5: memref<1x2x324xf32, #tpu.memory_space<vmem>>, %arg6: memref<32x362xbf16, #tpu.memory_space<vmem>>, %arg7: memref<32x362xbf16, #tpu.memory_space<vmem>>, %arg8: memref<288x324xbf16, #tpu.memory_space<vmem>>) attributes {dimension_semantics = [#tpu.dimension_semantics<parallel>], iteration_bounds = array<i64: 2>, scalar_prefetch = 0 : i64, scratch_operands = 3 : i64, tpu.core_type = #tpu.core_type<tc>, window_params = [{transform_indices = @transform_0, window_bounds = array<i64: 1, 8, 324>}, {pipeline_mode = #tpu.pipeline_mode<synchronous>, transform_indices = @transform_1, window_bounds = array<i64: 1, 324>}, {pipeline_mode = #tpu.pipeline_mode<synchronous>, transform_indices = @transform_2, window_bounds = array<i64: 6, 32, 288>}, {pipeline_mode = #tpu.pipeline_mode<synchronous>, transform_indices = @transform_3, window_bounds = array<i64: 6, 32, 1>}, {transform_indices = @transform_4, window_bounds = array<i64: 1, 2, 324>}]} {
    %cst = arith.constant 0.000000e+00 : bf16
    %0 = vector.broadcast %cst : bf16 to vector<32x19xbf16>
    %c0 = arith.constant 0 : index
    %c0_0 = arith.constant 0 : index
    %1 = vector.load %arg6[%c0, %c0_0] : memref<32x362xbf16, #tpu.memory_space<vmem>>, vector<32x19xbf16>
    tpu.vector_store %arg6[%c0, %c0_0], %0 {strides = array<i32>} : memref<32x362xbf16, #tpu.memory_space<vmem>>, vector<32x19xbf16>,
    %c0_1 = arith.constant 0 : index
    %c343 = arith.constant 343 : index
    %2 = vector.load %arg6[%c0_1, %c343] : memref<32x362xbf16, #tpu.memory_space<vmem>>, vector<32x19xbf16>
    tpu.vector_store %arg6[%c0_1, %c343], %0 {strides = array<i32>} : memref<32x362xbf16, #tpu.memory_space<vmem>>, vector<32x19xbf16>,
    %c0_2 = arith.constant 0 : index
    %c0_3 = arith.constant 0 : index
    %3 = vector.load %arg7[%c0_2, %c0_3] : memref<32x362xbf16, #tpu.memory_space<vmem>>, vector<32x19xbf16>
    tpu.vector_store %arg7[%c0_2, %c0_3], %0 {strides = array<i32>} : memref<32x362xbf16, #tpu.memory_space<vmem>>, vector<32x19xbf16>,
    %c0_4 = arith.constant 0 : index
    %c343_5 = arith.constant 343 : index
    %4 = vector.load %arg7[%c0_4, %c343_5] : memref<32x362xbf16, #tpu.memory_space<vmem>>, vector<32x19xbf16>
    tpu.vector_store %arg7[%c0_4, %c343_5], %0 {strides = array<i32>} : memref<32x362xbf16, #tpu.memory_space<vmem>>, vector<32x19xbf16>,
    %c0_6 = arith.constant 0 : index
    %c0_7 = arith.constant 0 : index
    %c0_8 = arith.constant 0 : index
    %5 = vector.load %arg1[%c0_6, %c0_7, %c0_8] : memref<1x8x324xbf16, #tpu.memory_space<vmem>>, vector<1x8x324xbf16>
    %6 = vector.shape_cast %5 : vector<1x8x324xbf16> to vector<8x324xbf16>
    %c0_9 = arith.constant 0 : index
    %c19 = arith.constant 19 : index
    %7 = vector.load %arg6[%c0_9, %c19] : memref<32x362xbf16, #tpu.memory_space<vmem>>, vector<8x324xbf16>
    tpu.vector_store %arg6[%c0_9, %c19], %6 {strides = array<i32>} : memref<32x362xbf16, #tpu.memory_space<vmem>>, vector<8x324xbf16>,
    %c0_10 = arith.constant 0 : index
    %c0_11 = arith.constant 0 : index
    %8 = vector.load %arg2[%c0_10, %c0_11] : memref<1x324xf32, #tpu.memory_space<vmem>>, vector<1x324xf32>
    %c0_12 = arith.constant 0 : index
    %c0_13 = arith.constant 0 : index
    %9 = vector.load %arg6[%c0_12, %c0_13] : memref<32x362xbf16, #tpu.memory_space<vmem>>, vector<8x324xbf16>
    %c0_14 = arith.constant 0 : index
    %c0_15 = arith.constant 0 : index
    %10 = vector.load %arg8[%c0_14, %c0_15] : memref<288x324xbf16, #tpu.memory_space<vmem>>, vector<8x324xbf16>
    tpu.vector_store %arg8[%c0_14, %c0_15], %9 {strides = array<i32>} : memref<288x324xbf16, #tpu.memory_space<vmem>>, vector<8x324xbf16>,
    %c0_16 = arith.constant 0 : index
    %c1 = arith.constant 1 : index
    %11 = vector.load %arg6[%c0_16, %c1] : memref<32x362xbf16, #tpu.memory_space<vmem>>, vector<8x324xbf16>
    %c8 = arith.constant 8 : index
    %c0_17 = arith.constant 0 : index
    %12 = vector.load %arg8[%c8, %c0_17] : memref<288x324xbf16, #tpu.memory_space<vmem>>, vector<8x324xbf16>
    tpu.vector_store %arg8[%c8, %c0_17], %11 {strides = array<i32>} : memref<288x324xbf16, #tpu.memory_space<vmem>>, vector<8x324xbf16>,
    %c0_18 = arith.constant 0 : index
    %c2 = arith.constant 2 : index
    %13 = vector.load %arg6[%c0_18, %c2] : memref<32x362xbf16, #tpu.memory_space<vmem>>, vector<8x324xbf16>
    %c16 = arith.constant 16 : index
    %c0_19 = arith.constant 0 : index
    %14 = vector.load %arg8[%c16, %c0_19] : memref<288x324xbf16, #tpu.memory_space<vmem>>, vector<8x324xbf16>
    tpu.vector_store %arg8[%c16, %c0_19], %13 {strides = array<i32>} : memref<288x324xbf16, #tpu.memory_space<vmem>>, vector<8x324xbf16>,
    %c0_20 = arith.constant 0 : index
    %c18 = arith.constant 18 : index
    %15 = vector.load %arg6[%c0_20, %c18] : memref<32x362xbf16, #tpu.memory_space<vmem>>, vector<8x324xbf16>
    %c24 = arith.constant 24 : index
    %c0_21 = arith.constant 0 : index
    %16 = vector.load %arg8[%c24, %c0_21] : memref<288x324xbf16, #tpu.memory_space<vmem>>, vector<8x324xbf16>
    tpu.vector_store %arg8[%c24, %c0_21], %15 {strides = array<i32>} : memref<288x324xbf16, #tpu.memory_space<vmem>>, vector<8x324xbf16>,
    %c0_22 = arith.constant 0 : index
    %c19_23 = arith.constant 19 : index
    %17 = vector.load %arg6[%c0_22, %c19_23] : memref<32x362xbf16, #tpu.memory_space<vmem>>, vector<8x324xbf16>
    %c32 = arith.constant 32 : index
    %c0_24 = arith.constant 0 : index
    %18 = vector.load %arg8[%c32, %c0_24] : memref<288x324xbf16, #tpu.memory_space<vmem>>, vector<8x324xbf16>
    tpu.vector_store %arg8[%c32, %c0_24], %17 {strides = array<i32>} : memref<288x324xbf16, #tpu.memory_space<vmem>>, vector<8x324xbf16>,
    %c0_25 = arith.constant 0 : index
    %c20 = arith.constant 20 : index
    %19 = vector.load %arg6[%c0_25, %c20] : memref<32x362xbf16, #tpu.memory_space<vmem>>, vector<8x324xbf16>
    %c40 = arith.constant 40 : index
    %c0_26 = arith.constant 0 : index
    %20 = vector.load %arg8[%c40, %c0_26] : memref<288x324xbf16, #tpu.memory_space<vmem>>, vector<8x324xbf16>
    tpu.vector_store %arg8[%c40, %c0_26], %19 {strides = array<i32>} : memref<288x324xbf16, #tpu.memory_space<vmem>>, vector<8x324xbf16>,
    %c0_27 = arith.constant 0 : index
    %c36 = arith.constant 36 : index
    %21 = vector.load %arg6[%c0_27, %c36] : memref<32x362xbf16, #tpu.memory_space<vmem>>, vector<8x324xbf16>
    %c48 = arith.constant 48 : index
    %c0_28 = arith.constant 0 : index
    %22 = vector.load %arg8[%c48, %c0_28] : memref<288x324xbf16, #tpu.memory_space<vmem>>, vector<8x324xbf16>
    tpu.vector_store %arg8[%c48, %c0_28], %21 {strides = array<i32>} : memref<288x324xbf16, #tpu.memory_space<vmem>>, vector<8x324xbf16>,
    %c0_29 = arith.constant 0 : index
    %c37 = arith.constant 37 : index
    %23 = vector.load %arg6[%c0_29, %c37] : memref<32x362xbf16, #tpu.memory_space<vmem>>, vector<8x324xbf16>
    %c56 = arith.constant 56 : index
    %c0_30 = arith.constant 0 : index
    %24 = vector.load %arg8[%c56, %c0_30] : memref<288x324xbf16, #tpu.memory_space<vmem>>, vector<8x324xbf16>
    tpu.vector_store %arg8[%c56, %c0_30], %23 {strides = array<i32>} : memref<288x324xbf16, #tpu.memory_space<vmem>>, vector<8x324xbf16>,
    %c0_31 = arith.constant 0 : index
    %c38 = arith.constant 38 : index
    %25 = vector.load %arg6[%c0_31, %c38] : memref<32x362xbf16, #tpu.memory_space<vmem>>, vector<8x324xbf16>
    %c64 = arith.constant 64 : index
    %c0_32 = arith.constant 0 : index
    %26 = vector.load %arg8[%c64, %c0_32] : memref<288x324xbf16, #tpu.memory_space<vmem>>, vector<8x324xbf16>
    tpu.vector_store %arg8[%c64, %c0_32], %25 {strides = array<i32>} : memref<288x324xbf16, #tpu.memory_space<vmem>>, vector<8x324xbf16>,
    %c0_33 = arith.constant 0 : index
    %c0_34 = arith.constant 0 : index
    %c0_35 = arith.constant 0 : index
    %27 = vector.load %arg3[%c0_33, %c0_34, %c0_35] : memref<6x32x288xbf16, #tpu.memory_space<vmem>>, vector<1x32x72xbf16>
    %28 = vector.shape_cast %27 : vector<1x32x72xbf16> to vector<32x72xbf16>
    %c0_36 = arith.constant 0 : index
    %c0_37 = arith.constant 0 : index
    %29 = vector.load %arg8[%c0_36, %c0_37] : memref<288x324xbf16, #tpu.memory_space<vmem>>, vector<72x324xbf16>
    %cst_38 = arith.constant dense<0.000000e+00> : vector<32x324xf32>
    %30 = tpu.matmul %28, %29, %cst_38 {dimension_numbers = #tpu.dot_dimension_numbers<[1], [0], [0], [1], [0, 0, 1, 1], [], []>} : vector<32x72xbf16>, vector<72x324xbf16>, vector<32x324xf32> -> vector<32x324xf32>
    %c0_39 = arith.constant 0 : index
    %c0_40 = arith.constant 0 : index
    %c0_41 = arith.constant 0 : index
    %31 = vector.load %arg4[%c0_39, %c0_40, %c0_41] : memref<6x32x1xf32, #tpu.memory_space<vmem>>, vector<1x32x1xf32>
    %32 = vector.shape_cast %31 : vector<1x32x1xf32> to vector<32x1xf32>
    %33 = vector.broadcast %32 : vector<32x1xf32> to vector<32x324xf32>
    %34 = arith.addf %30, %33 : vector<32x324xf32>
    %cst_42 = arith.constant 0.000000e+00 : f32
    %35 = vector.broadcast %cst_42 : f32 to vector<32x324xf32>
    %36 = arith.maximumf %34, %35 : vector<32x324xf32>
    %37 = vector.broadcast %8 : vector<1x324xf32> to vector<32x324xf32>
    %38 = arith.mulf %36, %37 : vector<32x324xf32>
    %39 = arith.truncf %38 : vector<32x324xf32> to vector<32x324xbf16>
    %c0_43 = arith.constant 0 : index
    %c19_44 = arith.constant 19 : index
    %40 = vector.load %arg7[%c0_43, %c19_44] : memref<32x362xbf16, #tpu.memory_space<vmem>>, vector<32x324xbf16>
    tpu.vector_store %arg7[%c0_43, %c19_44], %39 {strides = array<i32>} : memref<32x362xbf16, #tpu.memory_space<vmem>>, vector<32x324xbf16>,
    %c0_45 = arith.constant 0 : index
    %c0_46 = arith.constant 0 : index
    %41 = vector.load %arg7[%c0_45, %c0_46] : memref<32x362xbf16, #tpu.memory_space<vmem>>, vector<32x324xbf16>
    %c0_47 = arith.constant 0 : index
    %c0_48 = arith.constant 0 : index
    %42 = vector.load %arg8[%c0_47, %c0_48] : memref<288x324xbf16, #tpu.memory_space<vmem>>, vector<32x324xbf16>
    tpu.vector_store %arg8[%c0_47, %c0_48], %41 {strides = array<i32>} : memref<288x324xbf16, #tpu.memory_space<vmem>>, vector<32x324xbf16>,
    %c0_49 = arith.constant 0 : index
    %c1_50 = arith.constant 1 : index
    %43 = vector.load %arg7[%c0_49, %c1_50] : memref<32x362xbf16, #tpu.memory_space<vmem>>, vector<32x324xbf16>
    %c32_51 = arith.constant 32 : index
    %c0_52 = arith.constant 0 : index
    %44 = vector.load %arg8[%c32_51, %c0_52] : memref<288x324xbf16, #tpu.memory_space<vmem>>, vector<32x324xbf16>
    tpu.vector_store %arg8[%c32_51, %c0_52], %43 {strides = array<i32>} : memref<288x324xbf16, #tpu.memory_space<vmem>>, vector<32x324xbf16>,
    %c0_53 = arith.constant 0 : index
    %c2_54 = arith.constant 2 : index
    %45 = vector.load %arg7[%c0_53, %c2_54] : memref<32x362xbf16, #tpu.memory_space<vmem>>, vector<32x324xbf16>
    %c64_55 = arith.constant 64 : index
    %c0_56 = arith.constant 0 : index
    %46 = vector.load %arg8[%c64_55, %c0_56] : memref<288x324xbf16, #tpu.memory_space<vmem>>, vector<32x324xbf16>
    tpu.vector_store %arg8[%c64_55, %c0_56], %45 {strides = array<i32>} : memref<288x324xbf16, #tpu.memory_space<vmem>>, vector<32x324xbf16>,
    %c0_57 = arith.constant 0 : index
    %c18_58 = arith.constant 18 : index
    %47 = vector.load %arg7[%c0_57, %c18_58] : memref<32x362xbf16, #tpu.memory_space<vmem>>, vector<32x324xbf16>
    %c96 = arith.constant 96 : index
    %c0_59 = arith.constant 0 : index
    %48 = vector.load %arg8[%c96, %c0_59] : memref<288x324xbf16, #tpu.memory_space<vmem>>, vector<32x324xbf16>
    tpu.vector_store %arg8[%c96, %c0_59], %47 {strides = array<i32>} : memref<288x324xbf16, #tpu.memory_space<vmem>>, vector<32x324xbf16>,
    %c0_60 = arith.constant 0 : index
    %c19_61 = arith.constant 19 : index
    %49 = vector.load %arg7[%c0_60, %c19_61] : memref<32x362xbf16, #tpu.memory_space<vmem>>, vector<32x324xbf16>
    %c128 = arith.constant 128 : index
    %c0_62 = arith.constant 0 : index
    %50 = vector.load %arg8[%c128, %c0_62] : memref<288x324xbf16, #tpu.memory_space<vmem>>, vector<32x324xbf16>
    tpu.vector_store %arg8[%c128, %c0_62], %49 {strides = array<i32>} : memref<288x324xbf16, #tpu.memory_space<vmem>>, vector<32x324xbf16>,
    %c0_63 = arith.constant 0 : index
    %c20_64 = arith.constant 20 : index
    %51 = vector.load %arg7[%c0_63, %c20_64] : memref<32x362xbf16, #tpu.memory_space<vmem>>, vector<32x324xbf16>
    %c160 = arith.constant 160 : index
    %c0_65 = arith.constant 0 : index
    %52 = vector.load %arg8[%c160, %c0_65] : memref<288x324xbf16, #tpu.memory_space<vmem>>, vector<32x324xbf16>
    tpu.vector_store %arg8[%c160, %c0_65], %51 {strides = array<i32>} : memref<288x324xbf16, #tpu.memory_space<vmem>>, vector<32x324xbf16>,
    %c0_66 = arith.constant 0 : index
    %c36_67 = arith.constant 36 : index
    %53 = vector.load %arg7[%c0_66, %c36_67] : memref<32x362xbf16, #tpu.memory_space<vmem>>, vector<32x324xbf16>
    %c192 = arith.constant 192 : index
    %c0_68 = arith.constant 0 : index
    %54 = vector.load %arg8[%c192, %c0_68] : memref<288x324xbf16, #tpu.memory_space<vmem>>, vector<32x324xbf16>
    tpu.vector_store %arg8[%c192, %c0_68], %53 {strides = array<i32>} : memref<288x324xbf16, #tpu.memory_space<vmem>>, vector<32x324xbf16>,
    %c0_69 = arith.constant 0 : index
    %c37_70 = arith.constant 37 : index
    %55 = vector.load %arg7[%c0_69, %c37_70] : memref<32x362xbf16, #tpu.memory_space<vmem>>, vector<32x324xbf16>
    %c224 = arith.constant 224 : index
    %c0_71 = arith.constant 0 : index
    %56 = vector.load %arg8[%c224, %c0_71] : memref<288x324xbf16, #tpu.memory_space<vmem>>, vector<32x324xbf16>
    tpu.vector_store %arg8[%c224, %c0_71], %55 {strides = array<i32>} : memref<288x324xbf16, #tpu.memory_space<vmem>>, vector<32x324xbf16>,
    %c0_72 = arith.constant 0 : index
    %c38_73 = arith.constant 38 : index
    %57 = vector.load %arg7[%c0_72, %c38_73] : memref<32x362xbf16, #tpu.memory_space<vmem>>, vector<32x324xbf16>
    %c256 = arith.constant 256 : index
    %c0_74 = arith.constant 0 : index
    %58 = vector.load %arg8[%c256, %c0_74] : memref<288x324xbf16, #tpu.memory_space<vmem>>, vector<32x324xbf16>
    tpu.vector_store %arg8[%c256, %c0_74], %57 {strides = array<i32>} : memref<288x324xbf16, #tpu.memory_space<vmem>>, vector<32x324xbf16>,
    %c1_75 = arith.constant 1 : index
    %c0_76 = arith.constant 0 : index
    %c0_77 = arith.constant 0 : index
    %59 = vector.load %arg3[%c1_75, %c0_76, %c0_77] : memref<6x32x288xbf16, #tpu.memory_space<vmem>>, vector<1x32x288xbf16>
    %60 = vector.shape_cast %59 : vector<1x32x288xbf16> to vector<32x288xbf16>
    %c0_78 = arith.constant 0 : index
    %c0_79 = arith.constant 0 : index
    %61 = vector.load %arg8[%c0_78, %c0_79] : memref<288x324xbf16, #tpu.memory_space<vmem>>, vector<288x324xbf16>
    %cst_80 = arith.constant dense<0.000000e+00> : vector<32x324xf32>
    %62 = tpu.matmul %60, %61, %cst_80 {dimension_numbers = #tpu.dot_dimension_numbers<[1], [0], [0], [1], [0, 0, 1, 1], [], []>} : vector<32x288xbf16>, vector<288x324xbf16>, vector<32x324xf32> -> vector<32x324xf32>
    %c1_81 = arith.constant 1 : index
    %c0_82 = arith.constant 0 : index
    %c0_83 = arith.constant 0 : index
    %63 = vector.load %arg4[%c1_81, %c0_82, %c0_83] : memref<6x32x1xf32, #tpu.memory_space<vmem>>, vector<1x32x1xf32>
    %64 = vector.shape_cast %63 : vector<1x32x1xf32> to vector<32x1xf32>
    %65 = vector.broadcast %64 : vector<32x1xf32> to vector<32x324xf32>
    %66 = arith.addf %62, %65 : vector<32x324xf32>
    %cst_84 = arith.constant 0.000000e+00 : f32
    %67 = vector.broadcast %cst_84 : f32 to vector<32x324xf32>
    %68 = arith.maximumf %66, %67 : vector<32x324xf32>
    %69 = vector.broadcast %8 : vector<1x324xf32> to vector<32x324xf32>
    %70 = arith.mulf %68, %69 : vector<32x324xf32>
    %71 = arith.truncf %70 : vector<32x324xf32> to vector<32x324xbf16>
    %c0_85 = arith.constant 0 : index
    %c19_86 = arith.constant 19 : index
    %72 = vector.load %arg6[%c0_85, %c19_86] : memref<32x362xbf16, #tpu.memory_space<vmem>>, vector<32x324xbf16>
    tpu.vector_store %arg6[%c0_85, %c19_86], %71 {strides = array<i32>} : memref<32x362xbf16, #tpu.memory_space<vmem>>, vector<32x324xbf16>,
    %c0_87 = arith.constant 0 : index
    %c0_88 = arith.constant 0 : index
    %73 = vector.load %arg6[%c0_87, %c0_88] : memref<32x362xbf16, #tpu.memory_space<vmem>>, vector<32x324xbf16>
    %c0_89 = arith.constant 0 : index
    %c0_90 = arith.constant 0 : index
    %74 = vector.load %arg8[%c0_89, %c0_90] : memref<288x324xbf16, #tpu.memory_space<vmem>>, vector<32x324xbf16>
    tpu.vector_store %arg8[%c0_89, %c0_90], %73 {strides = array<i32>} : memref<288x324xbf16, #tpu.memory_space<vmem>>, vector<32x324xbf16>,
    %c0_91 = arith.constant 0 : index
    %c1_92 = arith.constant 1 : index
    %75 = vector.load %arg6[%c0_91, %c1_92] : memref<32x362xbf16, #tpu.memory_space<vmem>>, vector<32x324xbf16>
    %c32_93 = arith.constant 32 : index
    %c0_94 = arith.constant 0 : index
    %76 = vector.load %arg8[%c32_93, %c0_94] : memref<288x324xbf16, #tpu.memory_space<vmem>>, vector<32x324xbf16>
    tpu.vector_store %arg8[%c32_93, %c0_94], %75 {strides = array<i32>} : memref<288x324xbf16, #tpu.memory_space<vmem>>, vector<32x324xbf16>,
    %c0_95 = arith.constant 0 : index
    %c2_96 = arith.constant 2 : index
    %77 = vector.load %arg6[%c0_95, %c2_96] : memref<32x362xbf16, #tpu.memory_space<vmem>>, vector<32x324xbf16>
    %c64_97 = arith.constant 64 : index
    %c0_98 = arith.constant 0 : index
    %78 = vector.load %arg8[%c64_97, %c0_98] : memref<288x324xbf16, #tpu.memory_space<vmem>>, vector<32x324xbf16>
    tpu.vector_store %arg8[%c64_97, %c0_98], %77 {strides = array<i32>} : memref<288x324xbf16, #tpu.memory_space<vmem>>, vector<32x324xbf16>,
    %c0_99 = arith.constant 0 : index
    %c18_100 = arith.constant 18 : index
    %79 = vector.load %arg6[%c0_99, %c18_100] : memref<32x362xbf16, #tpu.memory_space<vmem>>, vector<32x324xbf16>
    %c96_101 = arith.constant 96 : index
    %c0_102 = arith.constant 0 : index
    %80 = vector.load %arg8[%c96_101, %c0_102] : memref<288x324xbf16, #tpu.memory_space<vmem>>, vector<32x324xbf16>
    tpu.vector_store %arg8[%c96_101, %c0_102], %79 {strides = array<i32>} : memref<288x324xbf16, #tpu.memory_space<vmem>>, vector<32x324xbf16>,
    %c0_103 = arith.constant 0 : index
    %c19_104 = arith.constant 19 : index
    %81 = vector.load %arg6[%c0_103, %c19_104] : memref<32x362xbf16, #tpu.memory_space<vmem>>, vector<32x324xbf16>
    %c128_105 = arith.constant 128 : index
    %c0_106 = arith.constant 0 : index
    %82 = vector.load %arg8[%c128_105, %c0_106] : memref<288x324xbf16, #tpu.memory_space<vmem>>, vector<32x324xbf16>
    tpu.vector_store %arg8[%c128_105, %c0_106], %81 {strides = array<i32>} : memref<288x324xbf16, #tpu.memory_space<vmem>>, vector<32x324xbf16>,
    %c0_107 = arith.constant 0 : index
    %c20_108 = arith.constant 20 : index
    %83 = vector.load %arg6[%c0_107, %c20_108] : memref<32x362xbf16, #tpu.memory_space<vmem>>, vector<32x324xbf16>
    %c160_109 = arith.constant 160 : index
    %c0_110 = arith.constant 0 : index
    %84 = vector.load %arg8[%c160_109, %c0_110] : memref<288x324xbf16, #tpu.memory_space<vmem>>, vector<32x324xbf16>
    tpu.vector_store %arg8[%c160_109, %c0_110], %83 {strides = array<i32>} : memref<288x324xbf16, #tpu.memory_space<vmem>>, vector<32x324xbf16>,
    %c0_111 = arith.constant 0 : index
    %c36_112 = arith.constant 36 : index
    %85 = vector.load %arg6[%c0_111, %c36_112] : memref<32x362xbf16, #tpu.memory_space<vmem>>, vector<32x324xbf16>
    %c192_113 = arith.constant 192 : index
    %c0_114 = arith.constant 0 : index
    %86 = vector.load %arg8[%c192_113, %c0_114] : memref<288x324xbf16, #tpu.memory_space<vmem>>, vector<32x324xbf16>
    tpu.vector_store %arg8[%c192_113, %c0_114], %85 {strides = array<i32>} : memref<288x324xbf16, #tpu.memory_space<vmem>>, vector<32x324xbf16>,
    %c0_115 = arith.constant 0 : index
    %c37_116 = arith.constant 37 : index
    %87 = vector.load %arg6[%c0_115, %c37_116] : memref<32x362xbf16, #tpu.memory_space<vmem>>, vector<32x324xbf16>
    %c224_117 = arith.constant 224 : index
    %c0_118 = arith.constant 0 : index
    %88 = vector.load %arg8[%c224_117, %c0_118] : memref<288x324xbf16, #tpu.memory_space<vmem>>, vector<32x324xbf16>
    tpu.vector_store %arg8[%c224_117, %c0_118], %87 {strides = array<i32>} : memref<288x324xbf16, #tpu.memory_space<vmem>>, vector<32x324xbf16>,
    %c0_119 = arith.constant 0 : index
    %c38_120 = arith.constant 38 : index
    %89 = vector.load %arg6[%c0_119, %c38_120] : memref<32x362xbf16, #tpu.memory_space<vmem>>, vector<32x324xbf16>
    %c256_121 = arith.constant 256 : index
    %c0_122 = arith.constant 0 : index
    %90 = vector.load %arg8[%c256_121, %c0_122] : memref<288x324xbf16, #tpu.memory_space<vmem>>, vector<32x324xbf16>
    tpu.vector_store %arg8[%c256_121, %c0_122], %89 {strides = array<i32>} : memref<288x324xbf16, #tpu.memory_space<vmem>>, vector<32x324xbf16>,
    %c2_123 = arith.constant 2 : index
    %c0_124 = arith.constant 0 : index
    %c0_125 = arith.constant 0 : index
    %91 = vector.load %arg3[%c2_123, %c0_124, %c0_125] : memref<6x32x288xbf16, #tpu.memory_space<vmem>>, vector<1x16x288xbf16>
    %92 = vector.shape_cast %91 : vector<1x16x288xbf16> to vector<16x288xbf16>
    %c0_126 = arith.constant 0 : index
    %c0_127 = arith.constant 0 : index
    %93 = vector.load %arg8[%c0_126, %c0_127] : memref<288x324xbf16, #tpu.memory_space<vmem>>, vector<288x324xbf16>
    %cst_128 = arith.constant dense<0.000000e+00> : vector<16x324xf32>
    %94 = tpu.matmul %92, %93, %cst_128 {dimension_numbers = #tpu.dot_dimension_numbers<[1], [0], [0], [1], [0, 0, 1, 1], [], []>} : vector<16x288xbf16>, vector<288x324xbf16>, vector<16x324xf32> -> vector<16x324xf32>
    %c2_129 = arith.constant 2 : index
    %c0_130 = arith.constant 0 : index
    %c0_131 = arith.constant 0 : index
    %95 = vector.load %arg4[%c2_129, %c0_130, %c0_131] : memref<6x32x1xf32, #tpu.memory_space<vmem>>, vector<1x16x1xf32>
    %96 = vector.shape_cast %95 : vector<1x16x1xf32> to vector<16x1xf32>
    %97 = vector.broadcast %96 : vector<16x1xf32> to vector<16x324xf32>
    %98 = arith.addf %94, %97 : vector<16x324xf32>
    %cst_132 = arith.constant 0.000000e+00 : f32
    %99 = vector.broadcast %cst_132 : f32 to vector<16x324xf32>
    %100 = arith.maximumf %98, %99 : vector<16x324xf32>
    %101 = vector.broadcast %8 : vector<1x324xf32> to vector<16x324xf32>
    %102 = arith.mulf %100, %101 : vector<16x324xf32>
    %103 = arith.truncf %102 : vector<16x324xf32> to vector<16x324xbf16>
    %c0_133 = arith.constant 0 : index
    %c19_134 = arith.constant 19 : index
    %104 = vector.load %arg7[%c0_133, %c19_134] : memref<32x362xbf16, #tpu.memory_space<vmem>>, vector<16x324xbf16>
    tpu.vector_store %arg7[%c0_133, %c19_134], %103 {strides = array<i32>} : memref<32x362xbf16, #tpu.memory_space<vmem>>, vector<16x324xbf16>,
    %c0_135 = arith.constant 0 : index
    %c0_136 = arith.constant 0 : index
    %105 = vector.load %arg7[%c0_135, %c0_136] : memref<32x362xbf16, #tpu.memory_space<vmem>>, vector<16x324xbf16>
    %c0_137 = arith.constant 0 : index
    %c0_138 = arith.constant 0 : index
    %106 = vector.load %arg8[%c0_137, %c0_138] : memref<288x324xbf16, #tpu.memory_space<vmem>>, vector<16x324xbf16>
    tpu.vector_store %arg8[%c0_137, %c0_138], %105 {strides = array<i32>} : memref<288x324xbf16, #tpu.memory_space<vmem>>, vector<16x324xbf16>,
    %c0_139 = arith.constant 0 : index
    %c1_140 = arith.constant 1 : index
    %107 = vector.load %arg7[%c0_139, %c1_140] : memref<32x362xbf16, #tpu.memory_space<vmem>>, vector<16x324xbf16>
    %c16_141 = arith.constant 16 : index
    %c0_142 = arith.constant 0 : index
    %108 = vector.load %arg8[%c16_141, %c0_142] : memref<288x324xbf16, #tpu.memory_space<vmem>>, vector<16x324xbf16>
    tpu.vector_store %arg8[%c16_141, %c0_142], %107 {strides = array<i32>} : memref<288x324xbf16, #tpu.memory_space<vmem>>, vector<16x324xbf16>,
    %c0_143 = arith.constant 0 : index
    %c2_144 = arith.constant 2 : index
    %109 = vector.load %arg7[%c0_143, %c2_144] : memref<32x362xbf16, #tpu.memory_space<vmem>>, vector<16x324xbf16>
    %c32_145 = arith.constant 32 : index
    %c0_146 = arith.constant 0 : index
    %110 = vector.load %arg8[%c32_145, %c0_146] : memref<288x324xbf16, #tpu.memory_space<vmem>>, vector<16x324xbf16>
    tpu.vector_store %arg8[%c32_145, %c0_146], %109 {strides = array<i32>} : memref<288x324xbf16, #tpu.memory_space<vmem>>, vector<16x324xbf16>,
    %c0_147 = arith.constant 0 : index
    %c18_148 = arith.constant 18 : index
    %111 = vector.load %arg7[%c0_147, %c18_148] : memref<32x362xbf16, #tpu.memory_space<vmem>>, vector<16x324xbf16>
    %c48_149 = arith.constant 48 : index
    %c0_150 = arith.constant 0 : index
    %112 = vector.load %arg8[%c48_149, %c0_150] : memref<288x324xbf16, #tpu.memory_space<vmem>>, vector<16x324xbf16>
    tpu.vector_store %arg8[%c48_149, %c0_150], %111 {strides = array<i32>} : memref<288x324xbf16, #tpu.memory_space<vmem>>, vector<16x324xbf16>,
    %c0_151 = arith.constant 0 : index
    %c19_152 = arith.constant 19 : index
    %113 = vector.load %arg7[%c0_151, %c19_152] : memref<32x362xbf16, #tpu.memory_space<vmem>>, vector<16x324xbf16>
    %c64_153 = arith.constant 64 : index
    %c0_154 = arith.constant 0 : index
    %114 = vector.load %arg8[%c64_153, %c0_154] : memref<288x324xbf16, #tpu.memory_space<vmem>>, vector<16x324xbf16>
    tpu.vector_store %arg8[%c64_153, %c0_154], %113 {strides = array<i32>} : memref<288x324xbf16, #tpu.memory_space<vmem>>, vector<16x324xbf16>,
    %c0_155 = arith.constant 0 : index
    %c20_156 = arith.constant 20 : index
    %115 = vector.load %arg7[%c0_155, %c20_156] : memref<32x362xbf16, #tpu.memory_space<vmem>>, vector<16x324xbf16>
    %c80 = arith.constant 80 : index
    %c0_157 = arith.constant 0 : index
    %116 = vector.load %arg8[%c80, %c0_157] : memref<288x324xbf16, #tpu.memory_space<vmem>>, vector<16x324xbf16>
    tpu.vector_store %arg8[%c80, %c0_157], %115 {strides = array<i32>} : memref<288x324xbf16, #tpu.memory_space<vmem>>, vector<16x324xbf16>,
    %c0_158 = arith.constant 0 : index
    %c36_159 = arith.constant 36 : index
    %117 = vector.load %arg7[%c0_158, %c36_159] : memref<32x362xbf16, #tpu.memory_space<vmem>>, vector<16x324xbf16>
    %c96_160 = arith.constant 96 : index
    %c0_161 = arith.constant 0 : index
    %118 = vector.load %arg8[%c96_160, %c0_161] : memref<288x324xbf16, #tpu.memory_space<vmem>>, vector<16x324xbf16>
    tpu.vector_store %arg8[%c96_160, %c0_161], %117 {strides = array<i32>} : memref<288x324xbf16, #tpu.memory_space<vmem>>, vector<16x324xbf16>,
    %c0_162 = arith.constant 0 : index
    %c37_163 = arith.constant 37 : index
    %119 = vector.load %arg7[%c0_162, %c37_163] : memref<32x362xbf16, #tpu.memory_space<vmem>>, vector<16x324xbf16>
    %c112 = arith.constant 112 : index
    %c0_164 = arith.constant 0 : index
    %120 = vector.load %arg8[%c112, %c0_164] : memref<288x324xbf16, #tpu.memory_space<vmem>>, vector<16x324xbf16>
    tpu.vector_store %arg8[%c112, %c0_164], %119 {strides = array<i32>} : memref<288x324xbf16, #tpu.memory_space<vmem>>, vector<16x324xbf16>,
    %c0_165 = arith.constant 0 : index
    %c38_166 = arith.constant 38 : index
    %121 = vector.load %arg7[%c0_165, %c38_166] : memref<32x362xbf16, #tpu.memory_space<vmem>>, vector<16x324xbf16>
    %c128_167 = arith.constant 128 : index
    %c0_168 = arith.constant 0 : index
    %122 = vector.load %arg8[%c128_167, %c0_168] : memref<288x324xbf16, #tpu.memory_space<vmem>>, vector<16x324xbf16>
    tpu.vector_store %arg8[%c128_167, %c0_168], %121 {strides = array<i32>} : memref<288x324xbf16, #tpu.memory_space<vmem>>, vector<16x324xbf16>,
    %c3 = arith.constant 3 : index
    %c0_169 = arith.constant 0 : index
    %c0_170 = arith.constant 0 : index
    %123 = vector.load %arg3[%c3, %c0_169, %c0_170] : memref<6x32x288xbf16, #tpu.memory_space<vmem>>, vector<1x16x144xbf16>
    %124 = vector.shape_cast %123 : vector<1x16x144xbf16> to vector<16x144xbf16>
    %c0_171 = arith.constant 0 : index
    %c0_172 = arith.constant 0 : index
    %125 = vector.load %arg8[%c0_171, %c0_172] : memref<288x324xbf16, #tpu.memory_space<vmem>>, vector<144x324xbf16>
    %cst_173 = arith.constant dense<0.000000e+00> : vector<16x324xf32>
    %126 = tpu.matmul %124, %125, %cst_173 {dimension_numbers = #tpu.dot_dimension_numbers<[1], [0], [0], [1], [0, 0, 1, 1], [], []>} : vector<16x144xbf16>, vector<144x324xbf16>, vector<16x324xf32> -> vector<16x324xf32>
    %c3_174 = arith.constant 3 : index
    %c0_175 = arith.constant 0 : index
    %c0_176 = arith.constant 0 : index
    %127 = vector.load %arg4[%c3_174, %c0_175, %c0_176] : memref<6x32x1xf32, #tpu.memory_space<vmem>>, vector<1x16x1xf32>
    %128 = vector.shape_cast %127 : vector<1x16x1xf32> to vector<16x1xf32>
    %129 = vector.broadcast %128 : vector<16x1xf32> to vector<16x324xf32>
    %130 = arith.addf %126, %129 : vector<16x324xf32>
    %cst_177 = arith.constant 0.000000e+00 : f32
    %131 = vector.broadcast %cst_177 : f32 to vector<16x324xf32>
    %132 = arith.maximumf %130, %131 : vector<16x324xf32>
    %133 = vector.broadcast %8 : vector<1x324xf32> to vector<16x324xf32>
    %134 = arith.mulf %132, %133 : vector<16x324xf32>
    %135 = arith.truncf %134 : vector<16x324xf32> to vector<16x324xbf16>
    %c0_178 = arith.constant 0 : index
    %c19_179 = arith.constant 19 : index
    %136 = vector.load %arg6[%c0_178, %c19_179] : memref<32x362xbf16, #tpu.memory_space<vmem>>, vector<16x324xbf16>
    tpu.vector_store %arg6[%c0_178, %c19_179], %135 {strides = array<i32>} : memref<32x362xbf16, #tpu.memory_space<vmem>>, vector<16x324xbf16>,
    %c0_180 = arith.constant 0 : index
    %c0_181 = arith.constant 0 : index
    %137 = vector.load %arg6[%c0_180, %c0_181] : memref<32x362xbf16, #tpu.memory_space<vmem>>, vector<16x324xbf16>
    %c0_182 = arith.constant 0 : index
    %c0_183 = arith.constant 0 : index
    %138 = vector.load %arg8[%c0_182, %c0_183] : memref<288x324xbf16, #tpu.memory_space<vmem>>, vector<16x324xbf16>
    tpu.vector_store %arg8[%c0_182, %c0_183], %137 {strides = array<i32>} : memref<288x324xbf16, #tpu.memory_space<vmem>>, vector<16x324xbf16>,
    %c0_184 = arith.constant 0 : index
    %c1_185 = arith.constant 1 : index
    %139 = vector.load %arg6[%c0_184, %c1_185] : memref<32x362xbf16, #tpu.memory_space<vmem>>, vector<16x324xbf16>
    %c16_186 = arith.constant 16 : index
    %c0_187 = arith.constant 0 : index
    %140 = vector.load %arg8[%c16_186, %c0_187] : memref<288x324xbf16, #tpu.memory_space<vmem>>, vector<16x324xbf16>
    tpu.vector_store %arg8[%c16_186, %c0_187], %139 {strides = array<i32>} : memref<288x324xbf16, #tpu.memory_space<vmem>>, vector<16x324xbf16>,
    %c0_188 = arith.constant 0 : index
    %c2_189 = arith.constant 2 : index
    %141 = vector.load %arg6[%c0_188, %c2_189] : memref<32x362xbf16, #tpu.memory_space<vmem>>, vector<16x324xbf16>
    %c32_190 = arith.constant 32 : index
    %c0_191 = arith.constant 0 : index
    %142 = vector.load %arg8[%c32_190, %c0_191] : memref<288x324xbf16, #tpu.memory_space<vmem>>, vector<16x324xbf16>
    tpu.vector_store %arg8[%c32_190, %c0_191], %141 {strides = array<i32>} : memref<288x324xbf16, #tpu.memory_space<vmem>>, vector<16x324xbf16>,
    %c0_192 = arith.constant 0 : index
    %c18_193 = arith.constant 18 : index
    %143 = vector.load %arg6[%c0_192, %c18_193] : memref<32x362xbf16, #tpu.memory_space<vmem>>, vector<16x324xbf16>
    %c48_194 = arith.constant 48 : index
    %c0_195 = arith.constant 0 : index
    %144 = vector.load %arg8[%c48_194, %c0_195] : memref<288x324xbf16, #tpu.memory_space<vmem>>, vector<16x324xbf16>
    tpu.vector_store %arg8[%c48_194, %c0_195], %143 {strides = array<i32>} : memref<288x324xbf16, #tpu.memory_space<vmem>>, vector<16x324xbf16>,
    %c0_196 = arith.constant 0 : index
    %c19_197 = arith.constant 19 : index
    %145 = vector.load %arg6[%c0_196, %c19_197] : memref<32x362xbf16, #tpu.memory_space<vmem>>, vector<16x324xbf16>
    %c64_198 = arith.constant 64 : index
    %c0_199 = arith.constant 0 : index
    %146 = vector.load %arg8[%c64_198, %c0_199] : memref<288x324xbf16, #tpu.memory_space<vmem>>, vector<16x324xbf16>
    tpu.vector_store %arg8[%c64_198, %c0_199], %145 {strides = array<i32>} : memref<288x324xbf16, #tpu.memory_space<vmem>>, vector<16x324xbf16>,
    %c0_200 = arith.constant 0 : index
    %c20_201 = arith.constant 20 : index
    %147 = vector.load %arg6[%c0_200, %c20_201] : memref<32x362xbf16, #tpu.memory_space<vmem>>, vector<16x324xbf16>
    %c80_202 = arith.constant 80 : index
    %c0_203 = arith.constant 0 : index
    %148 = vector.load %arg8[%c80_202, %c0_203] : memref<288x324xbf16, #tpu.memory_space<vmem>>, vector<16x324xbf16>
    tpu.vector_store %arg8[%c80_202, %c0_203], %147 {strides = array<i32>} : memref<288x324xbf16, #tpu.memory_space<vmem>>, vector<16x324xbf16>,
    %c0_204 = arith.constant 0 : index
    %c36_205 = arith.constant 36 : index
    %149 = vector.load %arg6[%c0_204, %c36_205] : memref<32x362xbf16, #tpu.memory_space<vmem>>, vector<16x324xbf16>
    %c96_206 = arith.constant 96 : index
    %c0_207 = arith.constant 0 : index
    %150 = vector.load %arg8[%c96_206, %c0_207] : memref<288x324xbf16, #tpu.memory_space<vmem>>, vector<16x324xbf16>
    tpu.vector_store %arg8[%c96_206, %c0_207], %149 {strides = array<i32>} : memref<288x324xbf16, #tpu.memory_space<vmem>>, vector<16x324xbf16>,
    %c0_208 = arith.constant 0 : index
    %c37_209 = arith.constant 37 : index
    %151 = vector.load %arg6[%c0_208, %c37_209] : memref<32x362xbf16, #tpu.memory_space<vmem>>, vector<16x324xbf16>
    %c112_210 = arith.constant 112 : index
    %c0_211 = arith.constant 0 : index
    %152 = vector.load %arg8[%c112_210, %c0_211] : memref<288x324xbf16, #tpu.memory_space<vmem>>, vector<16x324xbf16>
    tpu.vector_store %arg8[%c112_210, %c0_211], %151 {strides = array<i32>} : memref<288x324xbf16, #tpu.memory_space<vmem>>, vector<16x324xbf16>,
    %c0_212 = arith.constant 0 : index
    %c38_213 = arith.constant 38 : index
    %153 = vector.load %arg6[%c0_212, %c38_213] : memref<32x362xbf16, #tpu.memory_space<vmem>>, vector<16x324xbf16>
    %c128_214 = arith.constant 128 : index
    %c0_215 = arith.constant 0 : index
    %154 = vector.load %arg8[%c128_214, %c0_215] : memref<288x324xbf16, #tpu.memory_space<vmem>>, vector<16x324xbf16>
    tpu.vector_store %arg8[%c128_214, %c0_215], %153 {strides = array<i32>} : memref<288x324xbf16, #tpu.memory_space<vmem>>, vector<16x324xbf16>,
    %c4 = arith.constant 4 : index
    %c0_216 = arith.constant 0 : index
    %c0_217 = arith.constant 0 : index
    %155 = vector.load %arg3[%c4, %c0_216, %c0_217] : memref<6x32x288xbf16, #tpu.memory_space<vmem>>, vector<1x8x144xbf16>
    %156 = vector.shape_cast %155 : vector<1x8x144xbf16> to vector<8x144xbf16>
    %c0_218 = arith.constant 0 : index
    %c0_219 = arith.constant 0 : index
    %157 = vector.load %arg8[%c0_218, %c0_219] : memref<288x324xbf16, #tpu.memory_space<vmem>>, vector<144x324xbf16>
    %cst_220 = arith.constant dense<0.000000e+00> : vector<8x324xf32>
    %158 = tpu.matmul %156, %157, %cst_220 {dimension_numbers = #tpu.dot_dimension_numbers<[1], [0], [0], [1], [0, 0, 1, 1], [], []>} : vector<8x144xbf16>, vector<144x324xbf16>, vector<8x324xf32> -> vector<8x324xf32>
    %c4_221 = arith.constant 4 : index
    %c0_222 = arith.constant 0 : index
    %c0_223 = arith.constant 0 : index
    %159 = vector.load %arg4[%c4_221, %c0_222, %c0_223] : memref<6x32x1xf32, #tpu.memory_space<vmem>>, vector<1x8x1xf32>
    %160 = vector.shape_cast %159 : vector<1x8x1xf32> to vector<8x1xf32>
    %161 = vector.broadcast %160 : vector<8x1xf32> to vector<8x324xf32>
    %162 = arith.addf %158, %161 : vector<8x324xf32>
    %cst_224 = arith.constant 0.000000e+00 : f32
    %163 = vector.broadcast %cst_224 : f32 to vector<8x324xf32>
    %164 = arith.maximumf %162, %163 : vector<8x324xf32>
    %165 = vector.broadcast %8 : vector<1x324xf32> to vector<8x324xf32>
    %166 = arith.mulf %164, %165 : vector<8x324xf32>
    %167 = arith.truncf %166 : vector<8x324xf32> to vector<8x324xbf16>
    %c0_225 = arith.constant 0 : index
    %c19_226 = arith.constant 19 : index
    %168 = vector.load %arg7[%c0_225, %c19_226] : memref<32x362xbf16, #tpu.memory_space<vmem>>, vector<8x324xbf16>
    tpu.vector_store %arg7[%c0_225, %c19_226], %167 {strides = array<i32>} : memref<32x362xbf16, #tpu.memory_space<vmem>>, vector<8x324xbf16>,
    %c0_227 = arith.constant 0 : index
    %c19_228 = arith.constant 19 : index
    %169 = vector.load %arg7[%c0_227, %c19_228] : memref<32x362xbf16, #tpu.memory_space<vmem>>, vector<8x324xbf16>
    %c0_229 = arith.constant 0 : index
    %c0_230 = arith.constant 0 : index
    %170 = vector.load %arg8[%c0_229, %c0_230] : memref<288x324xbf16, #tpu.memory_space<vmem>>, vector<8x324xbf16>
    tpu.vector_store %arg8[%c0_229, %c0_230], %169 {strides = array<i32>} : memref<288x324xbf16, #tpu.memory_space<vmem>>, vector<8x324xbf16>,
    %c5 = arith.constant 5 : index
    %c0_231 = arith.constant 0 : index
    %c0_232 = arith.constant 0 : index
    %171 = vector.load %arg3[%c5, %c0_231, %c0_232] : memref<6x32x288xbf16, #tpu.memory_space<vmem>>, vector<1x2x8xbf16>
    %172 = vector.shape_cast %171 : vector<1x2x8xbf16> to vector<2x8xbf16>
    %c0_233 = arith.constant 0 : index
    %c0_234 = arith.constant 0 : index
    %173 = vector.load %arg8[%c0_233, %c0_234] : memref<288x324xbf16, #tpu.memory_space<vmem>>, vector<8x324xbf16>
    %cst_235 = arith.constant dense<0.000000e+00> : vector<2x324xf32>
    %174 = tpu.matmul %172, %173, %cst_235 {dimension_numbers = #tpu.dot_dimension_numbers<[1], [0], [0], [1], [0, 0, 1, 1], [], []>} : vector<2x8xbf16>, vector<8x324xbf16>, vector<2x324xf32> -> vector<2x324xf32>
    %c5_236 = arith.constant 5 : index
    %c0_237 = arith.constant 0 : index
    %c0_238 = arith.constant 0 : index
    %175 = vector.load %arg4[%c5_236, %c0_237, %c0_238] : memref<6x32x1xf32, #tpu.memory_space<vmem>>, vector<1x2x1xf32>
    %176 = vector.shape_cast %175 : vector<1x2x1xf32> to vector<2x1xf32>
    %177 = vector.broadcast %176 : vector<2x1xf32> to vector<2x324xf32>
    %178 = arith.addf %174, %177 : vector<2x324xf32>
    %c0_239 = arith.constant 0 : index
    %c0_240 = arith.constant 0 : index
    %c0_241 = arith.constant 0 : index
    %179 = vector.load %arg5[%c0_239, %c0_240, %c0_241] : memref<1x2x324xf32, #tpu.memory_space<vmem>>, vector<1x2x324xf32>
    %180 = vector.shape_cast %179 : vector<1x2x324xf32> to vector<2x324xf32>
    %181 = vector.shape_cast %178 : vector<2x324xf32> to vector<1x2x324xf32>
    tpu.vector_store %arg5[%c0_239, %c0_240, %c0_241], %181 {strides = array<i32>} : memref<1x2x324xf32, #tpu.memory_space<vmem>>, vector<1x2x324xf32>,
    return
  }
  func.func @transform_0(%arg0: i32) -> (i32, i32, i32) {
    %c0_i32 = arith.constant 0 : i32
    %c0_i32_0 = arith.constant 0 : i32
    %c0_i32_1 = arith.constant 0 : i32
    return %arg0, %c0_i32, %c0_i32_0 : i32, i32, i32
  }
  func.func @transform_1(%arg0: i32) -> (i32, i32) {
    %c0_i32 = arith.constant 0 : i32
    %c0_i32_0 = arith.constant 0 : i32
    %c0_i32_1 = arith.constant 0 : i32
    return %c0_i32, %c0_i32_0 : i32, i32
  }
  func.func @transform_2(%arg0: i32) -> (i32, i32, i32) {
    %c0_i32 = arith.constant 0 : i32
    %c0_i32_0 = arith.constant 0 : i32
    %c0_i32_1 = arith.constant 0 : i32
    %c0_i32_2 = arith.constant 0 : i32
    return %c0_i32, %c0_i32_0, %c0_i32_1 : i32, i32, i32
  }
  func.func @transform_3(%arg0: i32) -> (i32, i32, i32) {
    %c0_i32 = arith.constant 0 : i32
    %c0_i32_0 = arith.constant 0 : i32
    %c0_i32_1 = arith.constant 0 : i32
    %c0_i32_2 = arith.constant 0 : i32
    return %c0_i32, %c0_i32_0, %c0_i32_1 : i32, i32, i32
  }
  func.func @transform_4(%arg0: i32) -> (i32, i32, i32) {
    %c0_i32 = arith.constant 0 : i32
    %c0_i32_0 = arith.constant 0 : i32
    %c0_i32_1 = arith.constant 0 : i32
    return %arg0, %c0_i32, %c0_i32_0 : i32, i32, i32
  }
}

</mosaic_0001>

<llo_original>
// kernel: fconv_forward.1
$region0: #{fconv_forward.1}
  #allocation0 [shape = 'u32[]', space=smem, size = 0x4, offset = 0x4, fixed_abs, tag = 'smem constant byte address 0x4 - core index']
  #allocation1 [shape = 'u32[144,128]{1,0:T(1,128)}', space=vmem, size = 0x12000, scoped, tag = 'internal scratch']
  #allocation2 [shape = 'bf16[32,362]{1,0:T(16,128)(2,1)}', space=vmem, size = 0x6000, scoped, tag = 'scratch operand']
  #allocation3 [shape = 'bf16[32,362]{1,0:T(16,128)(2,1)}', space=vmem, size = 0x6000, scoped, tag = 'scratch operand']
  #allocation4 [shape = 'bf16[288,324]{1,0:T(16,128)(2,1)}', space=vmem, size = 0x36000, scoped, tag = 'scratch operand']
  %s0 = inlined_call_operand.vmem [shape: bf16[2,8,324], index: 0, kind: input, shape index: {}]
  %s1 = inlined_call_operand.vmem [shape: f32[1,324], index: 1, kind: input, shape index: {}]
  %s2 = inlined_call_operand.vmem [shape: bf16[6,32,288], index: 2, kind: input, shape index: {}]
  %s3 = inlined_call_operand.vmem [shape: f32[6,32,1], index: 3, kind: input, shape index: {}]
  %s4 = inlined_call_operand.vmem [shape: f32[2,2,324], index: 4, kind: output, shape index: {}]
  %s5 = sld [smem:[#allocation0]]
  $region49: #{fconv_forward.1} parent=0
    _
  %s7 = ssub.s32 1, %s5
  %s8 = scalar_select 0, %s7, %s5
  loop: start=0, step=1, limit=4
  $region2: #{fconv_forward.1} parent=0 // loop_pre_header
    _
  $region3: #{fconv_forward.1} parent=0 // loop_header
    %s10 = sphi 0, %s14
    %p11 = scmp.ge.s32.totalorder %s10, 4
    %s20 = sphi 0, %s22
    %s23 = sphi 0, %s20
    %s24 = sphi 0, %s23
    %s40 = sphi 0, %s24
    %s44 = sphi 0, %s44
    %s46 = sphi 0, %s44
    %s47 = sphi 0, %s46
    %s61 = sphi 0, %s47
    %s65 = sphi 0, %s65
    %s67 = sphi 0, %s65
    %s68 = sphi 0, %s67
    %s82 = sphi 0, %s68
    %s86 = sphi 0, %s86
    %s88 = sphi 0, %s86
    %s89 = sphi 0, %s88
    %s103 = sphi 0, %s89
    %s109 = sphi 0, %s111
    %s112 = sphi 0, %s109
    %s113 = sphi 0, %s112
    %s129 = sphi 0, %s113
  $region4: #{fconv_forward.1} parent=0 // loop_header_branch
    %13 = sbr.rel (%p11) target = $region8
  $region5: #{fconv_forward.1} parent=0 // loop_body
    %s15 = ssub.s32 %s10, 1
    %s16 = ssub.s32 %s10, 2
    %s17 = sadd.s32 %s10, 1
    %s18 = ssub.s32 %s10, %s17
    %p19 = scmp.eq.s32.totalorder %s18, 0
    %s21 = sadd.s32 %s20, 1
    %s22 = scalar_select %p19, %s20, %s21
    %p25 = pneg %p19
    %p26 = scmp.eq.s32.totalorder %s10, 1
    %p27 = por %p25, %p26
    %p28 = scmp.ne.s32.totalorder %s20, %s23
    %p29 = scmp.eq.s32.totalorder %s10, 0
    %p30 = por %p28, %p29
    %p31 = scmp.ne.s32.totalorder %s20, %s23
    %p32 = scmp.eq.s32.totalorder %s15, 1
    %p33 = por %p31, %p32
    %p34 = scmp.ne.s32.totalorder %s23, %s24
    %p35 = scmp.eq.s32.totalorder %s15, 0
    %p36 = por %p34, %p35
    %p37 = scmp.ne.s32.totalorder %s23, %s24
    %p38 = scmp.eq.s32.totalorder %s16, 1
    %p39 = por %p37, %p38
    %p41 = scmp.ne.s32.totalorder %s24, %s40
    %p42 = scmp.eq.s32.totalorder %s16, 0
    %p43 = por %p41, %p42
    %s45 = sadd.s32 %s44, 1
    %p48 = scmp.eq.s32.totalorder %s10, 1
    %p49 = scmp.ne.s32.totalorder %s44, %s46
    %p50 = scmp.eq.s32.totalorder %s10, 0
    %p51 = por %p49, %p50
    %p52 = scmp.ne.s32.totalorder %s44, %s46
    %p53 = scmp.eq.s32.totalorder %s15, 1
    %p54 = por %p52, %p53
    %p55 = scmp.ne.s32.totalorder %s46, %s47
    %p56 = scmp.eq.s32.totalorder %s15, 0
    %p57 = por %p55, %p56
    %p58 = scmp.ne.s32.totalorder %s46, %s47
    %p59 = scmp.eq.s32.totalorder %s16, 1
    %p60 = por %p58, %p59
    %p62 = scmp.ne.s32.totalorder %s47, %s61
    %p63 = scmp.eq.s32.totalorder %s16, 0
    %p64 = por %p62, %p63
    %s66 = sadd.s32 %s65, 1
    %p69 = scmp.eq.s32.totalorder %s10, 1
    %p70 = scmp.ne.s32.totalorder %s65, %s67
    %p71 = scmp.eq.s32.totalorder %s10, 0
    %p72 = por %p70, %p71
    %p73 = scmp.ne.s32.totalorder %s65, %s67
    %p74 = scmp.eq.s32.totalorder %s15, 1
    %p75 = por %p73, %p74
    %p76 = scmp.ne.s32.totalorder %s67, %s68
    %p77 = scmp.eq.s32.totalorder %s15, 0
    %p78 = por %p76, %p77
    %p79 = scmp.ne.s32.totalorder %s67, %s68
    %p80 = scmp.eq.s32.totalorder %s16, 1
    %p81 = por %p79, %p80
    %p83 = scmp.ne.s32.totalorder %s68, %s82
    %p84 = scmp.eq.s32.totalorder %s16, 0
    %p85 = por %p83, %p84
    %s87 = sadd.s32 %s86, 1
    %p90 = scmp.eq.s32.totalorder %s10, 1
    %p91 = scmp.ne.s32.totalorder %s86, %s88
    %p92 = scmp.eq.s32.totalorder %s10, 0
    %p93 = por %p91, %p92
    %p94 = scmp.ne.s32.totalorder %s86, %s88
    %p95 = scmp.eq.s32.totalorder %s15, 1
    %p96 = por %p94, %p95
    %p97 = scmp.ne.s32.totalorder %s88, %s89
    %p98 = scmp.eq.s32.totalorder %s15, 0
    %p99 = por %p97, %p98
    %p100 = scmp.ne.s32.totalorder %s88, %s89
    %p101 = scmp.eq.s32.totalorder %s16, 1
    %p102 = por %p100, %p101
    %p104 = scmp.ne.s32.totalorder %s89, %s103
    %p105 = scmp.eq.s32.totalorder %s16, 0
    %p106 = por %p104, %p105
    %s107 = ssub.s32 %s10, %s17
    %p108 = scmp.eq.s32.totalorder %s107, 0
    %s110 = sadd.s32 %s109, 1
    %s111 = scalar_select %p108, %s109, %s110
    %p114 = pneg %p108
    %p115 = scmp.eq.s32.totalorder %s10, 1
    %p116 = por %p114, %p115
    %p117 = scmp.ne.s32.totalorder %s109, %s112
    %p118 = scmp.eq.s32.totalorder %s10, 0
    %p119 = por %p117, %p118
    %p120 = scmp.ne.s32.totalorder %s109, %s112
    %p121 = scmp.eq.s32.totalorder %s15, 1
    %p122 = por %p120, %p121
    %p123 = scmp.ne.s32.totalorder %s112, %s113
    %p124 = scmp.eq.s32.totalorder %s15, 0
    %p125 = por %p123, %p124
    %p126 = scmp.ne.s32.totalorder %s112, %s113
    %p127 = scmp.eq.s32.totalorder %s16, 1
    %p128 = por %p126, %p127
    %p130 = scmp.ne.s32.totalorder %s113, %s129
    %p131 = scmp.eq.s32.totalorder %s16, 0
    %p132 = por %p130, %p131
    %p133 = scmp.le.s32.totalorder 1, %s10
    %p134 = scmp.lt.s32.totalorder %s10, 3
    %p135 = pnand %p133, %p134
    %p136 = pneg %p135
    // Predicated region
    $region9: #{fconv_forward.1} parent=5 // pred_check
      _
    $region10: #{fconv_forward.1} parent=5 // pred_check_branch
      %138 = sbr.rel (%p135) target = $region12
    $region11: #{fconv_forward.1} parent=5 // pred_region
      %s139 = ssub.s32 %s10, 1
      // Predicated region
      $region13: #{fconv_forward.1} parent=11 // pred_check
        %p140 = pneg %p57
      $region14: #{fconv_forward.1} parent=11 // pred_check_branch
        %142 = sbr.rel (%p140) target = $region16
      $region15: #{fconv_forward.1} parent=11 // pred_region
        _
      $region16: #{fconv_forward.1} parent=11 // pred_fallthru
        _
      // Predicated region
      $region17: #{fconv_forward.1} parent=11 // pred_check
        %p143 = pneg %p78
      $region18: #{fconv_forward.1} parent=11 // pred_check_branch
        %145 = sbr.rel (%p143) target = $region20
      $region19: #{fconv_forward.1} parent=11 // pred_region
        _
      $region20: #{fconv_forward.1} parent=11 // pred_fallthru
        _
      // Predicated region
      $region21: #{fconv_forward.1} parent=11 // pred_check
        %p146 = pneg %p99
      $region22: #{fconv_forward.1} parent=11 // pred_check_branch
        %148 = sbr.rel (%p146) target = $region24
      $region23: #{fconv_forward.1} parent=11 // pred_region
        _
      $region24: #{fconv_forward.1} parent=11 // pred_fallthru
        _
    $region12: #{fconv_forward.1} parent=5 // pred_fallthru
      _
    %p149 = scmp.lt.s32.totalorder %s10, 2
    // Predicated region
    $region25: #{fconv_forward.1} parent=5 // pred_check
      %p150 = pneg %p149
    $region26: #{fconv_forward.1} parent=5 // pred_check_branch
      %152 = sbr.rel (%p150) target = $region28
    $region27: #{fconv_forward.1} parent=5 // pred_region
      // Predicated region
      $region29: #{fconv_forward.1} parent=27 // pred_check
        %p153 = pneg %p30
      $region30: #{fconv_forward.1} parent=27 // pred_check_branch
        %155 = sbr.rel (%p153) target = $region32
      $region31: #{fconv_forward.1} parent=27 // pred_region
        %p156 = scmp.lt.s32.totalorder %s10, 1
        %s157 = scalar_select %p156, %s10, 1
        %s158 = smul.addr %s157, 3
        %s159 = smul.addr %s158, 4
        %s160 = scalar_lea.vmem %s0, %s159
      $region32: #{fconv_forward.1} parent=27 // pred_fallthru
        _
    $region28: #{fconv_forward.1} parent=5 // pred_fallthru
      _
    %p161 = scmp.le.s32.totalorder 1, %s10
    %p162 = scmp.lt.s32.totalorder %s10, 3
    %p163 = pnand %p161, %p162
    %p164 = pneg %p163
    // Predicated region
    $region33: #{fconv_forward.1} parent=5 // pred_check
      _
    $region34: #{fconv_forward.1} parent=5 // pred_check_branch
      %166 = sbr.rel (%p163) target = $region36
    $region35: #{fconv_forward.1} parent=5 // pred_region
      %s167 = ssub.s32 %s10, 1
      %p168 = scmp.lt.s32.totalorder %s15, 1
      %s169 = scalar_select %p168, %s15, 1
      %s170 = smul.addr %s169, 3
      %s171 = smul.addr %s170, 4
      %s172 = scalar_lea.vmem %s0, %s171
      %p173 = pneg %p36
      %p174 = pneg %p33
      %p175 = pneg %p57
      %p176 = pneg %p54
      %p177 = pneg %p78
      %p178 = pneg %p75
      %p179 = pneg %p99
      %p180 = pneg %p96
      %p181 = pneg %p125
      %p182 = pneg %p122
      %p183 = scmp.lt.s32.totalorder %s15, 1
      %s184 = scalar_select %p183, %s15, 1
      %s185 = smul.addr %s184, 3
      %s186 = smul.addr %s185, 2
      %s187 = scalar_lea.vmem %s4, %s186
      %p188 = scmp.lt.s32.totalorder %s15, 1
      %s189 = scalar_select %p188, %s15, 1
      %s190 = smul.addr %s189, 3
      %s191 = smul.addr %s190, 4
      %s192 = scalar_lea.vmem %s0, %s191
      %p193 = scmp.lt.s32.totalorder %s15, 1
      %s194 = scalar_select %p193, %s15, 1
      %s195 = smul.addr %s194, 3
      %s196 = smul.addr %s195, 2
      %s197 = scalar_lea.vmem %s4, %s196
      %vm199 = vcmask 154624
      %200 = vst.msk [vmem:[#allocation2] sm:$0xff] %vm199, 0
      %201 = vst.msk [vmem:[#allocation2 + $0x18] sm:$0xff] %vm199, 0
      %vm202 = vcmask 868024
      %203 = vst.msk [vmem:[#allocation2 + $0x10] sm:$0xff] %vm202, 0
      %204 = vst.msk [vmem:[#allocation2 + $0x28] sm:$0xff] %vm202, 0
      %205 = vst.msk [vmem:[#allocation3] sm:$0xff] %vm199, 0
      %206 = vst.msk [vmem:[#allocation3 + $0x18] sm:$0xff] %vm199, 0
      %207 = vst.msk [vmem:[#allocation3 + $0x10] sm:$0xff] %vm202, 0
      %208 = vst.msk [vmem:[#allocation3 + $0x28] sm:$0xff] %vm202, 0
      %v209 = vld [vmem:[%s192] sm:$0xff]
      %v210 = vld [vmem:[%s192 + $0x8] sm:$0xf]
      %v213 = vunpack.c.l.b16 %v209
      %v214 = vunpack.c.h.b16 %v209
      %v215 = vunpack.c.l.b16 %v210
      %v216 = vpack.c.b16 %v213, %v213
      %v217 = vpack.c.b16 %v214, %v214
      %v218 = vpack.c.b16 %v215, %v215
      %219 = vrot.lane.b32.xlu0 %v216, 19
      %v220 = vpop.permute.xlu0 %219
      %221 = vrot.lane.b32.xlu0 %v217, 19
      %v222 = vpop.permute.xlu0 %221
      %223 = vrot.lane.b32.xlu0 %v218, 19
      %v224 = vpop.permute.xlu0 %223
      %vm225 = vcmask 154624
      %v226 = vsel %vm225, %v220, %v222
      %v227 = vsel %vm225, %v222, %v224
      %vm231 = vcmask 1043608
      %232 = vst.msk [vmem:[#allocation2] sm:$0xf] %vm231, %v220
      %233 = vst [vmem:[#allocation2 + $0x8] sm:$0xf] %v226
      %vm234 = vcmask 707584
      %235 = vst.msk [vmem:[#allocation2 + $0x10] sm:$0xf] %vm234, %v227
      %v236 = vld [vmem:[%s1] sm:$0x7]
      %v237 = vld [vmem:[#allocation2] sm:$0xf]
      %v238 = vld [vmem:[#allocation2 + $0x8] sm:$0xf]
      %v239 = vld [vmem:[#allocation2 + $0x10] sm:$0xf]
      %240 = vst [vmem:[#allocation4] sm:$0xf] %v237
      %241 = vst [vmem:[#allocation4 + $0x8] sm:$0xf] %v238
      %vm242 = vcmask 551936
      %243 = vst.msk [vmem:[#allocation4 + $0x10] sm:$0xf] %vm242, %v239
      %v244 = vld [vmem:[#allocation2] sm:$0xf]
      %v245 = vld [vmem:[#allocation2 + $0x8] sm:$0xf]
      %v246 = vld [vmem:[#allocation2 + $0x10] sm:$0xf]
      %v250 = vrot.slane %v244, 4
      %v251 = vrot.slane %v245, 4
      %v252 = vrot.slane %v246, 4
      %253 = vrot.lane.b32.xlu0 %v250, 127
      %v254 = vpop.permute.xlu0 %253
      %255 = vrot.lane.b32.xlu0 %v251, 127
      %v256 = vpop.permute.xlu0 %255
      %257 = vrot.lane.b32.xlu0 %v252, 127
      %v258 = vpop.permute.xlu0 %257
      %vm259 = vcmask 1039360
      %v260 = vsel %vm259, %v254, %v256
      %v261 = vsel %vm259, %v256, %v258
      %265 = vst [vmem:[#allocation4] sm:$0xf0] %v260
      %266 = vst [vmem:[#allocation4 + $0x8] sm:$0xf0] %v261
      %vm267 = vcmask 556036
      %268 = vst.msk [vmem:[#allocation4 + $0x10] sm:$0xf0] %vm267, %v258
      %v269 = vld [vmem:[#allocation2] sm:$0xf]
      %v270 = vld [vmem:[#allocation2 + $0x8] sm:$0xf]
      %v271 = vld [vmem:[#allocation2 + $0x10] sm:$0xf]
      %275 = vrot.lane.b32.xlu0 %v269, 126
      %v276 = vpop.permute.xlu0 %275
      %277 = vrot.lane.b32.xlu0 %v270, 126
      %v278 = vpop.permute.xlu0 %277
      %279 = vrot.lane.b32.xlu0 %v271, 126
      %v280 = vpop.permute.xlu0 %279
      %vm281 = vcmask 1031168
      %v282 = vsel %vm281, %v276, %v278
      %v283 = vsel %vm281, %v278, %v280
      %287 = vst [vmem:[#allocation4 + $0x18] sm:$0xf] %v282
      %288 = vst [vmem:[#allocation4 + $0x20] sm:$0xf] %v283
      %289 = vst.msk [vmem:[#allocation4 + $0x28] sm:$0xf] %vm242, %v280
      %v290 = vld [vmem:[#allocation2] sm:$0xf]
      %v291 = vld [vmem:[#allocation2 + $0x8] sm:$0xf]
      %v292 = vld [vmem:[#allocation2 + $0x10] sm:$0xf]
      %v296 = vrot.slane %v290, 4
      %v297 = vrot.slane %v291, 4
      %v298 = vrot.slane %v292, 4
      %299 = vrot.lane.b32.xlu0 %v296, 110
      %v300 = vpop.permute.xlu0 %299
      %301 = vrot.lane.b32.xlu0 %v297, 110
      %v302 = vpop.permute.xlu0 %301
      %303 = vrot.lane.b32.xlu0 %v298, 110
      %v304 = vpop.permute.xlu0 %303
      %vm305 = vcmask 900096
      %v306 = vsel %vm305, %v300, %v302
      %v307 = vsel %vm305, %v302, %v304
      %311 = vst [vmem:[#allocation4 + $0x18] sm:$0xf0] %v306
      %312 = vst [vmem:[#allocation4 + $0x20] sm:$0xf0] %v307
      %313 = vst.msk [vmem:[#allocation4 + $0x28] sm:$0xf0] %vm267, %v304
      %v314 = vld [vmem:[#allocation2] sm:$0xf]
      %v315 = vld [vmem:[#allocation2 + $0x8] sm:$0xf]
      %v316 = vld [vmem:[#allocation2 + $0x10] sm:$0xf]
      %320 = vrot.lane.b32.xlu0 %v314, 109
      %v321 = vpop.permute.xlu0 %320
      %322 = vrot.lane.b32.xlu0 %v315, 109
      %v323 = vpop.permute.xlu0 %322
      %324 = vrot.lane.b32.xlu0 %v316, 109
      %v325 = vpop.permute.xlu0 %324
      %vm326 = vcmask 891904
      %v327 = vsel %vm326, %v321, %v323
      %v328 = vsel %vm326, %v323, %v325
      %332 = vst [vmem:[#allocation4 + $0x30] sm:$0xf] %v327
      %333 = vst [vmem:[#allocation4 + $0x38] sm:$0xf] %v328
      %334 = vst.msk [vmem:[#allocation4 + $0x40] sm:$0xf] %vm242, %v325
      %v335 = vld [vmem:[#allocation2] sm:$0xf]
      %v336 = vld [vmem:[#allocation2 + $0x8] sm:$0xf]
      %v337 = vld [vmem:[#allocation2 + $0x10] sm:$0xf]
      %v341 = vrot.slane %v335, 4
      %v342 = vrot.slane %v336, 4
      %v343 = vrot.slane %v337, 4
      %344 = vrot.lane.b32.xlu0 %v341, 108
      %v345 = vpop.permute.xlu0 %344
      %346 = vrot.lane.b32.xlu0 %v342, 108
      %v347 = vpop.permute.xlu0 %346
      %348 = vrot.lane.b32.xlu0 %v343, 108
      %v349 = vpop.permute.xlu0 %348
      %vm350 = vcmask 883712
      %v351 = vsel %vm350, %v345, %v347
      %v352 = vsel %vm350, %v347, %v349
      %356 = vst [vmem:[#allocation4 + $0x30] sm:$0xf0] %v351
      %357 = vst [vmem:[#allocation4 + $0x38] sm:$0xf0] %v352
      %358 = vst.msk [vmem:[#allocation4 + $0x40] sm:$0xf0] %vm267, %v349
      %v359 = vld [vmem:[#allocation2] sm:$0xf]
      %v360 = vld [vmem:[#allocation2 + $0x8] sm:$0xf]
      %v361 = vld [vmem:[#allocation2 + $0x10] sm:$0xf]
      %365 = vrot.lane.b32.xlu0 %v359, 92
      %v366 = vpop.permute.xlu0 %365
      %367 = vrot.lane.b32.xlu0 %v360, 92
      %v368 = vpop.permute.xlu0 %367
      %369 = vrot.lane.b32.xlu0 %v361, 92
      %v370 = vpop.permute.xlu0 %369
      %vm371 = vcmask 752640
      %v372 = vsel %vm371, %v366, %v368
      %v373 = vsel %vm371, %v368, %v370
      %377 = vst [vmem:[#allocation4 + $0x48] sm:$0xf] %v372
      %378 = vst [vmem:[#allocation4 + $0x50] sm:$0xf] %v373
      %379 = vst.msk [vmem:[#allocation4 + $0x58] sm:$0xf] %vm242, %v370
      %v380 = vld [vmem:[#allocation2] sm:$0xf]
      %v381 = vld [vmem:[#allocation2 + $0x8] sm:$0xf]
      %v382 = vld [vmem:[#allocation2 + $0x10] sm:$0xf]
      %v386 = vrot.slane %v380, 4
      %v387 = vrot.slane %v381, 4
      %v388 = vrot.slane %v382, 4
      %389 = vrot.lane.b32.xlu0 %v386, 91
      %v390 = vpop.permute.xlu0 %389
      %391 = vrot.lane.b32.xlu0 %v387, 91
      %v392 = vpop.permute.xlu0 %391
      %393 = vrot.lane.b32.xlu0 %v388, 91
      %v394 = vpop.permute.xlu0 %393
      %vm395 = vcmask 744448
      %v396 = vsel %vm395, %v390, %v392
      %v397 = vsel %vm395, %v392, %v394
      %401 = vst [vmem:[#allocation4 + $0x48] sm:$0xf0] %v396
      %402 = vst [vmem:[#allocation4 + $0x50] sm:$0xf0] %v397
      %403 = vst.msk [vmem:[#allocation4 + $0x58] sm:$0xf0] %vm267, %v394
      %v404 = vld [vmem:[#allocation2] sm:$0xf]
      %v405 = vld [vmem:[#allocation2 + $0x8] sm:$0xf]
      %v406 = vld [vmem:[#allocation2 + $0x10] sm:$0xf]
      %410 = vrot.lane.b32.xlu0 %v404, 90
      %v411 = vpop.permute.xlu0 %410
      %412 = vrot.lane.b32.xlu0 %v405, 90
      %v413 = vpop.permute.xlu0 %412
      %414 = vrot.lane.b32.xlu0 %v406, 90
      %v415 = vpop.permute.xlu0 %414
      %vm416 = vcmask 736256
      %v417 = vsel %vm416, %v411, %v413
      %v418 = vsel %vm416, %v413, %v415
      %422 = vst [vmem:[#allocation4 + $0x60] sm:$0xf] %v417
      %423 = vst [vmem:[#allocation4 + $0x68] sm:$0xf] %v418
      %424 = vst.msk [vmem:[#allocation4 + $0x70] sm:$0xf] %vm242, %v415
      %v425 = vld [vmem:[%s2] sm:$0xf]
      %v426 = vld [vmem:[%s2 + $0xc] sm:$0xf]
      %v427 = vld [vmem:[%s2 + $0x18] sm:$0xf]
      %v428 = vld [vmem:[%s2 + $0x24] sm:$0xf]
      %v429 = vld [vmem:[#allocation4] sm:$0xff]
      %v430 = vld [vmem:[#allocation4 + $0x8] sm:$0xff]
      %v431 = vld [vmem:[#allocation4 + $0x10] sm:$0xff]
      %v432 = vld [vmem:[#allocation4 + $0x18] sm:$0xff]
      %v433 = vld [vmem:[#allocation4 + $0x20] sm:$0xff]
      %v434 = vld [vmem:[#allocation4 + $0x28] sm:$0xff]
      %v435 = vld [vmem:[#allocation4 + $0x30] sm:$0xff]
      %v436 = vld [vmem:[#allocation4 + $0x38] sm:$0xff]
      %v437 = vld [vmem:[#allocation4 + $0x40] sm:$0xff]
      %v438 = vld [vmem:[#allocation4 + $0x48] sm:$0xff]
      %v439 = vld [vmem:[#allocation4 + $0x50] sm:$0xff]
      %v440 = vld [vmem:[#allocation4 + $0x58] sm:$0xff]
      %v441 = vld [vmem:[#allocation4 + $0x60] sm:$0xf]
      %v442 = vld [vmem:[#allocation4 + $0x68] sm:$0xf]
      %v443 = vld [vmem:[#allocation4 + $0x70] sm:$0xf]
      %v444 = vld [vmem:[%s3] sm:$0xff]
      %v445 = vld [vmem:[%s3 + $0x8] sm:$0xff]
      %v446 = vld [vmem:[%s3 + $0x10] sm:$0xff]
      %v447 = vld [vmem:[%s3 + $0x18] sm:$0xff]
      %449 = vset.pattern.permute.xlu0 0
      %450 = vperm.xlu0 %449, %v444
      %v451 = vpop.permute.xlu0 %450
      %454 = vset.pattern.permute.xlu0 0
      %455 = vperm.xlu0 %454, %v445
      %v456 = vpop.permute.xlu0 %455
      %459 = vset.pattern.permute.xlu0 0
      %460 = vperm.xlu0 %459, %v446
      %v461 = vpop.permute.xlu0 %460
      %464 = vset.pattern.permute.xlu0 0
      %465 = vperm.xlu0 %464, %v447
      %v466 = vpop.permute.xlu0 %465
      %v472 = vunpack.c.l.b16 %v425
      %v473 = vunpack.c.l.b16 %v426
      %v474 = vunpack.c.l.b16 %v427
      %v475 = vunpack.c.l.b16 %v428
      %v476 = vpack.c.b16 %v473, %v472
      %v477 = vpack.c.b16 %v475, %v474
      %vm478 = vcmask 588800
      %v480 = vsel %vm478, %v476, 0
      %v483 = vsel %vm478, %v477, 0
      %vm485 = vcmask 1043456
      %v487 = vsel %vm485, %v441, 0
      %v490 = vsel %vm485, %v442, 0
      %v493 = vsel %vm485, %v443, 0
      %495 = vmatprep.subr.bf16.mxu0 %v430
      %496 = vmatpush1.bf16.msra.mxu0 %v429
      %497 = vmatprep.subr.bf16.mxu0 %v433
      %498 = vmatpush1.bf16.msra.mxu0 %v432
      %499 = vmatprep.subr.bf16.mxu0 %v436
      %500 = vmatpush1.bf16.msra.mxu0 %v435
      %501 = vmatprep.subr.bf16.mxu0 %v439
      %502 = vmatpush1.bf16.msra.mxu0 %v438
      %503 = vmatprep.subr.bf16.mxu0 %v490
      %504 = vmatpush1.bf16.msra.mxu0 %v487
      %505 = vmatprep.subr.bf16.mxu0 0
      %506 = vmatpush1.bf16.msra.mxu0 0
      %507 = vmatprep.subr.bf16.mxu0 0
      %508 = vmatpush1.bf16.msra.mxu0 0
      %509 = vmatprep.subr.bf16.mxu0 0
      %510 = vmatpush1.bf16.msra.mxu0 0
      %511 = vmatprep.subr.bf16.mxu0 0
      %512 = vmatpush1.bf16.msra.mxu0 0
      %513 = vmatprep.subr.bf16.mxu0 0
      %514 = vmatpush1.bf16.msra.mxu0 0
      %515 = vmatprep.subr.bf16.mxu0 0
      %516 = vmatpush1.bf16.msra.mxu0 0
      %517 = vmatprep.subr.bf16.mxu0 0
      %518 = vmatpush1.bf16.msra.mxu0 0
      %519 = vmatprep.subr.bf16.mxu0 0
      %520 = vmatpush1.bf16.msra.mxu0 0
      %521 = vmatprep.subr.bf16.mxu0 0
      %522 = vmatpush1.bf16.msra.mxu0 0
      %523 = vmatprep.subr.bf16.mxu0 0
      %524 = vmatpush1.bf16.msra.mxu0 0
      %525 = vmatprep.subr.bf16.mxu0 0
      %526 = vmatpush1.bf16.msra.mxu0 0
      %527 = vmatprep.mubr.bf16.mxu0 0
      %528 = vmatmul.mubr.bf16.gmra.mrb[0].mxu0 %v480
      %v529 = vpop.f32.mrb[0].mxu0
      %v530 = vadd.f32 %v451, %v529
      %v531 = vpop.f32.mrb[0].mxu0
      %v532 = vadd.f32 %v451, %v531
      %v533 = vpop.f32.mrb[0].mxu0
      %v534 = vadd.f32 %v456, %v533
      %v535 = vpop.f32.mrb[0].mxu0
      %v536 = vadd.f32 %v456, %v535
      %537 = vmatprep.mubr.bf16.mxu0 0
      %538 = vmatmul.mubr.bf16.gmra.mrb[0].mxu0 %v483
      %v539 = vpop.f32.mrb[0].mxu0
      %v540 = vadd.f32 %v461, %v539
      %v541 = vpop.f32.mrb[0].mxu0
      %v542 = vadd.f32 %v461, %v541
      %v543 = vpop.f32.mrb[0].mxu0
      %v544 = vadd.f32 %v466, %v543
      %v545 = vpop.f32.mrb[0].mxu0
      %v546 = vadd.f32 %v466, %v545
      %547 = vdwg.mxu0
      %548 = vmatprep.subr.bf16.mxu0 0
      %549 = vmatpush1.bf16.msra.mxu0 %v431
      %550 = vmatprep.subr.bf16.mxu0 0
      %551 = vmatpush1.bf16.msra.mxu0 %v434
      %552 = vmatprep.subr.bf16.mxu0 0
      %553 = vmatpush1.bf16.msra.mxu0 %v437
      %554 = vmatprep.subr.bf16.mxu0 0
      %555 = vmatpush1.bf16.msra.mxu0 %v440
      %556 = vmatprep.subr.bf16.mxu0 0
      %557 = vmatpush1.bf16.msra.mxu0 %v493
      %558 = vmatprep.subr.bf16.mxu0 0
      %559 = vmatpush1.bf16.msra.mxu0 0
      %560 = vmatprep.subr.bf16.mxu0 0
      %561 = vmatpush1.bf16.msra.mxu0 0
      %562 = vmatprep.subr.bf16.mxu0 0
      %563 = vmatpush1.bf16.msra.mxu0 0
      %564 = vmatprep.subr.bf16.mxu0 0
      %565 = vmatpush1.bf16.msra.mxu0 0
      %566 = vmatprep.subr.bf16.mxu0 0
      %567 = vmatpush1.bf16.msra.mxu0 0
      %568 = vmatprep.subr.bf16.mxu0 0
      %569 = vmatpush1.bf16.msra.mxu0 0
      %570 = vmatprep.subr.bf16.mxu0 0
      %571 = vmatpush1.bf16.msra.mxu0 0
      %572 = vmatprep.subr.bf16.mxu0 0
      %573 = vmatpush1.bf16.msra.mxu0 0
      %574 = vmatprep.subr.bf16.mxu0 0
      %575 = vmatpush1.bf16.msra.mxu0 0
      %576 = vmatprep.subr.bf16.mxu0 0
      %577 = vmatpush1.bf16.msra.mxu0 0
      %578 = vmatprep.subr.bf16.mxu0 0
      %579 = vmatpush1.bf16.msra.mxu0 0
      %580 = vmatprep.mubr.bf16.mxu0 0
      %581 = vmatmul.mubr.bf16.gmra.mrb[0].mxu0 %v480
      %v582 = vpop.f32.mrb[0].mxu0
      %v583 = vadd.f32 %v451, %v582
      %v584 = vpop.f32.mrb[0].mxu0
      %v585 = vpop.f32.mrb[0].mxu0
      %v586 = vadd.f32 %v456, %v585
      %v587 = vpop.f32.mrb[0].mxu0
      %588 = vmatprep.mubr.bf16.mxu0 0
      %589 = vmatmul.mubr.bf16.gmra.mrb[0].mxu0 %v483
      %v590 = vpop.f32.mrb[0].mxu0
      %v591 = vadd.f32 %v461, %v590
      %v592 = vpop.f32.mrb[0].mxu0
      %v593 = vpop.f32.mrb[0].mxu0
      %v594 = vadd.f32 %v466, %v593
      %v595 = vpop.f32.mrb[0].mxu0
      %596 = vdwg.mxu0
      %v597 = vmax.f32 %v530, 0.0
      %v598 = vmax.f32 %v532, 0.0
      %v599 = vmax.f32 %v583, 0.0
      %v600 = vmax.f32 %v534, 0.0
      %v601 = vmax.f32 %v536, 0.0
      %v602 = vmax.f32 %v586, 0.0
      %v603 = vmax.f32 %v540, 0.0
      %v604 = vmax.f32 %v542, 0.0
      %v605 = vmax.f32 %v591, 0.0
      %v606 = vmax.f32 %v544, 0.0
      %v607 = vmax.f32 %v546, 0.0
      %v608 = vmax.f32 %v594, 0.0
      %v610 = vlaneseq
      %v611 = vshrl.u32 %v610, 7
      %v612 = vsub.s32 0, %v611
      %v613 = vrot.slane %v236, %v612
      %v614 = vlaneseq
      %v615 = vshrl.u32 %v614, 7
      %v616 = vsub.s32 1, %v615
      %v617 = vrot.slane %v236, %v616
      %v618 = vlaneseq
      %v619 = vshrl.u32 %v618, 7
      %v620 = vsub.s32 2, %v619
      %v621 = vrot.slane %v236, %v620
      %v625 = vmul.f32 %v597, %v613
      %v626 = vmul.f32 %v598, %v617
      %v627 = vmul.f32 %v599, %v621
      %v628 = vmul.f32 %v600, %v613
      %v629 = vmul.f32 %v601, %v617
      %v630 = vmul.f32 %v602, %v621
      %v631 = vmul.f32 %v603, %v613
      %v632 = vmul.f32 %v604, %v617
      %v633 = vmul.f32 %v605, %v621
      %v634 = vmul.f32 %v606, %v613
      %v635 = vmul.f32 %v607, %v617
      %v636 = vmul.f32 %v608, %v621
      %v637 = vpack.c.bf16 %v628, %v625
      %v638 = vpack.c.bf16 %v629, %v626
      %v639 = vpack.c.bf16 %v630, %v627
      %v640 = vpack.c.bf16 %v634, %v631
      %v641 = vpack.c.bf16 %v635, %v632
      %v642 = vpack.c.bf16 %v636, %v633
      %649 = vrot.lane.b32.xlu0 %v637, 19
      %v650 = vpop.permute.xlu0 %649
      %651 = vrot.lane.b32.xlu0 %v638, 19
      %v652 = vpop.permute.xlu0 %651
      %653 = vrot.lane.b32.xlu0 %v639, 19
      %v654 = vpop.permute.xlu0 %653
      %655 = vrot.lane.b32.xlu0 %v640, 19
      %v656 = vpop.permute.xlu0 %655
      %657 = vrot.lane.b32.xlu0 %v641, 19
      %v658 = vpop.permute.xlu0 %657
      %659 = vrot.lane.b32.xlu0 %v642, 19
      %v660 = vpop.permute.xlu0 %659
      %v661 = vsel %vm225, %v650, %v652
      %v662 = vsel %vm225, %v652, %v654
      %v663 = vsel %vm225, %v656, %v658
      %v664 = vsel %vm225, %v658, %v660
      %vm671 = vcmask 1047704
      %672 = vst.msk [vmem:[#allocation3] sm:$0xff] %vm671, %v650
      %673 = vst [vmem:[#allocation3 + $0x8] sm:$0xff] %v661
      %vm674 = vcmask 711680
      %675 = vst.msk [vmem:[#allocation3 + $0x10] sm:$0xff] %vm674, %v662
      %676 = vst.msk [vmem:[#allocation3 + $0x18] sm:$0xff] %vm671, %v656
      %677 = vst [vmem:[#allocation3 + $0x20] sm:$0xff] %v663
      %678 = vst.msk [vmem:[#allocation3 + $0x28] sm:$0xff] %vm674, %v664
      %v679 = vld [vmem:[#allocation3] sm:$0xff]
      %v680 = vld [vmem:[#allocation3 + $0x8] sm:$0xff]
      %v681 = vld [vmem:[#allocation3 + $0x10] sm:$0xff]
      %v682 = vld [vmem:[#allocation3 + $0x18] sm:$0xff]
      %v683 = vld [vmem:[#allocation3 + $0x20] sm:$0xff]
      %v684 = vld [vmem:[#allocation3 + $0x28] sm:$0xff]
      %685 = vst [vmem:[#allocation4] sm:$0xff] %v679
      %686 = vst [vmem:[#allocation4 + $0x8] sm:$0xff] %v680
      %vm687 = vcmask 556032
      %688 = vst.msk [vmem:[#allocation4 + $0x10] sm:$0xff] %vm687, %v681
      %689 = vst [vmem:[#allocation4 + $0x18] sm:$0xff] %v682
      %690 = vst [vmem:[#allocation4 + $0x20] sm:$0xff] %v683
      %691 = vst.msk [vmem:[#allocation4 + $0x28] sm:$0xff] %vm687, %v684
      %v692 = vld [vmem:[#allocation3] sm:$0xff]
      %v693 = vld [vmem:[#allocation3 + $0x8] sm:$0xff]
      %v694 = vld [vmem:[#allocation3 + $0x10] sm:$0xff]
      %v695 = vld [vmem:[#allocation3 + $0x18] sm:$0xff]
      %v696 = vld [vmem:[#allocation3 + $0x20] sm:$0xff]
      %v697 = vld [vmem:[#allocation3 + $0x28] sm:$0xff]
      %704 = vrot.lane.b32.xlu0 %v692, 127
      %v705 = vpop.permute.xlu0 %704
      %706 = vrot.lane.b32.xlu0 %v693, 127
      %v707 = vpop.permute.xlu0 %706
      %708 = vrot.lane.b32.xlu0 %v694, 127
      %v709 = vpop.permute.xlu0 %708
      %710 = vrot.lane.b32.xlu0 %v695, 127
      %v711 = vpop.permute.xlu0 %710
      %712 = vrot.lane.b32.xlu0 %v696, 127
      %v713 = vpop.permute.xlu0 %712
      %714 = vrot.lane.b32.xlu0 %v697, 127
      %v715 = vpop.permute.xlu0 %714
      %v716 = vsel %vm259, %v705, %v707
      %v717 = vsel %vm259, %v707, %v709
      %v718 = vsel %vm259, %v711, %v713
      %v719 = vsel %vm259, %v713, %v715
      %726 = vst [vmem:[#allocation4 + $0x30] sm:$0xff] %v716
      %727 = vst [vmem:[#allocation4 + $0x38] sm:$0xff] %v717
      %728 = vst.msk [vmem:[#allocation4 + $0x40] sm:$0xff] %vm687, %v709
      %729 = vst [vmem:[#allocation4 + $0x48] sm:$0xff] %v718
      %730 = vst [vmem:[#allocation4 + $0x50] sm:$0xff] %v719
      %731 = vst.msk [vmem:[#allocation4 + $0x58] sm:$0xff] %vm687, %v715
      %v732 = vld [vmem:[#allocation3] sm:$0xff]
      %v733 = vld [vmem:[#allocation3 + $0x8] sm:$0xff]
      %v734 = vld [vmem:[#allocation3 + $0x10] sm:$0xff]
      %v735 = vld [vmem:[#allocation3 + $0x18] sm:$0xff]
      %v736 = vld [vmem:[#allocation3 + $0x20] sm:$0xff]
      %v737 = vld [vmem:[#allocation3 + $0x28] sm:$0xff]
      %744 = vrot.lane.b32.xlu0 %v732, 126
      %v745 = vpop.permute.xlu0 %744
      %746 = vrot.lane.b32.xlu0 %v733, 126
      %v747 = vpop.permute.xlu0 %746
      %748 = vrot.lane.b32.xlu0 %v734, 126
      %v749 = vpop.permute.xlu0 %748
      %750 = vrot.lane.b32.xlu0 %v735, 126
      %v751 = vpop.permute.xlu0 %750
      %752 = vrot.lane.b32.xlu0 %v736, 126
      %v753 = vpop.permute.xlu0 %752
      %754 = vrot.lane.b32.xlu0 %v737, 126
      %v755 = vpop.permute.xlu0 %754
      %v756 = vsel %vm281, %v745, %v747
      %v757 = vsel %vm281, %v747, %v749
      %v758 = vsel %vm281, %v751, %v753
      %v759 = vsel %vm281, %v753, %v755
      %766 = vst [vmem:[#allocation4 + $0x60] sm:$0xff] %v756
      %767 = vst [vmem:[#allocation4 + $0x68] sm:$0xff] %v757
      %768 = vst.msk [vmem:[#allocation4 + $0x70] sm:$0xff] %vm687, %v749
      %769 = vst [vmem:[#allocation4 + $0x78] sm:$0xff] %v758
      %770 = vst [vmem:[#allocation4 + $0x80] sm:$0xff] %v759
      %771 = vst.msk [vmem:[#allocation4 + $0x88] sm:$0xff] %vm687, %v755
      %v772 = vld [vmem:[#allocation3] sm:$0xff]
      %v773 = vld [vmem:[#allocation3 + $0x8] sm:$0xff]
      %v774 = vld [vmem:[#allocation3 + $0x10] sm:$0xff]
      %v775 = vld [vmem:[#allocation3 + $0x18] sm:$0xff]
      %v776 = vld [vmem:[#allocation3 + $0x20] sm:$0xff]
      %v777 = vld [vmem:[#allocation3 + $0x28] sm:$0xff]
      %784 = vrot.lane.b32.xlu0 %v772, 110
      %v785 = vpop.permute.xlu0 %784
      %786 = vrot.lane.b32.xlu0 %v773, 110
      %v787 = vpop.permute.xlu0 %786
      %788 = vrot.lane.b32.xlu0 %v774, 110
      %v789 = vpop.permute.xlu0 %788
      %790 = vrot.lane.b32.xlu0 %v775, 110
      %v791 = vpop.permute.xlu0 %790
      %792 = vrot.lane.b32.xlu0 %v776, 110
      %v793 = vpop.permute.xlu0 %792
      %794 = vrot.lane.b32.xlu0 %v777, 110
      %v795 = vpop.permute.xlu0 %794
      %v796 = vsel %vm305, %v785, %v787
      %v797 = vsel %vm305, %v787, %v789
      %v798 = vsel %vm305, %v791, %v793
      %v799 = vsel %vm305, %v793, %v795
      %806 = vst [vmem:[#allocation4 + $0x90] sm:$0xff] %v796
      %807 = vst [vmem:[#allocation4 + $0x98] sm:$0xff] %v797
      %808 = vst.msk [vmem:[#allocation4 + $0xa0] sm:$0xff] %vm687, %v789
      %809 = vst [vmem:[#allocation4 + $0xa8] sm:$0xff] %v798
      %810 = vst [vmem:[#allocation4 + $0xb0] sm:$0xff] %v799
      %811 = vst.msk [vmem:[#allocation4 + $0xb8] sm:$0xff] %vm687, %v795
      %v812 = vld [vmem:[#allocation3] sm:$0xff]
      %v813 = vld [vmem:[#allocation3 + $0x8] sm:$0xff]
      %v814 = vld [vmem:[#allocation3 + $0x10] sm:$0xff]
      %v815 = vld [vmem:[#allocation3 + $0x18] sm:$0xff]
      %v816 = vld [vmem:[#allocation3 + $0x20] sm:$0xff]
      %v817 = vld [vmem:[#allocation3 + $0x28] sm:$0xff]
      %824 = vrot.lane.b32.xlu0 %v812, 109
      %v825 = vpop.permute.xlu0 %824
      %826 = vrot.lane.b32.xlu0 %v813, 109
      %v827 = vpop.permute.xlu0 %826
      %828 = vrot.lane.b32.xlu0 %v814, 109
      %v829 = vpop.permute.xlu0 %828
      %830 = vrot.lane.b32.xlu0 %v815, 109
      %v831 = vpop.permute.xlu0 %830
      %832 = vrot.lane.b32.xlu0 %v816, 109
      %v833 = vpop.permute.xlu0 %832
      %834 = vrot.lane.b32.xlu0 %v817, 109
      %v835 = vpop.permute.xlu0 %834
      %v836 = vsel %vm326, %v825, %v827
      %v837 = vsel %vm326, %v827, %v829
      %v838 = vsel %vm326, %v831, %v833
      %v839 = vsel %vm326, %v833, %v835
      %846 = vst [vmem:[#allocation4 + $0xc0] sm:$0xff] %v836
      %847 = vst [vmem:[#allocation4 + $0xc8] sm:$0xff] %v837
      %848 = vst.msk [vmem:[#allocation4 + $0xd0] sm:$0xff] %vm687, %v829
      %849 = vst [vmem:[#allocation4 + $0xd8] sm:$0xff] %v838
      %850 = vst [vmem:[#allocation4 + $0xe0] sm:$0xff] %v839
      %851 = vst.msk [vmem:[#allocation4 + $0xe8] sm:$0xff] %vm687, %v835
      %v852 = vld [vmem:[#allocation3] sm:$0xff]
      %v853 = vld [vmem:[#allocation3 + $0x8] sm:$0xff]
      %v854 = vld [vmem:[#allocation3 + $0x10] sm:$0xff]
      %v855 = vld [vmem:[#allocation3 + $0x18] sm:$0xff]
      %v856 = vld [vmem:[#allocation3 + $0x20] sm:$0xff]
      %v857 = vld [vmem:[#allocation3 + $0x28] sm:$0xff]
      %864 = vrot.lane.b32.xlu0 %v852, 108
      %v865 = vpop.permute.xlu0 %864
      %866 = vrot.lane.b32.xlu0 %v853, 108
      %v867 = vpop.permute.xlu0 %866
      %868 = vrot.lane.b32.xlu0 %v854, 108
      %v869 = vpop.permute.xlu0 %868
      %870 = vrot.lane.b32.xlu0 %v855, 108
      %v871 = vpop.permute.xlu0 %870
      %872 = vrot.lane.b32.xlu0 %v856, 108
      %v873 = vpop.permute.xlu0 %872
      %874 = vrot.lane.b32.xlu0 %v857, 108
      %v875 = vpop.permute.xlu0 %874
      %v876 = vsel %vm350, %v865, %v867
      %v877 = vsel %vm350, %v867, %v869
      %v878 = vsel %vm350, %v871, %v873
      %v879 = vsel %vm350, %v873, %v875
      %886 = vst [vmem:[#allocation4 + $0xf0] sm:$0xff] %v876
      %887 = vst [vmem:[#allocation4 + $0xf8] sm:$0xff] %v877
      %888 = vst.msk [vmem:[#allocation4 + $0x100] sm:$0xff] %vm687, %v869
      %889 = vst [vmem:[#allocation4 + $0x108] sm:$0xff] %v878
      %890 = vst [vmem:[#allocation4 + $0x110] sm:$0xff] %v879
      %891 = vst.msk [vmem:[#allocation4 + $0x118] sm:$0xff] %vm687, %v875
      %v892 = vld [vmem:[#allocation3] sm:$0xff]
      %v893 = vld [vmem:[#allocation3 + $0x8] sm:$0xff]
      %v894 = vld [vmem:[#allocation3 + $0x10] sm:$0xff]
      %v895 = vld [vmem:[#allocation3 + $0x18] sm:$0xff]
      %v896 = vld [vmem:[#allocation3 + $0x20] sm:$0xff]
      %v897 = vld [vmem:[#allocation3 + $0x28] sm:$0xff]
      %904 = vrot.lane.b32.xlu0 %v892, 92
      %v905 = vpop.permute.xlu0 %904
      %906 = vrot.lane.b32.xlu0 %v893, 92
      %v907 = vpop.permute.xlu0 %906
      %908 = vrot.lane.b32.xlu0 %v894, 92
      %v909 = vpop.permute.xlu0 %908
      %910 = vrot.lane.b32.xlu0 %v895, 92
      %v911 = vpop.permute.xlu0 %910
      %912 = vrot.lane.b32.xlu0 %v896, 92
      %v913 = vpop.permute.xlu0 %912
      %914 = vrot.lane.b32.xlu0 %v897, 92
      %v915 = vpop.permute.xlu0 %914
      %v916 = vsel %vm371, %v905, %v907
      %v917 = vsel %vm371, %v907, %v909
      %v918 = vsel %vm371, %v911, %v913
      %v919 = vsel %vm371, %v913, %v915
      %926 = vst [vmem:[#allocation4 + $0x120] sm:$0xff] %v916
      %927 = vst [vmem:[#allocation4 + $0x128] sm:$0xff] %v917
      %928 = vst.msk [vmem:[#allocation4 + $0x130] sm:$0xff] %vm687, %v909
      %929 = vst [vmem:[#allocation4 + $0x138] sm:$0xff] %v918
      %930 = vst [vmem:[#allocation4 + $0x140] sm:$0xff] %v919
      %931 = vst.msk [vmem:[#allocation4 + $0x148] sm:$0xff] %vm687, %v915
      %v932 = vld [vmem:[#allocation3] sm:$0xff]
      %v933 = vld [vmem:[#allocation3 + $0x8] sm:$0xff]
      %v934 = vld [vmem:[#allocation3 + $0x10] sm:$0xff]
      %v935 = vld [vmem:[#allocation3 + $0x18] sm:$0xff]
      %v936 = vld [vmem:[#allocation3 + $0x20] sm:$0xff]
      %v937 = vld [vmem:[#allocation3 + $0x28] sm:$0xff]
      %944 = vrot.lane.b32.xlu0 %v932, 91
      %v945 = vpop.permute.xlu0 %944
      %946 = vrot.lane.b32.xlu0 %v933, 91
      %v947 = vpop.permute.xlu0 %946
      %948 = vrot.lane.b32.xlu0 %v934, 91
      %v949 = vpop.permute.xlu0 %948
      %950 = vrot.lane.b32.xlu0 %v935, 91
      %v951 = vpop.permute.xlu0 %950
      %952 = vrot.lane.b32.xlu0 %v936, 91
      %v953 = vpop.permute.xlu0 %952
      %954 = vrot.lane.b32.xlu0 %v937, 91
      %v955 = vpop.permute.xlu0 %954
      %v956 = vsel %vm395, %v945, %v947
      %v957 = vsel %vm395, %v947, %v949
      %v958 = vsel %vm395, %v951, %v953
      %v959 = vsel %vm395, %v953, %v955
      %966 = vst [vmem:[#allocation4 + $0x150] sm:$0xff] %v956
      %967 = vst [vmem:[#allocation4 + $0x158] sm:$0xff] %v957
      %968 = vst.msk [vmem:[#allocation4 + $0x160] sm:$0xff] %vm687, %v949
      %969 = vst [vmem:[#allocation4 + $0x168] sm:$0xff] %v958
      %970 = vst [vmem:[#allocation4 + $0x170] sm:$0xff] %v959
      %971 = vst.msk [vmem:[#allocation4 + $0x178] sm:$0xff] %vm687, %v955
      %v972 = vld [vmem:[#allocation3] sm:$0xff]
      %v973 = vld [vmem:[#allocation3 + $0x8] sm:$0xff]
      %v974 = vld [vmem:[#allocation3 + $0x10] sm:$0xff]
      %v975 = vld [vmem:[#allocation3 + $0x18] sm:$0xff]
      %v976 = vld [vmem:[#allocation3 + $0x20] sm:$0xff]
      %v977 = vld [vmem:[#allocation3 + $0x28] sm:$0xff]
      %984 = vrot.lane.b32.xlu0 %v972, 90
      %v985 = vpop.permute.xlu0 %984
      %986 = vrot.lane.b32.xlu0 %v973, 90
      %v987 = vpop.permute.xlu0 %986
      %988 = vrot.lane.b32.xlu0 %v974, 90
      %v989 = vpop.permute.xlu0 %988
      %990 = vrot.lane.b32.xlu0 %v975, 90
      %v991 = vpop.permute.xlu0 %990
      %992 = vrot.lane.b32.xlu0 %v976, 90
      %v993 = vpop.permute.xlu0 %992
      %994 = vrot.lane.b32.xlu0 %v977, 90
      %v995 = vpop.permute.xlu0 %994
      %v996 = vsel %vm416, %v985, %v987
      %v997 = vsel %vm416, %v987, %v989
      %v998 = vsel %vm416, %v991, %v993
      %v999 = vsel %vm416, %v993, %v995
      %1006 = vst [vmem:[#allocation4 + $0x180] sm:$0xff] %v996
      %1007 = vst [vmem:[#allocation4 + $0x188] sm:$0xff] %v997
      %1008 = vst.msk [vmem:[#allocation4 + $0x190] sm:$0xff] %vm687, %v989
      %1009 = vst [vmem:[#allocation4 + $0x198] sm:$0xff] %v998
      %1010 = vst [vmem:[#allocation4 + $0x1a0] sm:$0xff] %v999
      %1011 = vst.msk [vmem:[#allocation4 + $0x1a8] sm:$0xff] %vm687, %v995
      %s1012 = scalar_lea.vmem %s2, 48
      %v1013 = vld [vmem:[%s1012] sm:$0xff]
      %v1014 = vld [vmem:[%s1012 + $0x8] sm:$0xf]
      %v1015 = vld [vmem:[%s1012 + $0xc] sm:$0xff]
      %v1016 = vld [vmem:[%s1012 + $0x14] sm:$0xf]
      %v1017 = vld [vmem:[%s1012 + $0x18] sm:$0xff]
      %v1018 = vld [vmem:[%s1012 + $0x20] sm:$0xf]
      %v1019 = vld [vmem:[%s1012 + $0x24] sm:$0xff]
      %v1020 = vld [vmem:[%s1012 + $0x2c] sm:$0xf]
      %v1021 = vld [vmem:[#allocation4] sm:$0xff]
      %v1022 = vld [vmem:[#allocation4 + $0x8] sm:$0xff]
      %v1023 = vld [vmem:[#allocation4 + $0x10] sm:$0xff]
      %v1024 = vld [vmem:[#allocation4 + $0x18] sm:$0xff]
      %v1025 = vld [vmem:[#allocation4 + $0x20] sm:$0xff]
      %v1026 = vld [vmem:[#allocation4 + $0x28] sm:$0xff]
      %v1027 = vld [vmem:[#allocation4 + $0x30] sm:$0xff]
      %v1028 = vld [vmem:[#allocation4 + $0x38] sm:$0xff]
      %v1029 = vld [vmem:[#allocation4 + $0x40] sm:$0xff]
      %v1030 = vld [vmem:[#allocation4 + $0x48] sm:$0xff]
      %v1031 = vld [vmem:[#allocation4 + $0x50] sm:$0xff]
      %v1032 = vld [vmem:[#allocation4 + $0x58] sm:$0xff]
      %v1033 = vld [vmem:[#allocation4 + $0x60] sm:$0xff]
      %v1034 = vld [vmem:[#allocation4 + $0x68] sm:$0xff]
      %v1035 = vld [vmem:[#allocation4 + $0x70] sm:$0xff]
      %v1036 = vld [vmem:[#allocation4 + $0x78] sm:$0xff]
      %v1037 = vld [vmem:[#allocation4 + $0x80] sm:$0xff]
      %v1038 = vld [vmem:[#allocation4 + $0x88] sm:$0xff]
      %v1039 = vld [vmem:[#allocation4 + $0x90] sm:$0xff]
      %v1040 = vld [vmem:[#allocation4 + $0x98] sm:$0xff]
      %v1041 = vld [vmem:[#allocation4 + $0xa0] sm:$0xff]
      %v1042 = vld [vmem:[#allocation4 + $0xa8] sm:$0xff]
      %v1043 = vld [vmem:[#allocation4 + $0xb0] sm:$0xff]
      %v1044 = vld [vmem:[#allocation4 + $0xb8] sm:$0xff]
      %v1045 = vld [vmem:[#allocation4 + $0xc0] sm:$0xff]
      %v1046 = vld [vmem:[#allocation4 + $0xc8] sm:$0xff]
      %v1047 = vld [vmem:[#allocation4 + $0xd0] sm:$0xff]
      %v1048 = vld [vmem:[#allocation4 + $0xd8] sm:$0xff]
      %v1049 = vld [vmem:[#allocation4 + $0xe0] sm:$0xff]
      %v1050 = vld [vmem:[#allocation4 + $0xe8] sm:$0xff]
      %v1051 = vld [vmem:[#allocation4 + $0xf0] sm:$0xff]
      %v1052 = vld [vmem:[#allocation4 + $0xf8] sm:$0xff]
      %v1053 = vld [vmem:[#allocation4 + $0x100] sm:$0xff]
      %v1054 = vld [vmem:[#allocation4 + $0x108] sm:$0xff]
      %v1055 = vld [vmem:[#allocation4 + $0x110] sm:$0xff]
      %v1056 = vld [vmem:[#allocation4 + $0x118] sm:$0xff]
      %v1057 = vld [vmem:[#allocation4 + $0x120] sm:$0xff]
      %v1058 = vld [vmem:[#allocation4 + $0x128] sm:$0xff]
      %v1059 = vld [vmem:[#allocation4 + $0x130] sm:$0xff]
      %v1060 = vld [vmem:[#allocation4 + $0x138] sm:$0xff]
      %v1061 = vld [vmem:[#allocation4 + $0x140] sm:$0xff]
      %v1062 = vld [vmem:[#allocation4 + $0x148] sm:$0xff]
      %v1063 = vld [vmem:[#allocation4 + $0x150] sm:$0xff]
      %v1064 = vld [vmem:[#allocation4 + $0x158] sm:$0xff]
      %v1065 = vld [vmem:[#allocation4 + $0x160] sm:$0xff]
      %v1066 = vld [vmem:[#allocation4 + $0x168] sm:$0xff]
      %v1067 = vld [vmem:[#allocation4 + $0x170] sm:$0xff]
      %v1068 = vld [vmem:[#allocation4 + $0x178] sm:$0xff]
      %v1069 = vld [vmem:[#allocation4 + $0x180] sm:$0xff]
      %v1070 = vld [vmem:[#allocation4 + $0x188] sm:$0xff]
      %v1071 = vld [vmem:[#allocation4 + $0x190] sm:$0xff]
      %v1072 = vld [vmem:[#allocation4 + $0x198] sm:$0xff]
      %v1073 = vld [vmem:[#allocation4 + $0x1a0] sm:$0xff]
      %v1074 = vld [vmem:[#allocation4 + $0x1a8] sm:$0xff]
      %s1075 = scalar_lea.vmem %s3, 32
      %v1076 = vld [vmem:[%s1075] sm:$0xff]
      %v1077 = vld [vmem:[%s1075 + $0x8] sm:$0xff]
      %v1078 = vld [vmem:[%s1075 + $0x10] sm:$0xff]
      %v1079 = vld [vmem:[%s1075 + $0x18] sm:$0xff]
      %1081 = vset.pattern.permute.xlu0 0
      %1082 = vperm.xlu0 %1081, %v1076
      %v1083 = vpop.permute.xlu0 %1082
      %1086 = vset.pattern.permute.xlu0 0
      %1087 = vperm.xlu0 %1086, %v1077
      %v1088 = vpop.permute.xlu0 %1087
      %1091 = vset.pattern.permute.xlu0 0
      %1092 = vperm.xlu0 %1091, %v1078
      %v1093 = vpop.permute.xlu0 %1092
      %1096 = vset.pattern.permute.xlu0 0
      %1097 = vperm.xlu0 %1096, %v1079
      %v1098 = vpop.permute.xlu0 %1097
      %v1108 = vunpack.c.l.b16 %v1013
      %v1109 = vunpack.c.h.b16 %v1013
      %v1110 = vunpack.c.l.b16 %v1014
      %v1111 = vunpack.c.l.b16 %v1015
      %v1112 = vunpack.c.h.b16 %v1015
      %v1113 = vunpack.c.l.b16 %v1016
      %v1114 = vunpack.c.l.b16 %v1017
      %v1115 = vunpack.c.h.b16 %v1017
      %v1116 = vunpack.c.l.b16 %v1018
      %v1117 = vunpack.c.l.b16 %v1019
      %v1118 = vunpack.c.h.b16 %v1019
      %v1119 = vunpack.c.l.b16 %v1020
      %v1120 = vpack.c.b16 %v1111, %v1108
      %v1121 = vpack.c.b16 %v1112, %v1109
      %v1122 = vpack.c.b16 %v1113, %v1110
      %v1123 = vpack.c.b16 %v1117, %v1114
      %v1124 = vpack.c.b16 %v1118, %v1115
      %v1125 = vpack.c.b16 %v1119, %v1116
      %vm1130 = vcmask 261120
      %v1132 = vsel %vm1130, %v1122, 0
      %v1135 = vsel %vm1130, %v1125, 0
      %1137 = vmatprep.subr.bf16.mxu0 %v1022
      %1138 = vmatpush1.bf16.msra.mxu0 %v1021
      %1139 = vmatprep.subr.bf16.mxu0 %v1025
      %1140 = vmatpush1.bf16.msra.mxu0 %v1024
      %1141 = vmatprep.subr.bf16.mxu0 %v1028
      %1142 = vmatpush1.bf16.msra.mxu0 %v1027
      %1143 = vmatprep.subr.bf16.mxu0 %v1031
      %1144 = vmatpush1.bf16.msra.mxu0 %v1030
      %1145 = vmatprep.subr.bf16.mxu0 %v1034
      %1146 = vmatpush1.bf16.msra.mxu0 %v1033
      %1147 = vmatprep.subr.bf16.mxu0 %v1037
      %1148 = vmatpush1.bf16.msra.mxu0 %v1036
      %1149 = vmatprep.subr.bf16.mxu0 %v1040
      %1150 = vmatpush1.bf16.msra.mxu0 %v1039
      %1151 = vmatprep.subr.bf16.mxu0 %v1043
      %1152 = vmatpush1.bf16.msra.mxu0 %v1042
      %1153 = vmatprep.subr.bf16.mxu0 %v1046
      %1154 = vmatpush1.bf16.msra.mxu0 %v1045
      %1155 = vmatprep.subr.bf16.mxu0 %v1049
      %1156 = vmatpush1.bf16.msra.mxu0 %v1048
      %1157 = vmatprep.subr.bf16.mxu0 %v1052
      %1158 = vmatpush1.bf16.msra.mxu0 %v1051
      %1159 = vmatprep.subr.bf16.mxu0 %v1055
      %1160 = vmatpush1.bf16.msra.mxu0 %v1054
      %1161 = vmatprep.subr.bf16.mxu0 %v1058
      %1162 = vmatpush1.bf16.msra.mxu0 %v1057
      %1163 = vmatprep.subr.bf16.mxu0 %v1061
      %1164 = vmatpush1.bf16.msra.mxu0 %v1060
      %1165 = vmatprep.subr.bf16.mxu0 %v1064
      %1166 = vmatpush1.bf16.msra.mxu0 %v1063
      %1167 = vmatprep.subr.bf16.mxu0 %v1067
      %1168 = vmatpush1.bf16.msra.mxu0 %v1066
      %1169 = vmatprep.mubr.bf16.mxu0 %v1121
      %1170 = vmatmul.mubr.bf16.gmra.mrb[0].mxu0 %v1120
      %v1171 = vpop.f32.mrb[0].mxu0
      %v1172 = vadd.f32 %v1083, %v1171
      %v1173 = vpop.f32.mrb[0].mxu0
      %v1174 = vadd.f32 %v1083, %v1173
      %v1175 = vpop.f32.mrb[0].mxu0
      %v1176 = vadd.f32 %v1088, %v1175
      %v1177 = vpop.f32.mrb[0].mxu0
      %v1178 = vadd.f32 %v1088, %v1177
      %1179 = vmatprep.mubr.bf16.mxu0 %v1124
      %1180 = vmatmul.mubr.bf16.gmra.mrb[0].mxu0 %v1123
      %v1181 = vpop.f32.mrb[0].mxu0
      %v1182 = vadd.f32 %v1093, %v1181
      %v1183 = vpop.f32.mrb[0].mxu0
      %v1184 = vadd.f32 %v1093, %v1183
      %v1185 = vpop.f32.mrb[0].mxu0
      %v1186 = vadd.f32 %v1098, %v1185
      %v1187 = vpop.f32.mrb[0].mxu0
      %v1188 = vadd.f32 %v1098, %v1187
      %1189 = vdwg.mxu0
      %1190 = vmatprep.subr.bf16.mxu0 %v1070
      %1191 = vmatpush1.bf16.msra.mxu0 %v1069
      %1192 = vmatprep.subr.bf16.mxu0 %v1073
      %1193 = vmatpush1.bf16.msra.mxu0 %v1072
      %1194 = vmatprep.subr.bf16.mxu0 0
      %1195 = vmatpush1.bf16.msra.mxu0 0
      %1196 = vmatprep.subr.bf16.mxu0 0
      %1197 = vmatpush1.bf16.msra.mxu0 0
      %1198 = vmatprep.subr.bf16.mxu0 0
      %1199 = vmatpush1.bf16.msra.mxu0 0
      %1200 = vmatprep.subr.bf16.mxu0 0
      %1201 = vmatpush1.bf16.msra.mxu0 0
      %1202 = vmatprep.subr.bf16.mxu0 0
      %1203 = vmatpush1.bf16.msra.mxu0 0
      %1204 = vmatprep.subr.bf16.mxu0 0
      %1205 = vmatpush1.bf16.msra.mxu0 0
      %1206 = vmatprep.subr.bf16.mxu0 0
      %1207 = vmatpush1.bf16.msra.mxu0 0
      %1208 = vmatprep.subr.bf16.mxu0 0
      %1209 = vmatpush1.bf16.msra.mxu0 0
      %1210 = vmatprep.subr.bf16.mxu0 0
      %1211 = vmatpush1.bf16.msra.mxu0 0
      %1212 = vmatprep.subr.bf16.mxu0 0
      %1213 = vmatpush1.bf16.msra.mxu0 0
      %1214 = vmatprep.subr.bf16.mxu0 0
      %1215 = vmatpush1.bf16.msra.mxu0 0
      %1216 = vmatprep.subr.bf16.mxu0 0
      %1217 = vmatpush1.bf16.msra.mxu0 0
      %1218 = vmatprep.subr.bf16.mxu0 0
      %1219 = vmatpush1.bf16.msra.mxu0 0
      %1220 = vmatprep.subr.bf16.mxu0 0
      %1221 = vmatpush1.bf16.msra.mxu0 0
      %1222 = vmatprep.mubr.bf16.mxu0 0
      %1223 = vmatmul.mubr.bf16.gmra.mrb[0].mxu0 %v1132
      %v1224 = vpop.f32.mrb[0].mxu0
      %v1225 = vadd.f32 %v1172, %v1224
      %v1226 = vpop.f32.mrb[0].mxu0
      %v1227 = vadd.f32 %v1174, %v1226
      %v1228 = vpop.f32.mrb[0].mxu0
      %v1229 = vadd.f32 %v1176, %v1228
      %v1230 = vpop.f32.mrb[0].mxu0
      %v1231 = vadd.f32 %v1178, %v1230
      %1232 = vmatprep.mubr.bf16.mxu0 0
      %1233 = vmatmul.mubr.bf16.gmra.mrb[0].mxu0 %v1135
      %v1234 = vpop.f32.mrb[0].mxu0
      %v1235 = vadd.f32 %v1182, %v1234
      %v1236 = vpop.f32.mrb[0].mxu0
      %v1237 = vadd.f32 %v1184, %v1236
      %v1238 = vpop.f32.mrb[0].mxu0
      %v1239 = vadd.f32 %v1186, %v1238
      %v1240 = vpop.f32.mrb[0].mxu0
      %v1241 = vadd.f32 %v1188, %v1240
      %1242 = vdwg.mxu0
      %1243 = vmatprep.subr.bf16.mxu0 0
      %1244 = vmatpush1.bf16.msra.mxu0 %v1023
      %1245 = vmatprep.subr.bf16.mxu0 0
      %1246 = vmatpush1.bf16.msra.mxu0 %v1026
      %1247 = vmatprep.subr.bf16.mxu0 0
      %1248 = vmatpush1.bf16.msra.mxu0 %v1029
      %1249 = vmatprep.subr.bf16.mxu0 0
      %1250 = vmatpush1.bf16.msra.mxu0 %v1032
      %1251 = vmatprep.subr.bf16.mxu0 0
      %1252 = vmatpush1.bf16.msra.mxu0 %v1035
      %1253 = vmatprep.subr.bf16.mxu0 0
      %1254 = vmatpush1.bf16.msra.mxu0 %v1038
      %1255 = vmatprep.subr.bf16.mxu0 0
      %1256 = vmatpush1.bf16.msra.mxu0 %v1041
      %1257 = vmatprep.subr.bf16.mxu0 0
      %1258 = vmatpush1.bf16.msra.mxu0 %v1044
      %1259 = vmatprep.subr.bf16.mxu0 0
      %1260 = vmatpush1.bf16.msra.mxu0 %v1047
      %1261 = vmatprep.subr.bf16.mxu0 0
      %1262 = vmatpush1.bf16.msra.mxu0 %v1050
      %1263 = vmatprep.subr.bf16.mxu0 0
      %1264 = vmatpush1.bf16.msra.mxu0 %v1053
      %1265 = vmatprep.subr.bf16.mxu0 0
      %1266 = vmatpush1.bf16.msra.mxu0 %v1056
      %1267 = vmatprep.subr.bf16.mxu0 0
      %1268 = vmatpush1.bf16.msra.mxu0 %v1059
      %1269 = vmatprep.subr.bf16.mxu0 0
      %1270 = vmatpush1.bf16.msra.mxu0 %v1062
      %1271 = vmatprep.subr.bf16.mxu0 0
      %1272 = vmatpush1.bf16.msra.mxu0 %v1065
      %1273 = vmatprep.subr.bf16.mxu0 0
      %1274 = vmatpush1.bf16.msra.mxu0 %v1068
      %1275 = vmatprep.mubr.bf16.mxu0 %v1121
      %1276 = vmatmul.mubr.bf16.gmra.mrb[0].mxu0 %v1120
      %v1277 = vpop.f32.mrb[0].mxu0
      %v1278 = vadd.f32 %v1083, %v1277
      %v1279 = vpop.f32.mrb[0].mxu0
      %v1280 = vpop.f32.mrb[0].mxu0
      %v1281 = vadd.f32 %v1088, %v1280
      %v1282 = vpop.f32.mrb[0].mxu0
      %1283 = vmatprep.mubr.bf16.mxu0 %v1124
      %1284 = vmatmul.mubr.bf16.gmra.mrb[0].mxu0 %v1123
      %v1285 = vpop.f32.mrb[0].mxu0
      %v1286 = vadd.f32 %v1093, %v1285
      %v1287 = vpop.f32.mrb[0].mxu0
      %v1288 = vpop.f32.mrb[0].mxu0
      %v1289 = vadd.f32 %v1098, %v1288
      %v1290 = vpop.f32.mrb[0].mxu0
      %1291 = vdwg.mxu0
      %1292 = vmatprep.subr.bf16.mxu0 0
      %1293 = vmatpush1.bf16.msra.mxu0 %v1071
      %1294 = vmatprep.subr.bf16.mxu0 0
      %1295 = vmatpush1.bf16.msra.mxu0 %v1074
      %1296 = vmatprep.subr.bf16.mxu0 0
      %1297 = vmatpush1.bf16.msra.mxu0 0
      %1298 = vmatprep.subr.bf16.mxu0 0
      %1299 = vmatpush1.bf16.msra.mxu0 0
      %1300 = vmatprep.subr.bf16.mxu0 0
      %1301 = vmatpush1.bf16.msra.mxu0 0
      %1302 = vmatprep.subr.bf16.mxu0 0
      %1303 = vmatpush1.bf16.msra.mxu0 0
      %1304 = vmatprep.subr.bf16.mxu0 0
      %1305 = vmatpush1.bf16.msra.mxu0 0
      %1306 = vmatprep.subr.bf16.mxu0 0
      %1307 = vmatpush1.bf16.msra.mxu0 0
      %1308 = vmatprep.subr.bf16.mxu0 0
      %1309 = vmatpush1.bf16.msra.mxu0 0
      %1310 = vmatprep.subr.bf16.mxu0 0
      %1311 = vmatpush1.bf16.msra.mxu0 0
      %1312 = vmatprep.subr.bf16.mxu0 0
      %1313 = vmatpush1.bf16.msra.mxu0 0
      %1314 = vmatprep.subr.bf16.mxu0 0
      %1315 = vmatpush1.bf16.msra.mxu0 0
      %1316 = vmatprep.subr.bf16.mxu0 0
      %1317 = vmatpush1.bf16.msra.mxu0 0
      %1318 = vmatprep.subr.bf16.mxu0 0
      %1319 = vmatpush1.bf16.msra.mxu0 0
      %1320 = vmatprep.subr.bf16.mxu0 0
      %1321 = vmatpush1.bf16.msra.mxu0 0
      %1322 = vmatprep.subr.bf16.mxu0 0
      %1323 = vmatpush1.bf16.msra.mxu0 0
      %1324 = vmatprep.mubr.bf16.mxu0 0
      %1325 = vmatmul.mubr.bf16.gmra.mrb[0].mxu0 %v1132
      %v1326 = vpop.f32.mrb[0].mxu0
      %v1327 = vadd.f32 %v1278, %v1326
      %v1328 = vpop.f32.mrb[0].mxu0
      %v1329 = vpop.f32.mrb[0].mxu0
      %v1330 = vadd.f32 %v1281, %v1329
      %v1331 = vpop.f32.mrb[0].mxu0
      %1332 = vmatprep.mubr.bf16.mxu0 0
      %1333 = vmatmul.mubr.bf16.gmra.mrb[0].mxu0 %v1135
      %v1334 = vpop.f32.mrb[0].mxu0
      %v1335 = vadd.f32 %v1286, %v1334
      %v1336 = vpop.f32.mrb[0].mxu0
      %v1337 = vpop.f32.mrb[0].mxu0
      %v1338 = vadd.f32 %v1289, %v1337
      %v1339 = vpop.f32.mrb[0].mxu0
      %1340 = vdwg.mxu0
      %v1341 = vmax.f32 %v1225, 0.0
      %v1342 = vmax.f32 %v1227, 0.0
      %v1343 = vmax.f32 %v1327, 0.0
      %v1344 = vmax.f32 %v1229, 0.0
      %v1345 = vmax.f32 %v1231, 0.0
      %v1346 = vmax.f32 %v1330, 0.0
      %v1347 = vmax.f32 %v1235, 0.0
      %v1348 = vmax.f32 %v1237, 0.0
      %v1349 = vmax.f32 %v1335, 0.0
      %v1350 = vmax.f32 %v1239, 0.0
      %v1351 = vmax.f32 %v1241, 0.0
      %v1352 = vmax.f32 %v1338, 0.0
      %v1353 = vmul.f32 %v1341, %v613
      %v1354 = vmul.f32 %v1342, %v617
      %v1355 = vmul.f32 %v1343, %v621
      %v1356 = vmul.f32 %v1344, %v613
      %v1357 = vmul.f32 %v1345, %v617
      %v1358 = vmul.f32 %v1346, %v621
      %v1359 = vmul.f32 %v1347, %v613
      %v1360 = vmul.f32 %v1348, %v617
      %v1361 = vmul.f32 %v1349, %v621
      %v1362 = vmul.f32 %v1350, %v613
      %v1363 = vmul.f32 %v1351, %v617
      %v1364 = vmul.f32 %v1352, %v621
      %v1365 = vpack.c.bf16 %v1356, %v1353
      %v1366 = vpack.c.bf16 %v1357, %v1354
      %v1367 = vpack.c.bf16 %v1358, %v1355
      %v1368 = vpack.c.bf16 %v1362, %v1359
      %v1369 = vpack.c.bf16 %v1363, %v1360
      %v1370 = vpack.c.bf16 %v1364, %v1361
      %1377 = vrot.lane.b32.xlu0 %v1365, 19
      %v1378 = vpop.permute.xlu0 %1377
      %1379 = vrot.lane.b32.xlu0 %v1366, 19
      %v1380 = vpop.permute.xlu0 %1379
      %1381 = vrot.lane.b32.xlu0 %v1367, 19
      %v1382 = vpop.permute.xlu0 %1381
      %1383 = vrot.lane.b32.xlu0 %v1368, 19
      %v1384 = vpop.permute.xlu0 %1383
      %1385 = vrot.lane.b32.xlu0 %v1369, 19
      %v1386 = vpop.permute.xlu0 %1385
      %1387 = vrot.lane.b32.xlu0 %v1370, 19
      %v1388 = vpop.permute.xlu0 %1387
      %v1389 = vsel %vm225, %v1378, %v1380
      %v1390 = vsel %vm225, %v1380, %v1382
      %v1391 = vsel %vm225, %v1384, %v1386
      %v1392 = vsel %vm225, %v1386, %v1388
      %1399 = vst.msk [vmem:[#allocation2] sm:$0xff] %vm671, %v1378
      %1400 = vst [vmem:[#allocation2 + $0x8] sm:$0xff] %v1389
      %1401 = vst.msk [vmem:[#allocation2 + $0x10] sm:$0xff] %vm674, %v1390
      %1402 = vst.msk [vmem:[#allocation2 + $0x18] sm:$0xff] %vm671, %v1384
      %1403 = vst [vmem:[#allocation2 + $0x20] sm:$0xff] %v1391
      %1404 = vst.msk [vmem:[#allocation2 + $0x28] sm:$0xff] %vm674, %v1392
      %v1405 = vld [vmem:[#allocation2] sm:$0xff]
      %v1406 = vld [vmem:[#allocation2 + $0x8] sm:$0xff]
      %v1407 = vld [vmem:[#allocation2 + $0x10] sm:$0xff]
      %v1408 = vld [vmem:[#allocation2 + $0x18] sm:$0xff]
      %v1409 = vld [vmem:[#allocation2 + $0x20] sm:$0xff]
      %v1410 = vld [vmem:[#allocation2 + $0x28] sm:$0xff]
      %1411 = vst [vmem:[#allocation4] sm:$0xff] %v1405
      %1412 = vst [vmem:[#allocation4 + $0x8] sm:$0xff] %v1406
      %1413 = vst.msk [vmem:[#allocation4 + $0x10] sm:$0xff] %vm687, %v1407
      %1414 = vst [vmem:[#allocation4 + $0x18] sm:$0xff] %v1408
      %1415 = vst [vmem:[#allocation4 + $0x20] sm:$0xff] %v1409
      %1416 = vst.msk [vmem:[#allocation4 + $0x28] sm:$0xff] %vm687, %v1410
      %v1417 = vld [vmem:[#allocation2] sm:$0xff]
      %v1418 = vld [vmem:[#allocation2 + $0x8] sm:$0xff]
      %v1419 = vld [vmem:[#allocation2 + $0x10] sm:$0xff]
      %v1420 = vld [vmem:[#allocation2 + $0x18] sm:$0xff]
      %v1421 = vld [vmem:[#allocation2 + $0x20] sm:$0xff]
      %v1422 = vld [vmem:[#allocation2 + $0x28] sm:$0xff]
      %1429 = vrot.lane.b32.xlu0 %v1417, 127
      %v1430 = vpop.permute.xlu0 %1429
      %1431 = vrot.lane.b32.xlu0 %v1418, 127
      %v1432 = vpop.permute.xlu0 %1431
      %1433 = vrot.lane.b32.xlu0 %v1419, 127
      %v1434 = vpop.permute.xlu0 %1433
      %1435 = vrot.lane.b32.xlu0 %v1420, 127
      %v1436 = vpop.permute.xlu0 %1435
      %1437 = vrot.lane.b32.xlu0 %v1421, 127
      %v1438 = vpop.permute.xlu0 %1437
      %1439 = vrot.lane.b32.xlu0 %v1422, 127
      %v1440 = vpop.permute.xlu0 %1439
      %v1441 = vsel %vm259, %v1430, %v1432
      %v1442 = vsel %vm259, %v1432, %v1434
      %v1443 = vsel %vm259, %v1436, %v1438
      %v1444 = vsel %vm259, %v1438, %v1440
      %1451 = vst [vmem:[#allocation4 + $0x30] sm:$0xff] %v1441
      %1452 = vst [vmem:[#allocation4 + $0x38] sm:$0xff] %v1442
      %1453 = vst.msk [vmem:[#allocation4 + $0x40] sm:$0xff] %vm687, %v1434
      %1454 = vst [vmem:[#allocation4 + $0x48] sm:$0xff] %v1443
      %1455 = vst [vmem:[#allocation4 + $0x50] sm:$0xff] %v1444
      %1456 = vst.msk [vmem:[#allocation4 + $0x58] sm:$0xff] %vm687, %v1440
      %v1457 = vld [vmem:[#allocation2] sm:$0xff]
      %v1458 = vld [vmem:[#allocation2 + $0x8] sm:$0xff]
      %v1459 = vld [vmem:[#allocation2 + $0x10] sm:$0xff]
      %v1460 = vld [vmem:[#allocation2 + $0x18] sm:$0xff]
      %v1461 = vld [vmem:[#allocation2 + $0x20] sm:$0xff]
      %v1462 = vld [vmem:[#allocation2 + $0x28] sm:$0xff]
      %1469 = vrot.lane.b32.xlu0 %v1457, 126
      %v1470 = vpop.permute.xlu0 %1469
      %1471 = vrot.lane.b32.xlu0 %v1458, 126
      %v1472 = vpop.permute.xlu0 %1471
      %1473 = vrot.lane.b32.xlu0 %v1459, 126
      %v1474 = vpop.permute.xlu0 %1473
      %1475 = vrot.lane.b32.xlu0 %v1460, 126
      %v1476 = vpop.permute.xlu0 %1475
      %1477 = vrot.lane.b32.xlu0 %v1461, 126
      %v1478 = vpop.permute.xlu0 %1477
      %1479 = vrot.lane.b32.xlu0 %v1462, 126
      %v1480 = vpop.permute.xlu0 %1479
      %v1481 = vsel %vm281, %v1470, %v1472
      %v1482 = vsel %vm281, %v1472, %v1474
      %v1483 = vsel %vm281, %v1476, %v1478
      %v1484 = vsel %vm281, %v1478, %v1480
      %1491 = vst [vmem:[#allocation4 + $0x60] sm:$0xff] %v1481
      %1492 = vst [vmem:[#allocation4 + $0x68] sm:$0xff] %v1482
      %1493 = vst.msk [vmem:[#allocation4 + $0x70] sm:$0xff] %vm687, %v1474
      %1494 = vst [vmem:[#allocation4 + $0x78] sm:$0xff] %v1483
      %1495 = vst [vmem:[#allocation4 + $0x80] sm:$0xff] %v1484
      %1496 = vst.msk [vmem:[#allocation4 + $0x88] sm:$0xff] %vm687, %v1480
      %v1497 = vld [vmem:[#allocation2] sm:$0xff]
      %v1498 = vld [vmem:[#allocation2 + $0x8] sm:$0xff]
      %v1499 = vld [vmem:[#allocation2 + $0x10] sm:$0xff]
      %v1500 = vld [vmem:[#allocation2 + $0x18] sm:$0xff]
      %v1501 = vld [vmem:[#allocation2 + $0x20] sm:$0xff]
      %v1502 = vld [vmem:[#allocation2 + $0x28] sm:$0xff]
      %1509 = vrot.lane.b32.xlu0 %v1497, 110
      %v1510 = vpop.permute.xlu0 %1509
      %1511 = vrot.lane.b32.xlu0 %v1498, 110
      %v1512 = vpop.permute.xlu0 %1511
      %1513 = vrot.lane.b32.xlu0 %v1499, 110
      %v1514 = vpop.permute.xlu0 %1513
      %1515 = vrot.lane.b32.xlu0 %v1500, 110
      %v1516 = vpop.permute.xlu0 %1515
      %1517 = vrot.lane.b32.xlu0 %v1501, 110
      %v1518 = vpop.permute.xlu0 %1517
      %1519 = vrot.lane.b32.xlu0 %v1502, 110
      %v1520 = vpop.permute.xlu0 %1519
      %v1521 = vsel %vm305, %v1510, %v1512
      %v1522 = vsel %vm305, %v1512, %v1514
      %v1523 = vsel %vm305, %v1516, %v1518
      %v1524 = vsel %vm305, %v1518, %v1520
      %1531 = vst [vmem:[#allocation4 + $0x90] sm:$0xff] %v1521
      %1532 = vst [vmem:[#allocation4 + $0x98] sm:$0xff] %v1522
      %1533 = vst.msk [vmem:[#allocation4 + $0xa0] sm:$0xff] %vm687, %v1514
      %1534 = vst [vmem:[#allocation4 + $0xa8] sm:$0xff] %v1523
      %1535 = vst [vmem:[#allocation4 + $0xb0] sm:$0xff] %v1524
      %1536 = vst.msk [vmem:[#allocation4 + $0xb8] sm:$0xff] %vm687, %v1520
      %v1537 = vld [vmem:[#allocation2] sm:$0xff]
      %v1538 = vld [vmem:[#allocation2 + $0x8] sm:$0xff]
      %v1539 = vld [vmem:[#allocation2 + $0x10] sm:$0xff]
      %v1540 = vld [vmem:[#allocation2 + $0x18] sm:$0xff]
      %v1541 = vld [vmem:[#allocation2 + $0x20] sm:$0xff]
      %v1542 = vld [vmem:[#allocation2 + $0x28] sm:$0xff]
      %1549 = vrot.lane.b32.xlu0 %v1537, 109
      %v1550 = vpop.permute.xlu0 %1549
      %1551 = vrot.lane.b32.xlu0 %v1538, 109
      %v1552 = vpop.permute.xlu0 %1551
      %1553 = vrot.lane.b32.xlu0 %v1539, 109
      %v1554 = vpop.permute.xlu0 %1553
      %1555 = vrot.lane.b32.xlu0 %v1540, 109
      %v1556 = vpop.permute.xlu0 %1555
      %1557 = vrot.lane.b32.xlu0 %v1541, 109
      %v1558 = vpop.permute.xlu0 %1557
      %1559 = vrot.lane.b32.xlu0 %v1542, 109
      %v1560 = vpop.permute.xlu0 %1559
      %v1561 = vsel %vm326, %v1550, %v1552
      %v1562 = vsel %vm326, %v1552, %v1554
      %v1563 = vsel %vm326, %v1556, %v1558
      %v1564 = vsel %vm326, %v1558, %v1560
      %1571 = vst [vmem:[#allocation4 + $0xc0] sm:$0xff] %v1561
      %1572 = vst [vmem:[#allocation4 + $0xc8] sm:$0xff] %v1562
      %1573 = vst.msk [vmem:[#allocation4 + $0xd0] sm:$0xff] %vm687, %v1554
      %1574 = vst [vmem:[#allocation4 + $0xd8] sm:$0xff] %v1563
      %1575 = vst [vmem:[#allocation4 + $0xe0] sm:$0xff] %v1564
      %1576 = vst.msk [vmem:[#allocation4 + $0xe8] sm:$0xff] %vm687, %v1560
      %v1577 = vld [vmem:[#allocation2] sm:$0xff]
      %v1578 = vld [vmem:[#allocation2 + $0x8] sm:$0xff]
      %v1579 = vld [vmem:[#allocation2 + $0x10] sm:$0xff]
      %v1580 = vld [vmem:[#allocation2 + $0x18] sm:$0xff]
      %v1581 = vld [vmem:[#allocation2 + $0x20] sm:$0xff]
      %v1582 = vld [vmem:[#allocation2 + $0x28] sm:$0xff]
      %1589 = vrot.lane.b32.xlu0 %v1577, 108
      %v1590 = vpop.permute.xlu0 %1589
      %1591 = vrot.lane.b32.xlu0 %v1578, 108
      %v1592 = vpop.permute.xlu0 %1591
      %1593 = vrot.lane.b32.xlu0 %v1579, 108
      %v1594 = vpop.permute.xlu0 %1593
      %1595 = vrot.lane.b32.xlu0 %v1580, 108
      %v1596 = vpop.permute.xlu0 %1595
      %1597 = vrot.lane.b32.xlu0 %v1581, 108
      %v1598 = vpop.permute.xlu0 %1597
      %1599 = vrot.lane.b32.xlu0 %v1582, 108
      %v1600 = vpop.permute.xlu0 %1599
      %v1601 = vsel %vm350, %v1590, %v1592
      %v1602 = vsel %vm350, %v1592, %v1594
      %v1603 = vsel %vm350, %v1596, %v1598
      %v1604 = vsel %vm350, %v1598, %v1600
      %1611 = vst [vmem:[#allocation4 + $0xf0] sm:$0xff] %v1601
      %1612 = vst [vmem:[#allocation4 + $0xf8] sm:$0xff] %v1602
      %1613 = vst.msk [vmem:[#allocation4 + $0x100] sm:$0xff] %vm687, %v1594
      %1614 = vst [vmem:[#allocation4 + $0x108] sm:$0xff] %v1603
      %1615 = vst [vmem:[#allocation4 + $0x110] sm:$0xff] %v1604
      %1616 = vst.msk [vmem:[#allocation4 + $0x118] sm:$0xff] %vm687, %v1600
      %v1617 = vld [vmem:[#allocation2] sm:$0xff]
      %v1618 = vld [vmem:[#allocation2 + $0x8] sm:$0xff]
      %v1619 = vld [vmem:[#allocation2 + $0x10] sm:$0xff]
      %v1620 = vld [vmem:[#allocation2 + $0x18] sm:$0xff]
      %v1621 = vld [vmem:[#allocation2 + $0x20] sm:$0xff]
      %v1622 = vld [vmem:[#allocation2 + $0x28] sm:$0xff]
      %1629 = vrot.lane.b32.xlu0 %v1617, 92
      %v1630 = vpop.permute.xlu0 %1629
      %1631 = vrot.lane.b32.xlu0 %v1618, 92
      %v1632 = vpop.permute.xlu0 %1631
      %1633 = vrot.lane.b32.xlu0 %v1619, 92
      %v1634 = vpop.permute.xlu0 %1633
      %1635 = vrot.lane.b32.xlu0 %v1620, 92
      %v1636 = vpop.permute.xlu0 %1635
      %1637 = vrot.lane.b32.xlu0 %v1621, 92
      %v1638 = vpop.permute.xlu0 %1637
      %1639 = vrot.lane.b32.xlu0 %v1622, 92
      %v1640 = vpop.permute.xlu0 %1639
      %v1641 = vsel %vm371, %v1630, %v1632
      %v1642 = vsel %vm371, %v1632, %v1634
      %v1643 = vsel %vm371, %v1636, %v1638
      %v1644 = vsel %vm371, %v1638, %v1640
      %1651 = vst [vmem:[#allocation4 + $0x120] sm:$0xff] %v1641
      %1652 = vst [vmem:[#allocation4 + $0x128] sm:$0xff] %v1642
      %1653 = vst.msk [vmem:[#allocation4 + $0x130] sm:$0xff] %vm687, %v1634
      %1654 = vst [vmem:[#allocation4 + $0x138] sm:$0xff] %v1643
      %1655 = vst [vmem:[#allocation4 + $0x140] sm:$0xff] %v1644
      %1656 = vst.msk [vmem:[#allocation4 + $0x148] sm:$0xff] %vm687, %v1640
      %v1657 = vld [vmem:[#allocation2] sm:$0xff]
      %v1658 = vld [vmem:[#allocation2 + $0x8] sm:$0xff]
      %v1659 = vld [vmem:[#allocation2 + $0x10] sm:$0xff]
      %v1660 = vld [vmem:[#allocation2 + $0x18] sm:$0xff]
      %v1661 = vld [vmem:[#allocation2 + $0x20] sm:$0xff]
      %v1662 = vld [vmem:[#allocation2 + $0x28] sm:$0xff]
      %1669 = vrot.lane.b32.xlu0 %v1657, 91
      %v1670 = vpop.permute.xlu0 %1669
      %1671 = vrot.lane.b32.xlu0 %v1658, 91
      %v1672 = vpop.permute.xlu0 %1671
      %1673 = vrot.lane.b32.xlu0 %v1659, 91
      %v1674 = vpop.permute.xlu0 %1673
      %1675 = vrot.lane.b32.xlu0 %v1660, 91
      %v1676 = vpop.permute.xlu0 %1675
      %1677 = vrot.lane.b32.xlu0 %v1661, 91
      %v1678 = vpop.permute.xlu0 %1677
      %1679 = vrot.lane.b32.xlu0 %v1662, 91
      %v1680 = vpop.permute.xlu0 %1679
      %v1681 = vsel %vm395, %v1670, %v1672
      %v1682 = vsel %vm395, %v1672, %v1674
      %v1683 = vsel %vm395, %v1676, %v1678
      %v1684 = vsel %vm395, %v1678, %v1680
      %1691 = vst [vmem:[#allocation4 + $0x150] sm:$0xff] %v1681
      %1692 = vst [vmem:[#allocation4 + $0x158] sm:$0xff] %v1682
      %1693 = vst.msk [vmem:[#allocation4 + $0x160] sm:$0xff] %vm687, %v1674
      %1694 = vst [vmem:[#allocation4 + $0x168] sm:$0xff] %v1683
      %1695 = vst [vmem:[#allocation4 + $0x170] sm:$0xff] %v1684
      %1696 = vst.msk [vmem:[#allocation4 + $0x178] sm:$0xff] %vm687, %v1680
      %v1697 = vld [vmem:[#allocation2] sm:$0xff]
      %v1698 = vld [vmem:[#allocation2 + $0x8] sm:$0xff]
      %v1699 = vld [vmem:[#allocation2 + $0x10] sm:$0xff]
      %v1700 = vld [vmem:[#allocation2 + $0x18] sm:$0xff]
      %v1701 = vld [vmem:[#allocation2 + $0x20] sm:$0xff]
      %v1702 = vld [vmem:[#allocation2 + $0x28] sm:$0xff]
      %1709 = vrot.lane.b32.xlu0 %v1697, 90
      %v1710 = vpop.permute.xlu0 %1709
      %1711 = vrot.lane.b32.xlu0 %v1698, 90
      %v1712 = vpop.permute.xlu0 %1711
      %1713 = vrot.lane.b32.xlu0 %v1699, 90
      %v1714 = vpop.permute.xlu0 %1713
      %1715 = vrot.lane.b32.xlu0 %v1700, 90
      %v1716 = vpop.permute.xlu0 %1715
      %1717 = vrot.lane.b32.xlu0 %v1701, 90
      %v1718 = vpop.permute.xlu0 %1717
      %1719 = vrot.lane.b32.xlu0 %v1702, 90
      %v1720 = vpop.permute.xlu0 %1719
      %v1721 = vsel %vm416, %v1710, %v1712
      %v1722 = vsel %vm416, %v1712, %v1714
      %v1723 = vsel %vm416, %v1716, %v1718
      %v1724 = vsel %vm416, %v1718, %v1720
      %1731 = vst [vmem:[#allocation4 + $0x180] sm:$0xff] %v1721
      %1732 = vst [vmem:[#allocation4 + $0x188] sm:$0xff] %v1722
      %1733 = vst.msk [vmem:[#allocation4 + $0x190] sm:$0xff] %vm687, %v1714
      %1734 = vst [vmem:[#allocation4 + $0x198] sm:$0xff] %v1723
      %1735 = vst [vmem:[#allocation4 + $0x1a0] sm:$0xff] %v1724
      %1736 = vst.msk [vmem:[#allocation4 + $0x1a8] sm:$0xff] %vm687, %v1720
      %s1737 = scalar_lea.vmem %s2, 96
      %v1738 = vld [vmem:[%s1737] sm:$0xff]
      %v1739 = vld [vmem:[%s1737 + $0x8] sm:$0xf]
      %v1740 = vld [vmem:[%s1737 + $0xc] sm:$0xff]
      %v1741 = vld [vmem:[%s1737 + $0x14] sm:$0xf]
      %v1742 = vld [vmem:[#allocation4] sm:$0xff]
      %v1743 = vld [vmem:[#allocation4 + $0x8] sm:$0xff]
      %v1744 = vld [vmem:[#allocation4 + $0x10] sm:$0xff]
      %v1745 = vld [vmem:[#allocation4 + $0x18] sm:$0xff]
      %v1746 = vld [vmem:[#allocation4 + $0x20] sm:$0xff]
      %v1747 = vld [vmem:[#allocation4 + $0x28] sm:$0xff]
      %v1748 = vld [vmem:[#allocation4 + $0x30] sm:$0xff]
      %v1749 = vld [vmem:[#allocation4 + $0x38] sm:$0xff]
      %v1750 = vld [vmem:[#allocation4 + $0x40] sm:$0xff]
      %v1751 = vld [vmem:[#allocation4 + $0x48] sm:$0xff]
      %v1752 = vld [vmem:[#allocation4 + $0x50] sm:$0xff]
      %v1753 = vld [vmem:[#allocation4 + $0x58] sm:$0xff]
      %v1754 = vld [vmem:[#allocation4 + $0x60] sm:$0xff]
      %v1755 = vld [vmem:[#allocation4 + $0x68] sm:$0xff]
      %v1756 = vld [vmem:[#allocation4 + $0x70] sm:$0xff]
      %v1757 = vld [vmem:[#allocation4 + $0x78] sm:$0xff]
      %v1758 = vld [vmem:[#allocation4 + $0x80] sm:$0xff]
      %v1759 = vld [vmem:[#allocation4 + $0x88] sm:$0xff]
      %v1760 = vld [vmem:[#allocation4 + $0x90] sm:$0xff]
      %v1761 = vld [vmem:[#allocation4 + $0x98] sm:$0xff]
      %v1762 = vld [vmem:[#allocation4 + $0xa0] sm:$0xff]
      %v1763 = vld [vmem:[#allocation4 + $0xa8] sm:$0xff]
      %v1764 = vld [vmem:[#allocation4 + $0xb0] sm:$0xff]
      %v1765 = vld [vmem:[#allocation4 + $0xb8] sm:$0xff]
      %v1766 = vld [vmem:[#allocation4 + $0xc0] sm:$0xff]
      %v1767 = vld [vmem:[#allocation4 + $0xc8] sm:$0xff]
      %v1768 = vld [vmem:[#allocation4 + $0xd0] sm:$0xff]
      %v1769 = vld [vmem:[#allocation4 + $0xd8] sm:$0xff]
      %v1770 = vld [vmem:[#allocation4 + $0xe0] sm:$0xff]
      %v1771 = vld [vmem:[#allocation4 + $0xe8] sm:$0xff]
      %v1772 = vld [vmem:[#allocation4 + $0xf0] sm:$0xff]
      %v1773 = vld [vmem:[#allocation4 + $0xf8] sm:$0xff]
      %v1774 = vld [vmem:[#allocation4 + $0x100] sm:$0xff]
      %v1775 = vld [vmem:[#allocation4 + $0x108] sm:$0xff]
      %v1776 = vld [vmem:[#allocation4 + $0x110] sm:$0xff]
      %v1777 = vld [vmem:[#allocation4 + $0x118] sm:$0xff]
      %v1778 = vld [vmem:[#allocation4 + $0x120] sm:$0xff]
      %v1779 = vld [vmem:[#allocation4 + $0x128] sm:$0xff]
      %v1780 = vld [vmem:[#allocation4 + $0x130] sm:$0xff]
      %v1781 = vld [vmem:[#allocation4 + $0x138] sm:$0xff]
      %v1782 = vld [vmem:[#allocation4 + $0x140] sm:$0xff]
      %v1783 = vld [vmem:[#allocation4 + $0x148] sm:$0xff]
      %v1784 = vld [vmem:[#allocation4 + $0x150] sm:$0xff]
      %v1785 = vld [vmem:[#allocation4 + $0x158] sm:$0xff]
      %v1786 = vld [vmem:[#allocation4 + $0x160] sm:$0xff]
      %v1787 = vld [vmem:[#allocation4 + $0x168] sm:$0xff]
      %v1788 = vld [vmem:[#allocation4 + $0x170] sm:$0xff]
      %v1789 = vld [vmem:[#allocation4 + $0x178] sm:$0xff]
      %v1790 = vld [vmem:[#allocation4 + $0x180] sm:$0xff]
      %v1791 = vld [vmem:[#allocation4 + $0x188] sm:$0xff]
      %v1792 = vld [vmem:[#allocation4 + $0x190] sm:$0xff]
      %v1793 = vld [vmem:[#allocation4 + $0x198] sm:$0xff]
      %v1794 = vld [vmem:[#allocation4 + $0x1a0] sm:$0xff]
      %v1795 = vld [vmem:[#allocation4 + $0x1a8] sm:$0xff]
      %s1796 = scalar_lea.vmem %s3, 64
      %v1797 = vld [vmem:[%s1796] sm:$0xff]
      %v1798 = vld [vmem:[%s1796 + $0x8] sm:$0xff]
      %1800 = vset.pattern.permute.xlu0 0
      %1801 = vperm.xlu0 %1800, %v1797
      %v1802 = vpop.permute.xlu0 %1801
      %1805 = vset.pattern.permute.xlu0 0
      %1806 = vperm.xlu0 %1805, %v1798
      %v1807 = vpop.permute.xlu0 %1806
      %v1813 = vunpack.c.l.b16 %v1738
      %v1814 = vunpack.c.h.b16 %v1738
      %v1815 = vunpack.c.l.b16 %v1739
      %v1816 = vunpack.c.l.b16 %v1740
      %v1817 = vunpack.c.h.b16 %v1740
      %v1818 = vunpack.c.l.b16 %v1741
      %v1819 = vpack.c.b16 %v1816, %v1813
      %v1820 = vpack.c.b16 %v1817, %v1814
      %v1821 = vpack.c.b16 %v1818, %v1815
      %v1825 = vsel %vm1130, %v1821, 0
      %1827 = vmatprep.subr.bf16.mxu0 %v1743
      %1828 = vmatpush1.bf16.msra.mxu0 %v1742
      %1829 = vmatprep.subr.bf16.mxu0 %v1746
      %1830 = vmatpush1.bf16.msra.mxu0 %v1745
      %1831 = vmatprep.subr.bf16.mxu0 %v1749
      %1832 = vmatpush1.bf16.msra.mxu0 %v1748
      %1833 = vmatprep.subr.bf16.mxu0 %v1752
      %1834 = vmatpush1.bf16.msra.mxu0 %v1751
      %1835 = vmatprep.subr.bf16.mxu0 %v1755
      %1836 = vmatpush1.bf16.msra.mxu0 %v1754
      %1837 = vmatprep.subr.bf16.mxu0 %v1758
      %1838 = vmatpush1.bf16.msra.mxu0 %v1757
      %1839 = vmatprep.subr.bf16.mxu0 %v1761
      %1840 = vmatpush1.bf16.msra.mxu0 %v1760
      %1841 = vmatprep.subr.bf16.mxu0 %v1764
      %1842 = vmatpush1.bf16.msra.mxu0 %v1763
      %1843 = vmatprep.subr.bf16.mxu0 %v1767
      %1844 = vmatpush1.bf16.msra.mxu0 %v1766
      %1845 = vmatprep.subr.bf16.mxu0 %v1770
      %1846 = vmatpush1.bf16.msra.mxu0 %v1769
      %1847 = vmatprep.subr.bf16.mxu0 %v1773
      %1848 = vmatpush1.bf16.msra.mxu0 %v1772
      %1849 = vmatprep.subr.bf16.mxu0 %v1776
      %1850 = vmatpush1.bf16.msra.mxu0 %v1775
      %1851 = vmatprep.subr.bf16.mxu0 %v1779
      %1852 = vmatpush1.bf16.msra.mxu0 %v1778
      %1853 = vmatprep.subr.bf16.mxu0 %v1782
      %1854 = vmatpush1.bf16.msra.mxu0 %v1781
      %1855 = vmatprep.subr.bf16.mxu0 %v1785
      %1856 = vmatpush1.bf16.msra.mxu0 %v1784
      %1857 = vmatprep.subr.bf16.mxu0 %v1788
      %1858 = vmatpush1.bf16.msra.mxu0 %v1787
      %1859 = vmatprep.mubr.bf16.mxu0 %v1820
      %1860 = vmatmul.mubr.bf16.gmra.mrb[0].mxu0 %v1819
      %v1861 = vpop.f32.mrb[0].mxu0
      %v1862 = vadd.f32 %v1802, %v1861
      %v1863 = vpop.f32.mrb[0].mxu0
      %v1864 = vadd.f32 %v1802, %v1863
      %v1865 = vpop.f32.mrb[0].mxu0
      %v1866 = vadd.f32 %v1807, %v1865
      %v1867 = vpop.f32.mrb[0].mxu0
      %v1868 = vadd.f32 %v1807, %v1867
      %1869 = vdwg.mxu0
      %1870 = vmatprep.subr.bf16.mxu0 %v1791
      %1871 = vmatpush1.bf16.msra.mxu0 %v1790
      %1872 = vmatprep.subr.bf16.mxu0 %v1794
      %1873 = vmatpush1.bf16.msra.mxu0 %v1793
      %1874 = vmatprep.subr.bf16.mxu0 0
      %1875 = vmatpush1.bf16.msra.mxu0 0
      %1876 = vmatprep.subr.bf16.mxu0 0
      %1877 = vmatpush1.bf16.msra.mxu0 0
      %1878 = vmatprep.subr.bf16.mxu0 0
      %1879 = vmatpush1.bf16.msra.mxu0 0
      %1880 = vmatprep.subr.bf16.mxu0 0
      %1881 = vmatpush1.bf16.msra.mxu0 0
      %1882 = vmatprep.subr.bf16.mxu0 0
      %1883 = vmatpush1.bf16.msra.mxu0 0
      %1884 = vmatprep.subr.bf16.mxu0 0
      %1885 = vmatpush1.bf16.msra.mxu0 0
      %1886 = vmatprep.subr.bf16.mxu0 0
      %1887 = vmatpush1.bf16.msra.mxu0 0
      %1888 = vmatprep.subr.bf16.mxu0 0
      %1889 = vmatpush1.bf16.msra.mxu0 0
      %1890 = vmatprep.subr.bf16.mxu0 0
      %1891 = vmatpush1.bf16.msra.mxu0 0
      %1892 = vmatprep.subr.bf16.mxu0 0
      %1893 = vmatpush1.bf16.msra.mxu0 0
      %1894 = vmatprep.subr.bf16.mxu0 0
      %1895 = vmatpush1.bf16.msra.mxu0 0
      %1896 = vmatprep.subr.bf16.mxu0 0
      %1897 = vmatpush1.bf16.msra.mxu0 0
      %1898 = vmatprep.subr.bf16.mxu0 0
      %1899 = vmatpush1.bf16.msra.mxu0 0
      %1900 = vmatprep.subr.bf16.mxu0 0
      %1901 = vmatpush1.bf16.msra.mxu0 0
      %1902 = vmatprep.mubr.bf16.mxu0 0
      %1903 = vmatmul.mubr.bf16.gmra.mrb[0].mxu0 %v1825
      %v1904 = vpop.f32.mrb[0].mxu0
      %v1905 = vadd.f32 %v1862, %v1904
      %v1906 = vpop.f32.mrb[0].mxu0
      %v1907 = vadd.f32 %v1864, %v1906
      %v1908 = vpop.f32.mrb[0].mxu0
      %v1909 = vadd.f32 %v1866, %v1908
      %v1910 = vpop.f32.mrb[0].mxu0
      %v1911 = vadd.f32 %v1868, %v1910
      %1912 = vdwg.mxu0
      %1913 = vmatprep.subr.bf16.mxu0 0
      %1914 = vmatpush1.bf16.msra.mxu0 %v1744
      %1915 = vmatprep.subr.bf16.mxu0 0
      %1916 = vmatpush1.bf16.msra.mxu0 %v1747
      %1917 = vmatprep.subr.bf16.mxu0 0
      %1918 = vmatpush1.bf16.msra.mxu0 %v1750
      %1919 = vmatprep.subr.bf16.mxu0 0
      %1920 = vmatpush1.bf16.msra.mxu0 %v1753
      %1921 = vmatprep.subr.bf16.mxu0 0
      %1922 = vmatpush1.bf16.msra.mxu0 %v1756
      %1923 = vmatprep.subr.bf16.mxu0 0
      %1924 = vmatpush1.bf16.msra.mxu0 %v1759
      %1925 = vmatprep.subr.bf16.mxu0 0
      %1926 = vmatpush1.bf16.msra.mxu0 %v1762
      %1927 = vmatprep.subr.bf16.mxu0 0
      %1928 = vmatpush1.bf16.msra.mxu0 %v1765
      %1929 = vmatprep.subr.bf16.mxu0 0
      %1930 = vmatpush1.bf16.msra.mxu0 %v1768
      %1931 = vmatprep.subr.bf16.mxu0 0
      %1932 = vmatpush1.bf16.msra.mxu0 %v1771
      %1933 = vmatprep.subr.bf16.mxu0 0
      %1934 = vmatpush1.bf16.msra.mxu0 %v1774
      %1935 = vmatprep.subr.bf16.mxu0 0
      %1936 = vmatpush1.bf16.msra.mxu0 %v1777
      %1937 = vmatprep.subr.bf16.mxu0 0
      %1938 = vmatpush1.bf16.msra.mxu0 %v1780
      %1939 = vmatprep.subr.bf16.mxu0 0
      %1940 = vmatpush1.bf16.msra.mxu0 %v1783
      %1941 = vmatprep.subr.bf16.mxu0 0
      %1942 = vmatpush1.bf16.msra.mxu0 %v1786
      %1943 = vmatprep.subr.bf16.mxu0 0
      %1944 = vmatpush1.bf16.msra.mxu0 %v1789
      %1945 = vmatprep.mubr.bf16.mxu0 %v1820
      %1946 = vmatmul.mubr.bf16.gmra.mrb[0].mxu0 %v1819
      %v1947 = vpop.f32.mrb[0].mxu0
      %v1948 = vadd.f32 %v1802, %v1947
      %v1949 = vpop.f32.mrb[0].mxu0
      %v1950 = vpop.f32.mrb[0].mxu0
      %v1951 = vadd.f32 %v1807, %v1950
      %v1952 = vpop.f32.mrb[0].mxu0
      %1953 = vdwg.mxu0
      %1954 = vmatprep.subr.bf16.mxu0 0
      %1955 = vmatpush1.bf16.msra.mxu0 %v1792
      %1956 = vmatprep.subr.bf16.mxu0 0
      %1957 = vmatpush1.bf16.msra.mxu0 %v1795
      %1958 = vmatprep.subr.bf16.mxu0 0
      %1959 = vmatpush1.bf16.msra.mxu0 0
      %1960 = vmatprep.subr.bf16.mxu0 0
      %1961 = vmatpush1.bf16.msra.mxu0 0
      %1962 = vmatprep.subr.bf16.mxu0 0
      %1963 = vmatpush1.bf16.msra.mxu0 0
      %1964 = vmatprep.subr.bf16.mxu0 0
      %1965 = vmatpush1.bf16.msra.mxu0 0
      %1966 = vmatprep.subr.bf16.mxu0 0
      %1967 = vmatpush1.bf16.msra.mxu0 0
      %1968 = vmatprep.subr.bf16.mxu0 0
      %1969 = vmatpush1.bf16.msra.mxu0 0
      %1970 = vmatprep.subr.bf16.mxu0 0
      %1971 = vmatpush1.bf16.msra.mxu0 0
      %1972 = vmatprep.subr.bf16.mxu0 0
      %1973 = vmatpush1.bf16.msra.mxu0 0
      %1974 = vmatprep.subr.bf16.mxu0 0
      %1975 = vmatpush1.bf16.msra.mxu0 0
      %1976 = vmatprep.subr.bf16.mxu0 0
      %1977 = vmatpush1.bf16.msra.mxu0 0
      %1978 = vmatprep.subr.bf16.mxu0 0
      %1979 = vmatpush1.bf16.msra.mxu0 0
      %1980 = vmatprep.subr.bf16.mxu0 0
      %1981 = vmatpush1.bf16.msra.mxu0 0
      %1982 = vmatprep.subr.bf16.mxu0 0
      %1983 = vmatpush1.bf16.msra.mxu0 0
      %1984 = vmatprep.subr.bf16.mxu0 0
      %1985 = vmatpush1.bf16.msra.mxu0 0
      %1986 = vmatprep.mubr.bf16.mxu0 0
      %1987 = vmatmul.mubr.bf16.gmra.mrb[0].mxu0 %v1825
      %v1988 = vpop.f32.mrb[0].mxu0
      %v1989 = vadd.f32 %v1948, %v1988
      %v1990 = vpop.f32.mrb[0].mxu0
      %v1991 = vpop.f32.mrb[0].mxu0
      %v1992 = vadd.f32 %v1951, %v1991
      %v1993 = vpop.f32.mrb[0].mxu0
      %1994 = vdwg.mxu0
      %v1995 = vmax.f32 %v1905, 0.0
      %v1996 = vmax.f32 %v1907, 0.0
      %v1997 = vmax.f32 %v1989, 0.0
      %v1998 = vmax.f32 %v1909, 0.0
      %v1999 = vmax.f32 %v1911, 0.0
      %v2000 = vmax.f32 %v1992, 0.0
      %v2001 = vmul.f32 %v1995, %v613
      %v2002 = vmul.f32 %v1996, %v617
      %v2003 = vmul.f32 %v1997, %v621
      %v2004 = vmul.f32 %v1998, %v613
      %v2005 = vmul.f32 %v1999, %v617
      %v2006 = vmul.f32 %v2000, %v621
      %v2007 = vpack.c.bf16 %v2004, %v2001
      %v2008 = vpack.c.bf16 %v2005, %v2002
      %v2009 = vpack.c.bf16 %v2006, %v2003
      %2013 = vrot.lane.b32.xlu0 %v2007, 19
      %v2014 = vpop.permute.xlu0 %2013
      %2015 = vrot.lane.b32.xlu0 %v2008, 19
      %v2016 = vpop.permute.xlu0 %2015
      %2017 = vrot.lane.b32.xlu0 %v2009, 19
      %v2018 = vpop.permute.xlu0 %2017
      %v2019 = vsel %vm225, %v2014, %v2016
      %v2020 = vsel %vm225, %v2016, %v2018
      %2024 = vst.msk [vmem:[#allocation3] sm:$0xff] %vm671, %v2014
      %2025 = vst [vmem:[#allocation3 + $0x8] sm:$0xff] %v2019
      %2026 = vst.msk [vmem:[#allocation3 + $0x10] sm:$0xff] %vm674, %v2020
      %v2027 = vld [vmem:[#allocation3] sm:$0xff]
      %v2028 = vld [vmem:[#allocation3 + $0x8] sm:$0xff]
      %v2029 = vld [vmem:[#allocation3 + $0x10] sm:$0xff]
      %2030 = vst [vmem:[#allocation4] sm:$0xff] %v2027
      %2031 = vst [vmem:[#allocation4 + $0x8] sm:$0xff] %v2028
      %2032 = vst.msk [vmem:[#allocation4 + $0x10] sm:$0xff] %vm687, %v2029
      %v2033 = vld [vmem:[#allocation3] sm:$0xff]
      %v2034 = vld [vmem:[#allocation3 + $0x8] sm:$0xff]
      %v2035 = vld [vmem:[#allocation3 + $0x10] sm:$0xff]
      %2039 = vrot.lane.b32.xlu0 %v2033, 127
      %v2040 = vpop.permute.xlu0 %2039
      %2041 = vrot.lane.b32.xlu0 %v2034, 127
      %v2042 = vpop.permute.xlu0 %2041
      %2043 = vrot.lane.b32.xlu0 %v2035, 127
      %v2044 = vpop.permute.xlu0 %2043
      %v2045 = vsel %vm259, %v2040, %v2042
      %v2046 = vsel %vm259, %v2042, %v2044
      %2050 = vst [vmem:[#allocation4 + $0x18] sm:$0xff] %v2045
      %2051 = vst [vmem:[#allocation4 + $0x20] sm:$0xff] %v2046
      %2052 = vst.msk [vmem:[#allocation4 + $0x28] sm:$0xff] %vm687, %v2044
      %v2053 = vld [vmem:[#allocation3] sm:$0xff]
      %v2054 = vld [vmem:[#allocation3 + $0x8] sm:$0xff]
      %v2055 = vld [vmem:[#allocation3 + $0x10] sm:$0xff]
      %2059 = vrot.lane.b32.xlu0 %v2053, 126
      %v2060 = vpop.permute.xlu0 %2059
      %2061 = vrot.lane.b32.xlu0 %v2054, 126
      %v2062 = vpop.permute.xlu0 %2061
      %2063 = vrot.lane.b32.xlu0 %v2055, 126
      %v2064 = vpop.permute.xlu0 %2063
      %v2065 = vsel %vm281, %v2060, %v2062
      %v2066 = vsel %vm281, %v2062, %v2064
      %2070 = vst [vmem:[#allocation4 + $0x30] sm:$0xff] %v2065
      %2071 = vst [vmem:[#allocation4 + $0x38] sm:$0xff] %v2066
      %2072 = vst.msk [vmem:[#allocation4 + $0x40] sm:$0xff] %vm687, %v2064
      %v2073 = vld [vmem:[#allocation3] sm:$0xff]
      %v2074 = vld [vmem:[#allocation3 + $0x8] sm:$0xff]
      %v2075 = vld [vmem:[#allocation3 + $0x10] sm:$0xff]
      %2079 = vrot.lane.b32.xlu0 %v2073, 110
      %v2080 = vpop.permute.xlu0 %2079
      %2081 = vrot.lane.b32.xlu0 %v2074, 110
      %v2082 = vpop.permute.xlu0 %2081
      %2083 = vrot.lane.b32.xlu0 %v2075, 110
      %v2084 = vpop.permute.xlu0 %2083
      %v2085 = vsel %vm305, %v2080, %v2082
      %v2086 = vsel %vm305, %v2082, %v2084
      %2090 = vst [vmem:[#allocation4 + $0x48] sm:$0xff] %v2085
      %2091 = vst [vmem:[#allocation4 + $0x50] sm:$0xff] %v2086
      %2092 = vst.msk [vmem:[#allocation4 + $0x58] sm:$0xff] %vm687, %v2084
      %v2093 = vld [vmem:[#allocation3] sm:$0xff]
      %v2094 = vld [vmem:[#allocation3 + $0x8] sm:$0xff]
      %v2095 = vld [vmem:[#allocation3 + $0x10] sm:$0xff]
      %2099 = vrot.lane.b32.xlu0 %v2093, 109
      %v2100 = vpop.permute.xlu0 %2099
      %2101 = vrot.lane.b32.xlu0 %v2094, 109
      %v2102 = vpop.permute.xlu0 %2101
      %2103 = vrot.lane.b32.xlu0 %v2095, 109
      %v2104 = vpop.permute.xlu0 %2103
      %v2105 = vsel %vm326, %v2100, %v2102
      %v2106 = vsel %vm326, %v2102, %v2104
      %2110 = vst [vmem:[#allocation4 + $0x60] sm:$0xff] %v2105
      %2111 = vst [vmem:[#allocation4 + $0x68] sm:$0xff] %v2106
      %2112 = vst.msk [vmem:[#allocation4 + $0x70] sm:$0xff] %vm687, %v2104
      %v2113 = vld [vmem:[#allocation3] sm:$0xff]
      %v2114 = vld [vmem:[#allocation3 + $0x8] sm:$0xff]
      %v2115 = vld [vmem:[#allocation3 + $0x10] sm:$0xff]
      %2119 = vrot.lane.b32.xlu0 %v2113, 108
      %v2120 = vpop.permute.xlu0 %2119
      %2121 = vrot.lane.b32.xlu0 %v2114, 108
      %v2122 = vpop.permute.xlu0 %2121
      %2123 = vrot.lane.b32.xlu0 %v2115, 108
      %v2124 = vpop.permute.xlu0 %2123
      %v2125 = vsel %vm350, %v2120, %v2122
      %v2126 = vsel %vm350, %v2122, %v2124
      %2130 = vst [vmem:[#allocation4 + $0x78] sm:$0xff] %v2125
      %2131 = vst [vmem:[#allocation4 + $0x80] sm:$0xff] %v2126
      %2132 = vst.msk [vmem:[#allocation4 + $0x88] sm:$0xff] %vm687, %v2124
      %v2133 = vld [vmem:[#allocation3] sm:$0xff]
      %v2134 = vld [vmem:[#allocation3 + $0x8] sm:$0xff]
      %v2135 = vld [vmem:[#allocation3 + $0x10] sm:$0xff]
      %2139 = vrot.lane.b32.xlu0 %v2133, 92
      %v2140 = vpop.permute.xlu0 %2139
      %2141 = vrot.lane.b32.xlu0 %v2134, 92
      %v2142 = vpop.permute.xlu0 %2141
      %2143 = vrot.lane.b32.xlu0 %v2135, 92
      %v2144 = vpop.permute.xlu0 %2143
      %v2145 = vsel %vm371, %v2140, %v2142
      %v2146 = vsel %vm371, %v2142, %v2144
      %2150 = vst [vmem:[#allocation4 + $0x90] sm:$0xff] %v2145
      %2151 = vst [vmem:[#allocation4 + $0x98] sm:$0xff] %v2146
      %2152 = vst.msk [vmem:[#allocation4 + $0xa0] sm:$0xff] %vm687, %v2144
      %v2153 = vld [vmem:[#allocation3] sm:$0xff]
      %v2154 = vld [vmem:[#allocation3 + $0x8] sm:$0xff]
      %v2155 = vld [vmem:[#allocation3 + $0x10] sm:$0xff]
      %2159 = vrot.lane.b32.xlu0 %v2153, 91
      %v2160 = vpop.permute.xlu0 %2159
      %2161 = vrot.lane.b32.xlu0 %v2154, 91
      %v2162 = vpop.permute.xlu0 %2161
      %2163 = vrot.lane.b32.xlu0 %v2155, 91
      %v2164 = vpop.permute.xlu0 %2163
      %v2165 = vsel %vm395, %v2160, %v2162
      %v2166 = vsel %vm395, %v2162, %v2164
      %2170 = vst [vmem:[#allocation4 + $0xa8] sm:$0xff] %v2165
      %2171 = vst [vmem:[#allocation4 + $0xb0] sm:$0xff] %v2166
      %2172 = vst.msk [vmem:[#allocation4 + $0xb8] sm:$0xff] %vm687, %v2164
      %v2173 = vld [vmem:[#allocation3] sm:$0xff]
      %v2174 = vld [vmem:[#allocation3 + $0x8] sm:$0xff]
      %v2175 = vld [vmem:[#allocation3 + $0x10] sm:$0xff]
      %2179 = vrot.lane.b32.xlu0 %v2173, 90
      %v2180 = vpop.permute.xlu0 %2179
      %2181 = vrot.lane.b32.xlu0 %v2174, 90
      %v2182 = vpop.permute.xlu0 %2181
      %2183 = vrot.lane.b32.xlu0 %v2175, 90
      %v2184 = vpop.permute.xlu0 %2183
      %v2185 = vsel %vm416, %v2180, %v2182
      %v2186 = vsel %vm416, %v2182, %v2184
      %2190 = vst [vmem:[#allocation4 + $0xc0] sm:$0xff] %v2185
      %2191 = vst [vmem:[#allocation4 + $0xc8] sm:$0xff] %v2186
      %2192 = vst.msk [vmem:[#allocation4 + $0xd0] sm:$0xff] %vm687, %v2184
      %s2193 = scalar_lea.vmem %s2, 144
      %v2194 = vld [vmem:[%s2193] sm:$0xff]
      %v2195 = vld [vmem:[%s2193 + $0xc] sm:$0xff]
      %v2196 = vld [vmem:[#allocation4] sm:$0xff]
      %v2197 = vld [vmem:[#allocation4 + $0x8] sm:$0xff]
      %v2198 = vld [vmem:[#allocation4 + $0x10] sm:$0xff]
      %v2199 = vld [vmem:[#allocation4 + $0x18] sm:$0xff]
      %v2200 = vld [vmem:[#allocation4 + $0x20] sm:$0xff]
      %v2201 = vld [vmem:[#allocation4 + $0x28] sm:$0xff]
      %v2202 = vld [vmem:[#allocation4 + $0x30] sm:$0xff]
      %v2203 = vld [vmem:[#allocation4 + $0x38] sm:$0xff]
      %v2204 = vld [vmem:[#allocation4 + $0x40] sm:$0xff]
      %v2205 = vld [vmem:[#allocation4 + $0x48] sm:$0xff]
      %v2206 = vld [vmem:[#allocation4 + $0x50] sm:$0xff]
      %v2207 = vld [vmem:[#allocation4 + $0x58] sm:$0xff]
      %v2208 = vld [vmem:[#allocation4 + $0x60] sm:$0xff]
      %v2209 = vld [vmem:[#allocation4 + $0x68] sm:$0xff]
      %v2210 = vld [vmem:[#allocation4 + $0x70] sm:$0xff]
      %v2211 = vld [vmem:[#allocation4 + $0x78] sm:$0xff]
      %v2212 = vld [vmem:[#allocation4 + $0x80] sm:$0xff]
      %v2213 = vld [vmem:[#allocation4 + $0x88] sm:$0xff]
      %v2214 = vld [vmem:[#allocation4 + $0x90] sm:$0xff]
      %v2215 = vld [vmem:[#allocation4 + $0x98] sm:$0xff]
      %v2216 = vld [vmem:[#allocation4 + $0xa0] sm:$0xff]
      %v2217 = vld [vmem:[#allocation4 + $0xa8] sm:$0xff]
      %v2218 = vld [vmem:[#allocation4 + $0xb0] sm:$0xff]
      %v2219 = vld [vmem:[#allocation4 + $0xb8] sm:$0xff]
      %v2220 = vld [vmem:[#allocation4 + $0xc0] sm:$0xff]
      %v2221 = vld [vmem:[#allocation4 + $0xc8] sm:$0xff]
      %v2222 = vld [vmem:[#allocation4 + $0xd0] sm:$0xff]
      %s2223 = scalar_lea.vmem %s3, 96
      %v2224 = vld [vmem:[%s2223] sm:$0xff]
      %v2225 = vld [vmem:[%s2223 + $0x8] sm:$0xff]
      %2227 = vset.pattern.permute.xlu0 0
      %2228 = vperm.xlu0 %2227, %v2224
      %v2229 = vpop.permute.xlu0 %2228
      %2232 = vset.pattern.permute.xlu0 0
      %2233 = vperm.xlu0 %2232, %v2225
      %v2234 = vpop.permute.xlu0 %2233
      %v2238 = vunpack.c.l.b16 %v2194
      %v2239 = vunpack.c.h.b16 %v2194
      %v2240 = vunpack.c.l.b16 %v2195
      %v2241 = vunpack.c.h.b16 %v2195
      %v2242 = vpack.c.b16 %v2240, %v2238
      %v2243 = vpack.c.b16 %v2241, %v2239
      %vm2245 = vcmask 130048
      %v2247 = vsel %vm2245, %v2243, 0
      %2249 = vmatprep.subr.bf16.mxu0 %v2197
      %2250 = vmatpush1.bf16.msra.mxu0 %v2196
      %2251 = vmatprep.subr.bf16.mxu0 %v2200
      %2252 = vmatpush1.bf16.msra.mxu0 %v2199
      %2253 = vmatprep.subr.bf16.mxu0 %v2203
      %2254 = vmatpush1.bf16.msra.mxu0 %v2202
      %2255 = vmatprep.subr.bf16.mxu0 %v2206
      %2256 = vmatpush1.bf16.msra.mxu0 %v2205
      %2257 = vmatprep.subr.bf16.mxu0 %v2209
      %2258 = vmatpush1.bf16.msra.mxu0 %v2208
      %2259 = vmatprep.subr.bf16.mxu0 %v2212
      %2260 = vmatpush1.bf16.msra.mxu0 %v2211
      %2261 = vmatprep.subr.bf16.mxu0 %v2215
      %2262 = vmatpush1.bf16.msra.mxu0 %v2214
      %2263 = vmatprep.subr.bf16.mxu0 %v2218
      %2264 = vmatpush1.bf16.msra.mxu0 %v2217
      %2265 = vmatprep.subr.bf16.mxu0 %v2221
      %2266 = vmatpush1.bf16.msra.mxu0 %v2220
      %2267 = vmatprep.subr.bf16.mxu0 0
      %2268 = vmatpush1.bf16.msra.mxu0 0
      %2269 = vmatprep.subr.bf16.mxu0 0
      %2270 = vmatpush1.bf16.msra.mxu0 0
      %2271 = vmatprep.subr.bf16.mxu0 0
      %2272 = vmatpush1.bf16.msra.mxu0 0
      %2273 = vmatprep.subr.bf16.mxu0 0
      %2274 = vmatpush1.bf16.msra.mxu0 0
      %2275 = vmatprep.subr.bf16.mxu0 0
      %2276 = vmatpush1.bf16.msra.mxu0 0
      %2277 = vmatprep.subr.bf16.mxu0 0
      %2278 = vmatpush1.bf16.msra.mxu0 0
      %2279 = vmatprep.subr.bf16.mxu0 0
      %2280 = vmatpush1.bf16.msra.mxu0 0
      %2281 = vmatprep.mubr.bf16.mxu0 %v2247
      %2282 = vmatmul.mubr.bf16.gmra.mrb[0].mxu0 %v2242
      %v2283 = vpop.f32.mrb[0].mxu0
      %v2284 = vadd.f32 %v2229, %v2283
      %v2285 = vpop.f32.mrb[0].mxu0
      %v2286 = vadd.f32 %v2229, %v2285
      %v2287 = vpop.f32.mrb[0].mxu0
      %v2288 = vadd.f32 %v2234, %v2287
      %v2289 = vpop.f32.mrb[0].mxu0
      %v2290 = vadd.f32 %v2234, %v2289
      %2291 = vdwg.mxu0
      %2292 = vmatprep.subr.bf16.mxu0 0
      %2293 = vmatpush1.bf16.msra.mxu0 %v2198
      %2294 = vmatprep.subr.bf16.mxu0 0
      %2295 = vmatpush1.bf16.msra.mxu0 %v2201
      %2296 = vmatprep.subr.bf16.mxu0 0
      %2297 = vmatpush1.bf16.msra.mxu0 %v2204
      %2298 = vmatprep.subr.bf16.mxu0 0
      %2299 = vmatpush1.bf16.msra.mxu0 %v2207
      %2300 = vmatprep.subr.bf16.mxu0 0
      %2301 = vmatpush1.bf16.msra.mxu0 %v2210
      %2302 = vmatprep.subr.bf16.mxu0 0
      %2303 = vmatpush1.bf16.msra.mxu0 %v2213
      %2304 = vmatprep.subr.bf16.mxu0 0
      %2305 = vmatpush1.bf16.msra.mxu0 %v2216
      %2306 = vmatprep.subr.bf16.mxu0 0
      %2307 = vmatpush1.bf16.msra.mxu0 %v2219
      %2308 = vmatprep.subr.bf16.mxu0 0
      %2309 = vmatpush1.bf16.msra.mxu0 %v2222
      %2310 = vmatprep.subr.bf16.mxu0 0
      %2311 = vmatpush1.bf16.msra.mxu0 0
      %2312 = vmatprep.subr.bf16.mxu0 0
      %2313 = vmatpush1.bf16.msra.mxu0 0
      %2314 = vmatprep.subr.bf16.mxu0 0
      %2315 = vmatpush1.bf16.msra.mxu0 0
      %2316 = vmatprep.subr.bf16.mxu0 0
      %2317 = vmatpush1.bf16.msra.mxu0 0
      %2318 = vmatprep.subr.bf16.mxu0 0
      %2319 = vmatpush1.bf16.msra.mxu0 0
      %2320 = vmatprep.subr.bf16.mxu0 0
      %2321 = vmatpush1.bf16.msra.mxu0 0
      %2322 = vmatprep.subr.bf16.mxu0 0
      %2323 = vmatpush1.bf16.msra.mxu0 0
      %2324 = vmatprep.mubr.bf16.mxu0 %v2247
      %2325 = vmatmul.mubr.bf16.gmra.mrb[0].mxu0 %v2242
      %v2326 = vpop.f32.mrb[0].mxu0
      %v2327 = vadd.f32 %v2229, %v2326
      %v2328 = vpop.f32.mrb[0].mxu0
      %v2329 = vpop.f32.mrb[0].mxu0
      %v2330 = vadd.f32 %v2234, %v2329
      %v2331 = vpop.f32.mrb[0].mxu0
      %2332 = vdwg.mxu0
      %v2333 = vmax.f32 %v2284, 0.0
      %v2334 = vmax.f32 %v2286, 0.0
      %v2335 = vmax.f32 %v2327, 0.0
      %v2336 = vmax.f32 %v2288, 0.0
      %v2337 = vmax.f32 %v2290, 0.0
      %v2338 = vmax.f32 %v2330, 0.0
      %v2339 = vmul.f32 %v2333, %v613
      %v2340 = vmul.f32 %v2334, %v617
      %v2341 = vmul.f32 %v2335, %v621
      %v2342 = vmul.f32 %v2336, %v613
      %v2343 = vmul.f32 %v2337, %v617
      %v2344 = vmul.f32 %v2338, %v621
      %v2345 = vpack.c.bf16 %v2342, %v2339
      %v2346 = vpack.c.bf16 %v2343, %v2340
      %v2347 = vpack.c.bf16 %v2344, %v2341
      %2351 = vrot.lane.b32.xlu0 %v2345, 19
      %v2352 = vpop.permute.xlu0 %2351
      %2353 = vrot.lane.b32.xlu0 %v2346, 19
      %v2354 = vpop.permute.xlu0 %2353
      %2355 = vrot.lane.b32.xlu0 %v2347, 19
      %v2356 = vpop.permute.xlu0 %2355
      %v2357 = vsel %vm225, %v2352, %v2354
      %v2358 = vsel %vm225, %v2354, %v2356
      %2362 = vst.msk [vmem:[#allocation2] sm:$0xff] %vm671, %v2352
      %2363 = vst [vmem:[#allocation2 + $0x8] sm:$0xff] %v2357
      %2364 = vst.msk [vmem:[#allocation2 + $0x10] sm:$0xff] %vm674, %v2358
      %v2365 = vld [vmem:[#allocation2] sm:$0xff]
      %v2366 = vld [vmem:[#allocation2 + $0x8] sm:$0xff]
      %v2367 = vld [vmem:[#allocation2 + $0x10] sm:$0xff]
      %2368 = vst [vmem:[#allocation4] sm:$0xff] %v2365
      %2369 = vst [vmem:[#allocation4 + $0x8] sm:$0xff] %v2366
      %2370 = vst.msk [vmem:[#allocation4 + $0x10] sm:$0xff] %vm687, %v2367
      %v2371 = vld [vmem:[#allocation2] sm:$0xff]
      %v2372 = vld [vmem:[#allocation2 + $0x8] sm:$0xff]
      %v2373 = vld [vmem:[#allocation2 + $0x10] sm:$0xff]
      %2377 = vrot.lane.b32.xlu0 %v2371, 127
      %v2378 = vpop.permute.xlu0 %2377
      %2379 = vrot.lane.b32.xlu0 %v2372, 127
      %v2380 = vpop.permute.xlu0 %2379
      %2381 = vrot.lane.b32.xlu0 %v2373, 127
      %v2382 = vpop.permute.xlu0 %2381
      %v2383 = vsel %vm259, %v2378, %v2380
      %v2384 = vsel %vm259, %v2380, %v2382
      %2388 = vst [vmem:[#allocation4 + $0x18] sm:$0xff] %v2383
      %2389 = vst [vmem:[#allocation4 + $0x20] sm:$0xff] %v2384
      %2390 = vst.msk [vmem:[#allocation4 + $0x28] sm:$0xff] %vm687, %v2382
      %v2391 = vld [vmem:[#allocation2] sm:$0xff]
      %v2392 = vld [vmem:[#allocation2 + $0x8] sm:$0xff]
      %v2393 = vld [vmem:[#allocation2 + $0x10] sm:$0xff]
      %2397 = vrot.lane.b32.xlu0 %v2391, 126
      %v2398 = vpop.permute.xlu0 %2397
      %2399 = vrot.lane.b32.xlu0 %v2392, 126
      %v2400 = vpop.permute.xlu0 %2399
      %2401 = vrot.lane.b32.xlu0 %v2393, 126
      %v2402 = vpop.permute.xlu0 %2401
      %v2403 = vsel %vm281, %v2398, %v2400
      %v2404 = vsel %vm281, %v2400, %v2402
      %2408 = vst [vmem:[#allocation4 + $0x30] sm:$0xff] %v2403
      %2409 = vst [vmem:[#allocation4 + $0x38] sm:$0xff] %v2404
      %2410 = vst.msk [vmem:[#allocation4 + $0x40] sm:$0xff] %vm687, %v2402
      %v2411 = vld [vmem:[#allocation2] sm:$0xff]
      %v2412 = vld [vmem:[#allocation2 + $0x8] sm:$0xff]
      %v2413 = vld [vmem:[#allocation2 + $0x10] sm:$0xff]
      %2417 = vrot.lane.b32.xlu0 %v2411, 110
      %v2418 = vpop.permute.xlu0 %2417
      %2419 = vrot.lane.b32.xlu0 %v2412, 110
      %v2420 = vpop.permute.xlu0 %2419
      %2421 = vrot.lane.b32.xlu0 %v2413, 110
      %v2422 = vpop.permute.xlu0 %2421
      %v2423 = vsel %vm305, %v2418, %v2420
      %v2424 = vsel %vm305, %v2420, %v2422
      %2428 = vst [vmem:[#allocation4 + $0x48] sm:$0xff] %v2423
      %2429 = vst [vmem:[#allocation4 + $0x50] sm:$0xff] %v2424
      %2430 = vst.msk [vmem:[#allocation4 + $0x58] sm:$0xff] %vm687, %v2422
      %v2431 = vld [vmem:[#allocation2] sm:$0xff]
      %v2432 = vld [vmem:[#allocation2 + $0x8] sm:$0xff]
      %v2433 = vld [vmem:[#allocation2 + $0x10] sm:$0xff]
      %2437 = vrot.lane.b32.xlu0 %v2431, 109
      %v2438 = vpop.permute.xlu0 %2437
      %2439 = vrot.lane.b32.xlu0 %v2432, 109
      %v2440 = vpop.permute.xlu0 %2439
      %2441 = vrot.lane.b32.xlu0 %v2433, 109
      %v2442 = vpop.permute.xlu0 %2441
      %v2443 = vsel %vm326, %v2438, %v2440
      %v2444 = vsel %vm326, %v2440, %v2442
      %2448 = vst [vmem:[#allocation4 + $0x60] sm:$0xff] %v2443
      %2449 = vst [vmem:[#allocation4 + $0x68] sm:$0xff] %v2444
      %2450 = vst.msk [vmem:[#allocation4 + $0x70] sm:$0xff] %vm687, %v2442
      %v2451 = vld [vmem:[#allocation2] sm:$0xff]
      %v2452 = vld [vmem:[#allocation2 + $0x8] sm:$0xff]
      %v2453 = vld [vmem:[#allocation2 + $0x10] sm:$0xff]
      %2457 = vrot.lane.b32.xlu0 %v2451, 108
      %v2458 = vpop.permute.xlu0 %2457
      %2459 = vrot.lane.b32.xlu0 %v2452, 108
      %v2460 = vpop.permute.xlu0 %2459
      %2461 = vrot.lane.b32.xlu0 %v2453, 108
      %v2462 = vpop.permute.xlu0 %2461
      %v2463 = vsel %vm350, %v2458, %v2460
      %v2464 = vsel %vm350, %v2460, %v2462
      %2468 = vst [vmem:[#allocation4 + $0x78] sm:$0xff] %v2463
      %2469 = vst [vmem:[#allocation4 + $0x80] sm:$0xff] %v2464
      %2470 = vst.msk [vmem:[#allocation4 + $0x88] sm:$0xff] %vm687, %v2462
      %v2471 = vld [vmem:[#allocation2] sm:$0xff]
      %v2472 = vld [vmem:[#allocation2 + $0x8] sm:$0xff]
      %v2473 = vld [vmem:[#allocation2 + $0x10] sm:$0xff]
      %2477 = vrot.lane.b32.xlu0 %v2471, 92
      %v2478 = vpop.permute.xlu0 %2477
      %2479 = vrot.lane.b32.xlu0 %v2472, 92
      %v2480 = vpop.permute.xlu0 %2479
      %2481 = vrot.lane.b32.xlu0 %v2473, 92
      %v2482 = vpop.permute.xlu0 %2481
      %v2483 = vsel %vm371, %v2478, %v2480
      %v2484 = vsel %vm371, %v2480, %v2482
      %2488 = vst [vmem:[#allocation4 + $0x90] sm:$0xff] %v2483
      %2489 = vst [vmem:[#allocation4 + $0x98] sm:$0xff] %v2484
      %2490 = vst.msk [vmem:[#allocation4 + $0xa0] sm:$0xff] %vm687, %v2482
      %v2491 = vld [vmem:[#allocation2] sm:$0xff]
      %v2492 = vld [vmem:[#allocation2 + $0x8] sm:$0xff]
      %v2493 = vld [vmem:[#allocation2 + $0x10] sm:$0xff]
      %2497 = vrot.lane.b32.xlu0 %v2491, 91
      %v2498 = vpop.permute.xlu0 %2497
      %2499 = vrot.lane.b32.xlu0 %v2492, 91
      %v2500 = vpop.permute.xlu0 %2499
      %2501 = vrot.lane.b32.xlu0 %v2493, 91
      %v2502 = vpop.permute.xlu0 %2501
      %v2503 = vsel %vm395, %v2498, %v2500
      %v2504 = vsel %vm395, %v2500, %v2502
      %2508 = vst [vmem:[#allocation4 + $0xa8] sm:$0xff] %v2503
      %2509 = vst [vmem:[#allocation4 + $0xb0] sm:$0xff] %v2504
      %2510 = vst.msk [vmem:[#allocation4 + $0xb8] sm:$0xff] %vm687, %v2502
      %v2511 = vld [vmem:[#allocation2] sm:$0xff]
      %v2512 = vld [vmem:[#allocation2 + $0x8] sm:$0xff]
      %v2513 = vld [vmem:[#allocation2 + $0x10] sm:$0xff]
      %2517 = vrot.lane.b32.xlu0 %v2511, 90
      %v2518 = vpop.permute.xlu0 %2517
      %2519 = vrot.lane.b32.xlu0 %v2512, 90
      %v2520 = vpop.permute.xlu0 %2519
      %2521 = vrot.lane.b32.xlu0 %v2513, 90
      %v2522 = vpop.permute.xlu0 %2521
      %v2523 = vsel %vm416, %v2518, %v2520
      %v2524 = vsel %vm416, %v2520, %v2522
      %2528 = vst [vmem:[#allocation4 + $0xc0] sm:$0xff] %v2523
      %2529 = vst [vmem:[#allocation4 + $0xc8] sm:$0xff] %v2524
      %2530 = vst.msk [vmem:[#allocation4 + $0xd0] sm:$0xff] %vm687, %v2522
      %s2531 = scalar_lea.vmem %s2, 192
      %v2532 = vld [vmem:[%s2531] sm:$0xff]
      %v2533 = vld [vmem:[#allocation4] sm:$0xff]
      %v2534 = vld [vmem:[#allocation4 + $0x8] sm:$0xff]
      %v2535 = vld [vmem:[#allocation4 + $0x10] sm:$0xff]
      %v2536 = vld [vmem:[#allocation4 + $0x18] sm:$0xff]
      %v2537 = vld [vmem:[#allocation4 + $0x20] sm:$0xff]
      %v2538 = vld [vmem:[#allocation4 + $0x28] sm:$0xff]
      %v2539 = vld [vmem:[#allocation4 + $0x30] sm:$0xff]
      %v2540 = vld [vmem:[#allocation4 + $0x38] sm:$0xff]
      %v2541 = vld [vmem:[#allocation4 + $0x40] sm:$0xff]
      %v2542 = vld [vmem:[#allocation4 + $0x48] sm:$0xff]
      %v2543 = vld [vmem:[#allocation4 + $0x50] sm:$0xff]
      %v2544 = vld [vmem:[#allocation4 + $0x58] sm:$0xff]
      %v2545 = vld [vmem:[#allocation4 + $0x60] sm:$0xff]
      %v2546 = vld [vmem:[#allocation4 + $0x68] sm:$0xff]
      %v2547 = vld [vmem:[#allocation4 + $0x70] sm:$0xff]
      %v2548 = vld [vmem:[#allocation4 + $0x78] sm:$0xff]
      %v2549 = vld [vmem:[#allocation4 + $0x80] sm:$0xff]
      %v2550 = vld [vmem:[#allocation4 + $0x88] sm:$0xff]
      %v2551 = vld [vmem:[#allocation4 + $0x90] sm:$0xff]
      %v2552 = vld [vmem:[#allocation4 + $0x98] sm:$0xff]
      %v2553 = vld [vmem:[#allocation4 + $0xa0] sm:$0xff]
      %v2554 = vld [vmem:[#allocation4 + $0xa8] sm:$0xff]
      %v2555 = vld [vmem:[#allocation4 + $0xb0] sm:$0xff]
      %v2556 = vld [vmem:[#allocation4 + $0xb8] sm:$0xff]
      %v2557 = vld [vmem:[#allocation4 + $0xc0] sm:$0xff]
      %v2558 = vld [vmem:[#allocation4 + $0xc8] sm:$0xff]
      %v2559 = vld [vmem:[#allocation4 + $0xd0] sm:$0xff]
      %s2560 = scalar_lea.vmem %s3, 128
      %v2561 = vld [vmem:[%s2560] sm:$0xff]
      %2563 = vset.pattern.permute.xlu0 0
      %2564 = vperm.xlu0 %2563, %v2561
      %v2565 = vpop.permute.xlu0 %2564
      %v2568 = vunpack.c.l.b16 %v2532
      %v2569 = vunpack.c.h.b16 %v2532
      %v2570 = vpack.c.b16 %v2568, %v2568
      %v2571 = vpack.c.b16 %v2569, %v2569
      %v2574 = vsel %vm2245, %v2571, 0
      %2576 = vmatprep.subr.bf16.mxu0 %v2534
      %2577 = vmatpush1.bf16.msra.mxu0 %v2533
      %2578 = vmatprep.subr.bf16.mxu0 %v2537
      %2579 = vmatpush1.bf16.msra.mxu0 %v2536
      %2580 = vmatprep.subr.bf16.mxu0 %v2540
      %2581 = vmatpush1.bf16.msra.mxu0 %v2539
      %2582 = vmatprep.subr.bf16.mxu0 %v2543
      %2583 = vmatpush1.bf16.msra.mxu0 %v2542
      %2584 = vmatprep.subr.bf16.mxu0 %v2546
      %2585 = vmatpush1.bf16.msra.mxu0 %v2545
      %2586 = vmatprep.subr.bf16.mxu0 %v2549
      %2587 = vmatpush1.bf16.msra.mxu0 %v2548
      %2588 = vmatprep.subr.bf16.mxu0 %v2552
      %2589 = vmatpush1.bf16.msra.mxu0 %v2551
      %2590 = vmatprep.subr.bf16.mxu0 %v2555
      %2591 = vmatpush1.bf16.msra.mxu0 %v2554
      %2592 = vmatprep.subr.bf16.mxu0 %v2558
      %2593 = vmatpush1.bf16.msra.mxu0 %v2557
      %2594 = vmatprep.subr.bf16.mxu0 0
      %2595 = vmatpush1.bf16.msra.mxu0 0
      %2596 = vmatprep.subr.bf16.mxu0 0
      %2597 = vmatpush1.bf16.msra.mxu0 0
      %2598 = vmatprep.subr.bf16.mxu0 0
      %2599 = vmatpush1.bf16.msra.mxu0 0
      %2600 = vmatprep.subr.bf16.mxu0 0
      %2601 = vmatpush1.bf16.msra.mxu0 0
      %2602 = vmatprep.subr.bf16.mxu0 0
      %2603 = vmatpush1.bf16.msra.mxu0 0
      %2604 = vmatprep.subr.bf16.mxu0 0
      %2605 = vmatpush1.bf16.msra.mxu0 0
      %2606 = vmatprep.subr.bf16.mxu0 0
      %2607 = vmatpush1.bf16.msra.mxu0 0
      %2608 = vmatprep.mubr.bf16.mxu0 %v2574
      %2609 = vmatmul.mubr.bf16.gmra.mrb[0].mxu0 %v2570
      %v2610 = vpop.f32.mrb[0].mxu0
      %v2611 = vadd.f32 %v2565, %v2610
      %v2612 = vpop.f32.mrb[0].mxu0
      %v2613 = vadd.f32 %v2565, %v2612
      %v2614 = vpop.f32.mrb[0].mxu0
      %v2615 = vpop.f32.mrb[0].mxu0
      %2616 = vdwg.mxu0
      %2617 = vmatprep.subr.bf16.mxu0 0
      %2618 = vmatpush1.bf16.msra.mxu0 %v2535
      %2619 = vmatprep.subr.bf16.mxu0 0
      %2620 = vmatpush1.bf16.msra.mxu0 %v2538
      %2621 = vmatprep.subr.bf16.mxu0 0
      %2622 = vmatpush1.bf16.msra.mxu0 %v2541
      %2623 = vmatprep.subr.bf16.mxu0 0
      %2624 = vmatpush1.bf16.msra.mxu0 %v2544
      %2625 = vmatprep.subr.bf16.mxu0 0
      %2626 = vmatpush1.bf16.msra.mxu0 %v2547
      %2627 = vmatprep.subr.bf16.mxu0 0
      %2628 = vmatpush1.bf16.msra.mxu0 %v2550
      %2629 = vmatprep.subr.bf16.mxu0 0
      %2630 = vmatpush1.bf16.msra.mxu0 %v2553
      %2631 = vmatprep.subr.bf16.mxu0 0
      %2632 = vmatpush1.bf16.msra.mxu0 %v2556
      %2633 = vmatprep.subr.bf16.mxu0 0
      %2634 = vmatpush1.bf16.msra.mxu0 %v2559
      %2635 = vmatprep.subr.bf16.mxu0 0
      %2636 = vmatpush1.bf16.msra.mxu0 0
      %2637 = vmatprep.subr.bf16.mxu0 0
      %2638 = vmatpush1.bf16.msra.mxu0 0
      %2639 = vmatprep.subr.bf16.mxu0 0
      %2640 = vmatpush1.bf16.msra.mxu0 0
      %2641 = vmatprep.subr.bf16.mxu0 0
      %2642 = vmatpush1.bf16.msra.mxu0 0
      %2643 = vmatprep.subr.bf16.mxu0 0
      %2644 = vmatpush1.bf16.msra.mxu0 0
      %2645 = vmatprep.subr.bf16.mxu0 0
      %2646 = vmatpush1.bf16.msra.mxu0 0
      %2647 = vmatprep.subr.bf16.mxu0 0
      %2648 = vmatpush1.bf16.msra.mxu0 0
      %2649 = vmatprep.mubr.bf16.mxu0 %v2574
      %2650 = vmatmul.mubr.bf16.gmra.mrb[0].mxu0 %v2570
      %v2651 = vpop.f32.mrb[0].mxu0
      %v2652 = vadd.f32 %v2565, %v2651
      %v2653 = vpop.f32.mrb[0].mxu0
      %v2654 = vpop.f32.mrb[0].mxu0
      %v2655 = vpop.f32.mrb[0].mxu0
      %2656 = vdwg.mxu0
      %v2657 = vmax.f32 %v2611, 0.0
      %v2658 = vmax.f32 %v2613, 0.0
      %v2659 = vmax.f32 %v2652, 0.0
      %v2660 = vmul.f32 %v2657, %v613
      %v2661 = vmul.f32 %v2658, %v617
      %v2662 = vmul.f32 %v2659, %v621
      %v2663 = vpack.c.bf16 %v2660, %v2660
      %v2664 = vpack.c.bf16 %v2661, %v2661
      %v2665 = vpack.c.bf16 %v2662, %v2662
      %2669 = vrot.lane.b32.xlu0 %v2663, 19
      %v2670 = vpop.permute.xlu0 %2669
      %2671 = vrot.lane.b32.xlu0 %v2664, 19
      %v2672 = vpop.permute.xlu0 %2671
      %2673 = vrot.lane.b32.xlu0 %v2665, 19
      %v2674 = vpop.permute.xlu0 %2673
      %v2675 = vsel %vm225, %v2670, %v2672
      %v2676 = vsel %vm225, %v2672, %v2674
      %2680 = vst.msk [vmem:[#allocation3] sm:$0xf] %vm231, %v2670
      %2681 = vst [vmem:[#allocation3 + $0x8] sm:$0xf] %v2675
      %2682 = vst.msk [vmem:[#allocation3 + $0x10] sm:$0xf] %vm234, %v2676
      %v2683 = vld [vmem:[#allocation3] sm:$0xf]
      %v2684 = vld [vmem:[#allocation3 + $0x8] sm:$0xf]
      %v2685 = vld [vmem:[#allocation3 + $0x10] sm:$0xf]
      %2689 = vrot.lane.b32.xlu0 %v2683, 109
      %v2690 = vpop.permute.xlu0 %2689
      %2691 = vrot.lane.b32.xlu0 %v2684, 109
      %v2692 = vpop.permute.xlu0 %2691
      %2693 = vrot.lane.b32.xlu0 %v2685, 109
      %v2694 = vpop.permute.xlu0 %2693
      %v2695 = vsel %vm326, %v2690, %v2692
      %v2696 = vsel %vm326, %v2692, %v2694
      %2700 = vst [vmem:[#allocation4] sm:$0xf] %v2695
      %2701 = vst [vmem:[#allocation4 + $0x8] sm:$0xf] %v2696
      %2702 = vst.msk [vmem:[#allocation4 + $0x10] sm:$0xf] %vm242, %v2694
      %s2703 = scalar_lea.vmem %s2, 240
      %v2704 = vld [vmem:[%s2703] sm:$0x1]
      %v2705 = vld [vmem:[#allocation4] sm:$0xf]
      %v2706 = vld [vmem:[#allocation4 + $0x8] sm:$0xf]
      %v2707 = vld [vmem:[#allocation4 + $0x10] sm:$0xf]
      %s2708 = scalar_lea.vmem %s3, 160
      %v2709 = vld [vmem:[%s2708] sm:$0x3]
      %2711 = vset.pattern.permute.xlu0 0
      %2712 = vperm.xlu0 %2711, %v2709
      %v2713 = vpop.permute.xlu0 %2712
      %vm2715 = vcmask 64512
      %v2717 = vsel %vm2715, %v2704, 0
      %v2720 = vsel %vm485, %v2705, 0
      %v2723 = vsel %vm485, %v2706, 0
      %v2726 = vsel %vm485, %v2707, 0
      %2728 = vmatprep.subr.bf16.mxu0 %v2723
      %2729 = vmatpush1.bf16.msra.mxu0 %v2720
      %2730 = vmatprep.subr.bf16.mxu0 0
      %2731 = vmatpush1.bf16.msra.mxu0 0
      %2732 = vmatprep.subr.bf16.mxu0 0
      %2733 = vmatpush1.bf16.msra.mxu0 0
      %2734 = vmatprep.subr.bf16.mxu0 0
      %2735 = vmatpush1.bf16.msra.mxu0 0
      %2736 = vmatprep.subr.bf16.mxu0 0
      %2737 = vmatpush1.bf16.msra.mxu0 0
      %2738 = vmatprep.subr.bf16.mxu0 0
      %2739 = vmatpush1.bf16.msra.mxu0 0
      %2740 = vmatprep.subr.bf16.mxu0 0
      %2741 = vmatpush1.bf16.msra.mxu0 0
      %2742 = vmatprep.subr.bf16.mxu0 0
      %2743 = vmatpush1.bf16.msra.mxu0 0
      %2744 = vmatprep.subr.bf16.mxu0 0
      %2745 = vmatpush1.bf16.msra.mxu0 0
      %2746 = vmatprep.subr.bf16.mxu0 0
      %2747 = vmatpush1.bf16.msra.mxu0 0
      %2748 = vmatprep.subr.bf16.mxu0 0
      %2749 = vmatpush1.bf16.msra.mxu0 0
      %2750 = vmatprep.subr.bf16.mxu0 0
      %2751 = vmatpush1.bf16.msra.mxu0 0
      %2752 = vmatprep.subr.bf16.mxu0 0
      %2753 = vmatpush1.bf16.msra.mxu0 0
      %2754 = vmatprep.subr.bf16.mxu0 0
      %2755 = vmatpush1.bf16.msra.mxu0 0
      %2756 = vmatprep.subr.bf16.mxu0 0
      %2757 = vmatpush1.bf16.msra.mxu0 0
      %2758 = vmatprep.subr.bf16.mxu0 0
      %2759 = vmatpush1.bf16.msra.mxu0 0
      %2760 = vmatprep.mubr.bf16.mxu0 0
      %2761 = vmatmul.mubr.bf16.gmra.mrb[0].mxu0 %v2717
      %v2762 = vpop.f32.mrb[0].mxu0
      %v2763 = vadd.f32 %v2713, %v2762
      %v2764 = vpop.f32.mrb[0].mxu0
      %v2765 = vadd.f32 %v2713, %v2764
      %v2766 = vpop.f32.mrb[0].mxu0
      %v2767 = vpop.f32.mrb[0].mxu0
      %2768 = vdwg.mxu0
      %2769 = vmatprep.subr.bf16.mxu0 0
      %2770 = vmatpush1.bf16.msra.mxu0 %v2726
      %2771 = vmatprep.subr.bf16.mxu0 0
      %2772 = vmatpush1.bf16.msra.mxu0 0
      %2773 = vmatprep.subr.bf16.mxu0 0
      %2774 = vmatpush1.bf16.msra.mxu0 0
      %2775 = vmatprep.subr.bf16.mxu0 0
      %2776 = vmatpush1.bf16.msra.mxu0 0
      %2777 = vmatprep.subr.bf16.mxu0 0
      %2778 = vmatpush1.bf16.msra.mxu0 0
      %2779 = vmatprep.subr.bf16.mxu0 0
      %2780 = vmatpush1.bf16.msra.mxu0 0
      %2781 = vmatprep.subr.bf16.mxu0 0
      %2782 = vmatpush1.bf16.msra.mxu0 0
      %2783 = vmatprep.subr.bf16.mxu0 0
      %2784 = vmatpush1.bf16.msra.mxu0 0
      %2785 = vmatprep.subr.bf16.mxu0 0
      %2786 = vmatpush1.bf16.msra.mxu0 0
      %2787 = vmatprep.subr.bf16.mxu0 0
      %2788 = vmatpush1.bf16.msra.mxu0 0
      %2789 = vmatprep.subr.bf16.mxu0 0
      %2790 = vmatpush1.bf16.msra.mxu0 0
      %2791 = vmatprep.subr.bf16.mxu0 0
      %2792 = vmatpush1.bf16.msra.mxu0 0
      %2793 = vmatprep.subr.bf16.mxu0 0
      %2794 = vmatpush1.bf16.msra.mxu0 0
      %2795 = vmatprep.subr.bf16.mxu0 0
      %2796 = vmatpush1.bf16.msra.mxu0 0
      %2797 = vmatprep.subr.bf16.mxu0 0
      %2798 = vmatpush1.bf16.msra.mxu0 0
      %2799 = vmatprep.subr.bf16.mxu0 0
      %2800 = vmatpush1.bf16.msra.mxu0 0
      %2801 = vmatprep.mubr.bf16.mxu0 0
      %2802 = vmatmul.mubr.bf16.gmra.mrb[0].mxu0 %v2717
      %v2803 = vpop.f32.mrb[0].mxu0
      %v2804 = vadd.f32 %v2713, %v2803
      %v2805 = vpop.f32.mrb[0].mxu0
      %v2806 = vpop.f32.mrb[0].mxu0
      %v2807 = vpop.f32.mrb[0].mxu0
      %2808 = vdwg.mxu0
      %v2812 = vcombine.low %v2763, %v2765
      %v2814 = vunpack.c.l.s4 1983009808
      %v2815 = vunpack.c.0.s8 %v2814
      %v2816 = vlaneseq
      %v2817 = vshrl.u32 %v2816, 7
      %v2818 = vsub.s32 %v2815, %v2817
      %v2819 = vrot.slane %v2812, %v2818
      %v2821 = vunpack.c.l.s4 1983009808
      %v2822 = vunpack.c.0.s8 %v2821
      %v2823 = vlaneseq
      %v2824 = vshrl.u32 %v2823, 7
      %v2825 = vsub.s32 %v2822, %v2824
      %v2826 = vrot.slane %v2804, %v2825
      %v2827 = vcombine.low %v2819, %v2826
      %vm2829 = vcmask 1041408
      %vm2830 = vcmask 1043458
      %vm2831 = vmor %vm2830, %vm2829
      %vm2832 = vcmask 553988
      %vm2833 = vmor %vm2832, %vm2831
      %2834 = vst.msk [vmem:[%s197] sm:$0x3f] %vm2833, %v2827
      %p2835 = scmp.lt.s32.totalorder %s15, 1
      %s2836 = scalar_select %p2835, %s15, 1
      %s2837 = smul.addr %s2836, 3
      %s2838 = smul.addr %s2837, 2
      %s2839 = scalar_lea.vmem %s4, %s2838
      // Predicated region
      $region37: #{fconv_forward.1} parent=35 // pred_check
        %p2840 = pneg %p122
      $region38: #{fconv_forward.1} parent=35 // pred_check_branch
        %2842 = sbr.rel (%p2840) target = $region40
      $region39: #{fconv_forward.1} parent=35 // pred_region
        _
      $region40: #{fconv_forward.1} parent=35 // pred_fallthru
        _
    $region36: #{fconv_forward.1} parent=5 // pred_fallthru
      _
    %p2843 = scmp.le.s32.totalorder 2, %s10
    // Predicated region
    $region41: #{fconv_forward.1} parent=5 // pred_check
      %p2844 = pneg %p2843
    $region42: #{fconv_forward.1} parent=5 // pred_check_branch
      %2846 = sbr.rel (%p2844) target = $region44
    $region43: #{fconv_forward.1} parent=5 // pred_region
      %s2847 = ssub.s32 %s10, 2
      // Predicated region
      $region45: #{fconv_forward.1} parent=43 // pred_check
        %p2848 = pneg %p128
      $region46: #{fconv_forward.1} parent=43 // pred_check_branch
        %2850 = sbr.rel (%p2848) target = $region48
      $region47: #{fconv_forward.1} parent=43 // pred_region
        %p2851 = scmp.lt.s32.totalorder %s16, 1
        %s2852 = scalar_select %p2851, %s16, 1
        %s2853 = smul.addr %s2852, 3
        %s2854 = smul.addr %s2853, 2
        %s2855 = scalar_lea.vmem %s4, %s2854
      $region48: #{fconv_forward.1} parent=43 // pred_fallthru
        _
    $region44: #{fconv_forward.1} parent=5 // pred_fallthru
      _
  $region6: #{fconv_forward.1} parent=0 // loop_footer
    %s14 = sadd.s32 1, %s10
  $region7: #{fconv_forward.1} parent=0 // loop_footer_branch
    %9 = sbr.rel target = $region3
  $region8: #{fconv_forward.1} parent=0 // loop_exit
    _

</llo_original>
